<compile_context>
chip_gen: v5e
topology: v5e:2x2
jax: 0.10.0
libtpu: 0.0.40
codegen_flags: <defaults>
</compile_context>

<pallas_src>
import functools

import numpy as np
import jax
import jax.numpy as jnp
from jax import lax
from jax.experimental import pallas as pl
from jax.experimental.pallas import tpu as pltpu

HIDDEN = 50   # nn.LSTM(hidden_size=50)
GP = 128      # per-gate padded lane width (one vreg column block per gate)


def lstm_kernel(x_ref,      # (Tt, B, 1)    time-major input block
                wih0_ref,   # (1, 4*GP)     layer-0 input weights row (gate order i,f,o,g)
                b0_ref,     # (1, 4*GP)     layer-0 combined bias
                wrec_ref,   # (2*GP, 8*GP)  blockdiag(Whh0, Whh1)
                wih1_ref,   # (GP, 4*GP)    layer-1 input weights
                b1_ref,     # (1, 4*GP)     layer-1 combined bias
                fcw_ref,    # (1, GP)       fc weight row (lanes >= H are zero)
                fcb_ref,    # (1, GP)       fc bias broadcast to all lanes
                out_ref,    # (B, GP)       lane-dense output (wrapper slices [:, :1])
                h0_scr, c0_scr, h1_scr, c1_scr,   # (B, GP) VMEM state carried across grid
                *, total_t, unroll):
    tt = x_ref.shape[0]
    b = x_ref.shape[1]
    nt = pl.program_id(0)
    t0 = nt * tt
    needs_mask = (total_t % tt) != 0   # static: only the ragged tail block masks

    @pl.when(nt == 0)
    def _():
        z = jnp.zeros((b, GP), jnp.float32)
        h0_scr[...] = z
        c0_scr[...] = z
        h1_scr[...] = z
        c1_scr[...] = z

    # Small row operands hoisted out of the time loop (a few vregs each).
    wih0 = wih0_ref[...]
    b0 = b0_ref[...]
    b1 = b1_ref[...]

    def cell(gates, c):
        # gate layout [i | f | o | g], each GP lanes -> whole-vreg slices.
        ifo = jax.nn.sigmoid(gates[:, :3 * GP])   # one EUP slab for i, f, o
        g = jnp.tanh(gates[:, 3 * GP:])
        i = ifo[:, 0:GP]
        f = ifo[:, GP:2 * GP]
        o = ifo[:, 2 * GP:3 * GP]
        c_new = f * c + i * g                     # pad lanes stay exactly 0
        h_new = o * jnp.tanh(c_new)
        return h_new, c_new

    def step(i, carry):
        h0, c0, h1, c1 = carry
        # Big dot first: both operands are last step's state -> off the fresh-h0
        # critical path.  Produces the recurrent halves of BOTH layers' gates.
        rec = jnp.dot(jnp.concatenate([h0, h1], axis=1), wrec_ref[...],
                      preferred_element_type=jnp.float32)        # (B, 8*GP)
        # layer 0: input projection is a broadcast mul (input_size == 1)
        gates0 = x_ref[i] * wih0 + b0 + rec[:, :4 * GP]
        h0n, c0n = cell(gates0, c0)
        # layer 1: only this small K=GP dot depends on the freshly computed h0.
        gates1 = (jnp.dot(h0n, wih1_ref[...], preferred_element_type=jnp.float32)
                  + b1 + rec[:, 4 * GP:])
        h1n, c1n = cell(gates1, c1)
        if needs_mask:
            valid = (t0 + i) < total_t
            keep = lambda new, old: jnp.where(valid, new, old)
            return keep(h0n, h0), keep(c0n, c0), keep(h1n, h1), keep(c1n, c1)
        return h0n, c0n, h1n, c1n

    carry0 = (h0_scr[...], c0_scr[...], h1_scr[...], c1_scr[...])
    h0, c0, h1, c1 = lax.fori_loop(0, tt, step, carry0, unroll=unroll)
    h0_scr[...] = h0
    c0_scr[...] = c0
    h1_scr[...] = h1
    c1_scr[...] = c1

    # TODO(synk): hold wrec/wih1 in MXU staging registers across the unrolled
    # loop (pltpu.matmul_push_rhs/acc_lhs/pop) on v6e/v7x once fill cost matters.
    # fc epilogue: VPU multiply + lane reduce (no MXU pass), lane-dense store.
    out_ref[...] = (jnp.sum(h1 * fcw_ref[...], axis=-1, keepdims=True)
                    + fcb_ref[...])


# ---------------------------------------------------------------------------
# weight layout helpers: PyTorch (4H, in) gate order (i,f,g,o)  ->
# transposed, gate order (i,f,o,g), each gate zero-padded to GP lanes.
# ---------------------------------------------------------------------------
def _prep_gate_matrix(w, row_pad=None):
    H = HIDDEN
    wt = w.T                                              # (in_dim, 4H)
    pad_c = lambda c: jnp.pad(c, ((0, 0), (0, GP - H)))
    out = jnp.concatenate([pad_c(wt[:, 0:H]),             # i
                           pad_c(wt[:, H:2 * H]),         # f
                           pad_c(wt[:, 3 * H:4 * H]),     # o
                           pad_c(wt[:, 2 * H:3 * H])],    # g
                          axis=1)                         # (in_dim, 4*GP)
    if row_pad is not None:
        out = jnp.pad(out, ((0, row_pad - out.shape[0]), (0, 0)))
    return out


def _prep_gate_bias(b):
    H = HIDDEN
    pad = lambda c: jnp.pad(c, (0, GP - H))
    return jnp.concatenate([pad(b[0:H]), pad(b[H:2 * H]),
                            pad(b[3 * H:4 * H]), pad(b[2 * H:3 * H])])[None, :]


def _padded_vmem_bytes(shape, itemsize=4):
    """f32 VMEM footprint of an array with (8,128) tiling of the last two dims."""
    s = [int(d) for d in shape]
    if len(s) == 1:
        s = [1] + s
    lead = 1
    for d in s[:-2]:
        lead *= d
    sub = -(-s[-2] // 8) * 8
    lane = -(-s[-1] // 128) * 128
    return lead * sub * lane * itemsize


def init_params(key):
    """Deterministic init matching PyTorch parameter shapes (uniform +-1/sqrt(H))."""
    H = HIDDEN
    k = 1.0 / np.sqrt(H)
    names_shapes = [
        ("weight_ih_l0", (4 * H, 1)),
        ("weight_hh_l0", (4 * H, H)),
        ("bias_ih_l0", (4 * H,)),
        ("bias_hh_l0", (4 * H,)),
        ("weight_ih_l1", (4 * H, H)),
        ("weight_hh_l1", (4 * H, H)),
        ("bias_ih_l1", (4 * H,)),
        ("bias_hh_l1", (4 * H,)),
        ("fc_weight", (1, H)),
        ("fc_bias", (1,)),
    ]
    params = {}
    for name, shape in names_shapes:
        key, sub = jax.random.split(key)
        params[name] = jax.random.uniform(sub, shape, jnp.float32, -k, k)
    return params


def lstm_model_forward(x, params):
    """x: (B, T, 1) float32 (batch_first, like the PyTorch module)."""
    B, T, _ = x.shape
    H = HIDDEN
    x_tb = jnp.transpose(x, (1, 0, 2)).astype(jnp.float32)           # (T, B, 1)

    wih0 = _prep_gate_matrix(params["weight_ih_l0"])                  # (1, 4*GP)
    b0 = _prep_gate_bias(params["bias_ih_l0"] + params["bias_hh_l0"])  # (1, 4*GP)
    whh0 = _prep_gate_matrix(params["weight_hh_l0"], row_pad=GP)      # (GP, 4*GP)
    whh1 = _prep_gate_matrix(params["weight_hh_l1"], row_pad=GP)      # (GP, 4*GP)
    zblk = jnp.zeros((GP, 4 * GP), jnp.float32)
    wrec = jnp.concatenate([jnp.concatenate([whh0, zblk], axis=1),    # (2*GP, 8*GP)
                            jnp.concatenate([zblk, whh1], axis=1)], axis=0)
    wih1 = _prep_gate_matrix(params["weight_ih_l1"], row_pad=GP)      # (GP, 4*GP)
    b1 = _prep_gate_bias(params["bias_ih_l1"] + params["bias_hh_l1"])  # (1, 4*GP)
    fcw = jnp.pad(params["fc_weight"], ((0, 0), (0, GP - H)))         # (1, GP)
    fcb = jnp.full((1, GP), params["fc_bias"][0], jnp.float32)        # (1, GP)

    # Time-block size: keep the double-buffered x block around a couple of MiB.
    per_t = _padded_vmem_bytes((1, B, 1))
    tt = int(min(T, max(8, (2 << 20) // per_t)))
    nt = -(-T // tt)

    # Unroll gated on both T-block and batch size (avoid vreg spills at large B).
    unroll = True if (tt <= 32 and B <= 16) else min(4, tt)

    weights = [wih0, b0, wrec, wih1, b1, fcw, fcb]
    vmem_limit = (2 * _padded_vmem_bytes((tt, B, 1))                  # x (double buffer)
                  + sum(2 * _padded_vmem_bytes(w.shape) for w in weights)
                  + 2 * _padded_vmem_bytes((B, GP))                   # output block
                  + 4 * _padded_vmem_bytes((B, GP))                   # h/c scratch
                  + (4 << 20))                                        # compiler headroom
    vmem_limit = int(min(max(vmem_limit, 32 << 20), 64 << 20))

    kernel = functools.partial(lstm_kernel, total_t=T, unroll=unroll)
    const2 = lambda t: (0, 0)

    # TODO(synk): for large B on v7x, add a leading "parallel" batch grid axis so
    # each TensorCore runs an independent batch shard of the recurrence.
    grid_spec = pltpu.PrefetchScalarGridSpec(
        num_scalar_prefetch=0,
        grid=(nt,),
        in_specs=[
            pl.BlockSpec((tt, B, 1), lambda t: (t, 0, 0)),   # x, streamed over T
            pl.BlockSpec((1, 4 * GP), const2),               # wih0
            pl.BlockSpec((1, 4 * GP), const2),               # b0
            pl.BlockSpec((2 * GP, 8 * GP), const2),          # wrec (blockdiag)
            pl.BlockSpec((GP, 4 * GP), const2),              # wih1
            pl.BlockSpec((1, 4 * GP), const2),               # b1
            pl.BlockSpec((1, GP), const2),                   # fcw
            pl.BlockSpec((1, GP), const2),                   # fcb
        ],
        out_specs=pl.BlockSpec((B, GP), const2),
        scratch_shapes=[pltpu.VMEM((B, GP), jnp.float32) for _ in range(4)],
    )

    out_padded = pl.pallas_call(
        kernel,
        out_shape=jax.ShapeDtypeStruct((B, GP), jnp.float32),
        grid_spec=grid_spec,
        compiler_params=pltpu.CompilerParams(
            dimension_semantics=("arbitrary",),
            vmem_limit_bytes=vmem_limit),
    )(x_tb, wih0, b0, wrec, wih1, b1, fcw, fcb)
    return out_padded[:, :1]                                          # (B, 1)


def reference_forward(x, params):
    """Pure-JAX reference mirroring torch.nn.LSTM + Linear semantics."""
    H = HIDDEN
    B, T, _ = x.shape

    def cell(h, c, gates):
        i = jax.nn.sigmoid(gates[:, 0:H])
        f = jax.nn.sigmoid(gates[:, H:2 * H])
        g = jnp.tanh(gates[:, 2 * H:3 * H])
        o = jax.nn.sigmoid(gates[:, 3 * H:4 * H])
        c_new = f * c + i * g
        h_new = o * jnp.tanh(c_new)
        return h_new, c_new

    def step(carry, x_t):
        h0, c0, h1, c1 = carry
        g0 = (x_t @ params["weight_ih_l0"].T + h0 @ params["weight_hh_l0"].T
              + params["bias_ih_l0"] + params["bias_hh_l0"])
        h0, c0 = cell(h0, c0, g0)
        g1 = (h0 @ params["weight_ih_l1"].T + h1 @ params["weight_hh_l1"].T
              + params["bias_ih_l1"] + params["bias_hh_l1"])
        h1, c1 = cell(h1, c1, g1)
        return (h0, c0, h1, c1), None

    init = tuple(jnp.zeros((B, H), jnp.float32) for _ in range(4))
    (h0, c0, h1, c1), _ = lax.scan(step, init, jnp.transpose(x, (1, 0, 2)))
    return h1 @ params["fc_weight"].T + params["fc_bias"]


if __name__ == "__main__":
    B, T = 2, 8
    key = jax.random.PRNGKey(0)
    pkey, xkey = jax.random.split(key)
    params = init_params(pkey)
    x = jax.random.normal(xkey, (B, T, 1), jnp.float32)

    out = jax.block_until_ready(lstm_model_forward(x, params))
    ref = jax.block_until_ready(reference_forward(x, params))

    assert out.shape == (B, 1), out.shape
    np.testing.assert_allclose(np.asarray(out), np.asarray(ref), rtol=1e-3, atol=1e-3)
    print("KERNEL_OK")
</pallas_src>

<mosaic_0001>
module attributes {stable_mosaic.version = 11 : i64} {
  func.func @lstm_kernel(%arg0: i32, %arg1: memref<8x2x1xf32, #tpu.memory_space<vmem>>, %arg2: memref<1x512xf32, #tpu.memory_space<vmem>>, %arg3: memref<1x512xf32, #tpu.memory_space<vmem>>, %arg4: memref<256x1024xf32, #tpu.memory_space<vmem>>, %arg5: memref<128x512xf32, #tpu.memory_space<vmem>>, %arg6: memref<1x512xf32, #tpu.memory_space<vmem>>, %arg7: memref<1x128xf32, #tpu.memory_space<vmem>>, %arg8: memref<1x128xf32, #tpu.memory_space<vmem>>, %arg9: memref<2x128xf32, #tpu.memory_space<vmem>>, %arg10: memref<2x128xf32, #tpu.memory_space<vmem>>, %arg11: memref<2x128xf32, #tpu.memory_space<vmem>>, %arg12: memref<2x128xf32, #tpu.memory_space<vmem>>, %arg13: memref<2x128xf32, #tpu.memory_space<vmem>>) attributes {dimension_semantics = [#tpu.dimension_semantics<arbitrary>], iteration_bounds = array<i64: 1>, scalar_prefetch = 0 : i64, scratch_operands = 4 : i64, tpu.core_type = #tpu.core_type<tc>, window_params = [{transform_indices = @transform_0, window_bounds = array<i64: 8, 2, 1>}, {pipeline_mode = #tpu.pipeline_mode<synchronous>, transform_indices = @transform_1, window_bounds = array<i64: 1, 512>}, {pipeline_mode = #tpu.pipeline_mode<synchronous>, transform_indices = @transform_2, window_bounds = array<i64: 1, 512>}, {pipeline_mode = #tpu.pipeline_mode<synchronous>, transform_indices = @transform_3, window_bounds = array<i64: 256, 1024>}, {pipeline_mode = #tpu.pipeline_mode<synchronous>, transform_indices = @transform_4, window_bounds = array<i64: 128, 512>}, {pipeline_mode = #tpu.pipeline_mode<synchronous>, transform_indices = @transform_5, window_bounds = array<i64: 1, 512>}, {pipeline_mode = #tpu.pipeline_mode<synchronous>, transform_indices = @transform_6, window_bounds = array<i64: 1, 128>}, {pipeline_mode = #tpu.pipeline_mode<synchronous>, transform_indices = @transform_7, window_bounds = array<i64: 1, 128>}, {pipeline_mode = #tpu.pipeline_mode<synchronous>, transform_indices = @transform_8, window_bounds = array<i64: 2, 128>}]} {
    %c0_i32 = arith.constant 0 : i32
    %0 = arith.cmpi eq, %arg0, %c0_i32 : i32
    %1 = arith.extui %0 : i1 to i32
    %c0_i32_0 = arith.constant 0 : i32
    %2 = arith.cmpi ne, %1, %c0_i32_0 : i32
    scf.if %2 {
      %cst_109 = arith.constant 0.000000e+00 : f32
      %432 = vector.broadcast %cst_109 : f32 to vector<2x128xf32>
      %c0_110 = arith.constant 0 : index
      %c0_111 = arith.constant 0 : index
      %433 = vector.load %arg10[%c0_110, %c0_111] : memref<2x128xf32, #tpu.memory_space<vmem>>, vector<2x128xf32>
      tpu.vector_store %arg10[%c0_110, %c0_111], %432 {strides = array<i32>} : memref<2x128xf32, #tpu.memory_space<vmem>>, vector<2x128xf32>,
      %c0_112 = arith.constant 0 : index
      %c0_113 = arith.constant 0 : index
      %434 = vector.load %arg11[%c0_112, %c0_113] : memref<2x128xf32, #tpu.memory_space<vmem>>, vector<2x128xf32>
      tpu.vector_store %arg11[%c0_112, %c0_113], %432 {strides = array<i32>} : memref<2x128xf32, #tpu.memory_space<vmem>>, vector<2x128xf32>,
      %c0_114 = arith.constant 0 : index
      %c0_115 = arith.constant 0 : index
      %435 = vector.load %arg12[%c0_114, %c0_115] : memref<2x128xf32, #tpu.memory_space<vmem>>, vector<2x128xf32>
      tpu.vector_store %arg12[%c0_114, %c0_115], %432 {strides = array<i32>} : memref<2x128xf32, #tpu.memory_space<vmem>>, vector<2x128xf32>,
      %c0_116 = arith.constant 0 : index
      %c0_117 = arith.constant 0 : index
      %436 = vector.load %arg13[%c0_116, %c0_117] : memref<2x128xf32, #tpu.memory_space<vmem>>, vector<2x128xf32>
      tpu.vector_store %arg13[%c0_116, %c0_117], %432 {strides = array<i32>} : memref<2x128xf32, #tpu.memory_space<vmem>>, vector<2x128xf32>,
    } else {
    }
    %c0 = arith.constant 0 : index
    %c0_1 = arith.constant 0 : index
    %3 = vector.load %arg2[%c0, %c0_1] : memref<1x512xf32, #tpu.memory_space<vmem>>, vector<1x512xf32>
    %c0_2 = arith.constant 0 : index
    %c0_3 = arith.constant 0 : index
    %4 = vector.load %arg3[%c0_2, %c0_3] : memref<1x512xf32, #tpu.memory_space<vmem>>, vector<1x512xf32>
    %c0_4 = arith.constant 0 : index
    %c0_5 = arith.constant 0 : index
    %5 = vector.load %arg6[%c0_4, %c0_5] : memref<1x512xf32, #tpu.memory_space<vmem>>, vector<1x512xf32>
    %c0_6 = arith.constant 0 : index
    %c0_7 = arith.constant 0 : index
    %6 = vector.load %arg10[%c0_6, %c0_7] : memref<2x128xf32, #tpu.memory_space<vmem>>, vector<2x128xf32>
    %c0_8 = arith.constant 0 : index
    %c0_9 = arith.constant 0 : index
    %7 = vector.load %arg11[%c0_8, %c0_9] : memref<2x128xf32, #tpu.memory_space<vmem>>, vector<2x128xf32>
    %c0_10 = arith.constant 0 : index
    %c0_11 = arith.constant 0 : index
    %8 = vector.load %arg12[%c0_10, %c0_11] : memref<2x128xf32, #tpu.memory_space<vmem>>, vector<2x128xf32>
    %c0_12 = arith.constant 0 : index
    %c0_13 = arith.constant 0 : index
    %9 = vector.load %arg13[%c0_12, %c0_13] : memref<2x128xf32, #tpu.memory_space<vmem>>, vector<2x128xf32>
    %c0_i32_14 = arith.constant 0 : i32
    %10 = tpu.concatenate %6, %8 in 1 : vector<2x128xf32>, vector<2x128xf32> -> vector<2x256xf32>
    %c0_15 = arith.constant 0 : index
    %c0_16 = arith.constant 0 : index
    %11 = vector.load %arg4[%c0_15, %c0_16] : memref<256x1024xf32, #tpu.memory_space<vmem>>, vector<256x1024xf32>
    %cst = arith.constant dense<0.000000e+00> : vector<2x1024xf32>
    %12 = tpu.matmul %10, %11, %cst {dimension_numbers = #tpu.dot_dimension_numbers<[1], [0], [0], [1], [0, 0, 1, 1], [], []>} : vector<2x256xf32>, vector<256x1024xf32>, vector<2x1024xf32> -> vector<2x1024xf32>
    %13 = arith.index_cast %c0_i32_14 : i32 to index
    %c0_17 = arith.constant 0 : index
    %c0_18 = arith.constant 0 : index
    %14 = vector.load %arg1[%13, %c0_17, %c0_18] : memref<8x2x1xf32, #tpu.memory_space<vmem>>, vector<1x2x1xf32>
    %15 = vector.shape_cast %14 : vector<1x2x1xf32> to vector<2x1xf32>
    %16 = vector.broadcast %15 : vector<2x1xf32> to vector<2x512xf32>
    %17 = vector.broadcast %3 : vector<1x512xf32> to vector<2x512xf32>
    %18 = arith.mulf %16, %17 : vector<2x512xf32>
    %19 = vector.broadcast %4 : vector<1x512xf32> to vector<2x512xf32>
    %20 = arith.addf %18, %19 : vector<2x512xf32>
    %21 = vector.extract_strided_slice %12 {offsets = [0, 0], sizes = [2, 512], strides = [1, 1]} : vector<2x1024xf32> to vector<2x512xf32>
    %22 = arith.addf %20, %21 : vector<2x512xf32>
    %23 = vector.extract_strided_slice %22 {offsets = [0, 0], sizes = [2, 384], strides = [1, 1]} : vector<2x512xf32> to vector<2x384xf32>
    %24 = arith.negf %23 : vector<2x384xf32>
    %25 = math.exp %24 : vector<2x384xf32>
    %cst_19 = arith.constant 1.000000e+00 : f32
    %26 = vector.broadcast %cst_19 : f32 to vector<2x384xf32>
    %27 = arith.addf %26, %25 : vector<2x384xf32>
    %28 = arith.divf %26, %27 : vector<2x384xf32>
    %29 = vector.extract_strided_slice %22 {offsets = [0, 384], sizes = [2, 128], strides = [1, 1]} : vector<2x512xf32> to vector<2x128xf32>
    %30 = math.tanh %29 : vector<2x128xf32>
    %31 = vector.extract_strided_slice %28 {offsets = [0, 0], sizes = [2, 128], strides = [1, 1]} : vector<2x384xf32> to vector<2x128xf32>
    %32 = vector.extract_strided_slice %28 {offsets = [0, 128], sizes = [2, 128], strides = [1, 1]} : vector<2x384xf32> to vector<2x128xf32>
    %33 = vector.extract_strided_slice %28 {offsets = [0, 256], sizes = [2, 128], strides = [1, 1]} : vector<2x384xf32> to vector<2x128xf32>
    %34 = arith.mulf %32, %7 : vector<2x128xf32>
    %35 = arith.mulf %31, %30 : vector<2x128xf32>
    %36 = arith.addf %34, %35 : vector<2x128xf32>
    %37 = math.tanh %36 : vector<2x128xf32>
    %38 = arith.mulf %33, %37 : vector<2x128xf32>
    %c0_20 = arith.constant 0 : index
    %c0_21 = arith.constant 0 : index
    %39 = vector.load %arg5[%c0_20, %c0_21] : memref<128x512xf32, #tpu.memory_space<vmem>>, vector<128x512xf32>
    %cst_22 = arith.constant dense<0.000000e+00> : vector<2x512xf32>
    %40 = tpu.matmul %38, %39, %cst_22 {dimension_numbers = #tpu.dot_dimension_numbers<[1], [0], [0], [1], [0, 0, 1, 1], [], []>} : vector<2x128xf32>, vector<128x512xf32>, vector<2x512xf32> -> vector<2x512xf32>
    %41 = vector.broadcast %5 : vector<1x512xf32> to vector<2x512xf32>
    %42 = arith.addf %40, %41 : vector<2x512xf32>
    %43 = vector.extract_strided_slice %12 {offsets = [0, 512], sizes = [2, 512], strides = [1, 1]} : vector<2x1024xf32> to vector<2x512xf32>
    %44 = arith.addf %42, %43 : vector<2x512xf32>
    %45 = vector.extract_strided_slice %44 {offsets = [0, 0], sizes = [2, 384], strides = [1, 1]} : vector<2x512xf32> to vector<2x384xf32>
    %46 = arith.negf %45 : vector<2x384xf32>
    %47 = math.exp %46 : vector<2x384xf32>
    %cst_23 = arith.constant 1.000000e+00 : f32
    %48 = vector.broadcast %cst_23 : f32 to vector<2x384xf32>
    %49 = arith.addf %48, %47 : vector<2x384xf32>
    %50 = arith.divf %48, %49 : vector<2x384xf32>
    %51 = vector.extract_strided_slice %44 {offsets = [0, 384], sizes = [2, 128], strides = [1, 1]} : vector<2x512xf32> to vector<2x128xf32>
    %52 = math.tanh %51 : vector<2x128xf32>
    %53 = vector.extract_strided_slice %50 {offsets = [0, 0], sizes = [2, 128], strides = [1, 1]} : vector<2x384xf32> to vector<2x128xf32>
    %54 = vector.extract_strided_slice %50 {offsets = [0, 128], sizes = [2, 128], strides = [1, 1]} : vector<2x384xf32> to vector<2x128xf32>
    %55 = vector.extract_strided_slice %50 {offsets = [0, 256], sizes = [2, 128], strides = [1, 1]} : vector<2x384xf32> to vector<2x128xf32>
    %56 = arith.mulf %54, %9 : vector<2x128xf32>
    %57 = arith.mulf %53, %52 : vector<2x128xf32>
    %58 = arith.addf %56, %57 : vector<2x128xf32>
    %59 = math.tanh %58 : vector<2x128xf32>
    %60 = arith.mulf %55, %59 : vector<2x128xf32>
    %c1_i32 = arith.constant 1 : i32
    %61 = tpu.concatenate %38, %60 in 1 : vector<2x128xf32>, vector<2x128xf32> -> vector<2x256xf32>
    %c0_24 = arith.constant 0 : index
    %c0_25 = arith.constant 0 : index
    %62 = vector.load %arg4[%c0_24, %c0_25] : memref<256x1024xf32, #tpu.memory_space<vmem>>, vector<256x1024xf32>
    %cst_26 = arith.constant dense<0.000000e+00> : vector<2x1024xf32>
    %63 = tpu.matmul %61, %62, %cst_26 {dimension_numbers = #tpu.dot_dimension_numbers<[1], [0], [0], [1], [0, 0, 1, 1], [], []>} : vector<2x256xf32>, vector<256x1024xf32>, vector<2x1024xf32> -> vector<2x1024xf32>
    %64 = arith.index_cast %c1_i32 : i32 to index
    %c0_27 = arith.constant 0 : index
    %c0_28 = arith.constant 0 : index
    %65 = vector.load %arg1[%64, %c0_27, %c0_28] : memref<8x2x1xf32, #tpu.memory_space<vmem>>, vector<1x2x1xf32>
    %66 = vector.shape_cast %65 : vector<1x2x1xf32> to vector<2x1xf32>
    %67 = vector.broadcast %66 : vector<2x1xf32> to vector<2x512xf32>
    %68 = vector.broadcast %3 : vector<1x512xf32> to vector<2x512xf32>
    %69 = arith.mulf %67, %68 : vector<2x512xf32>
    %70 = vector.broadcast %4 : vector<1x512xf32> to vector<2x512xf32>
    %71 = arith.addf %69, %70 : vector<2x512xf32>
    %72 = vector.extract_strided_slice %63 {offsets = [0, 0], sizes = [2, 512], strides = [1, 1]} : vector<2x1024xf32> to vector<2x512xf32>
    %73 = arith.addf %71, %72 : vector<2x512xf32>
    %74 = vector.extract_strided_slice %73 {offsets = [0, 0], sizes = [2, 384], strides = [1, 1]} : vector<2x512xf32> to vector<2x384xf32>
    %75 = arith.negf %74 : vector<2x384xf32>
    %76 = math.exp %75 : vector<2x384xf32>
    %cst_29 = arith.constant 1.000000e+00 : f32
    %77 = vector.broadcast %cst_29 : f32 to vector<2x384xf32>
    %78 = arith.addf %77, %76 : vector<2x384xf32>
    %79 = arith.divf %77, %78 : vector<2x384xf32>
    %80 = vector.extract_strided_slice %73 {offsets = [0, 384], sizes = [2, 128], strides = [1, 1]} : vector<2x512xf32> to vector<2x128xf32>
    %81 = math.tanh %80 : vector<2x128xf32>
    %82 = vector.extract_strided_slice %79 {offsets = [0, 0], sizes = [2, 128], strides = [1, 1]} : vector<2x384xf32> to vector<2x128xf32>
    %83 = vector.extract_strided_slice %79 {offsets = [0, 128], sizes = [2, 128], strides = [1, 1]} : vector<2x384xf32> to vector<2x128xf32>
    %84 = vector.extract_strided_slice %79 {offsets = [0, 256], sizes = [2, 128], strides = [1, 1]} : vector<2x384xf32> to vector<2x128xf32>
    %85 = arith.mulf %83, %36 : vector<2x128xf32>
    %86 = arith.mulf %82, %81 : vector<2x128xf32>
    %87 = arith.addf %85, %86 : vector<2x128xf32>
    %88 = math.tanh %87 : vector<2x128xf32>
    %89 = arith.mulf %84, %88 : vector<2x128xf32>
    %c0_30 = arith.constant 0 : index
    %c0_31 = arith.constant 0 : index
    %90 = vector.load %arg5[%c0_30, %c0_31] : memref<128x512xf32, #tpu.memory_space<vmem>>, vector<128x512xf32>
    %cst_32 = arith.constant dense<0.000000e+00> : vector<2x512xf32>
    %91 = tpu.matmul %89, %90, %cst_32 {dimension_numbers = #tpu.dot_dimension_numbers<[1], [0], [0], [1], [0, 0, 1, 1], [], []>} : vector<2x128xf32>, vector<128x512xf32>, vector<2x512xf32> -> vector<2x512xf32>
    %92 = vector.broadcast %5 : vector<1x512xf32> to vector<2x512xf32>
    %93 = arith.addf %91, %92 : vector<2x512xf32>
    %94 = vector.extract_strided_slice %63 {offsets = [0, 512], sizes = [2, 512], strides = [1, 1]} : vector<2x1024xf32> to vector<2x512xf32>
    %95 = arith.addf %93, %94 : vector<2x512xf32>
    %96 = vector.extract_strided_slice %95 {offsets = [0, 0], sizes = [2, 384], strides = [1, 1]} : vector<2x512xf32> to vector<2x384xf32>
    %97 = arith.negf %96 : vector<2x384xf32>
    %98 = math.exp %97 : vector<2x384xf32>
    %cst_33 = arith.constant 1.000000e+00 : f32
    %99 = vector.broadcast %cst_33 : f32 to vector<2x384xf32>
    %100 = arith.addf %99, %98 : vector<2x384xf32>
    %101 = arith.divf %99, %100 : vector<2x384xf32>
    %102 = vector.extract_strided_slice %95 {offsets = [0, 384], sizes = [2, 128], strides = [1, 1]} : vector<2x512xf32> to vector<2x128xf32>
    %103 = math.tanh %102 : vector<2x128xf32>
    %104 = vector.extract_strided_slice %101 {offsets = [0, 0], sizes = [2, 128], strides = [1, 1]} : vector<2x384xf32> to vector<2x128xf32>
    %105 = vector.extract_strided_slice %101 {offsets = [0, 128], sizes = [2, 128], strides = [1, 1]} : vector<2x384xf32> to vector<2x128xf32>
    %106 = vector.extract_strided_slice %101 {offsets = [0, 256], sizes = [2, 128], strides = [1, 1]} : vector<2x384xf32> to vector<2x128xf32>
    %107 = arith.mulf %105, %58 : vector<2x128xf32>
    %108 = arith.mulf %104, %103 : vector<2x128xf32>
    %109 = arith.addf %107, %108 : vector<2x128xf32>
    %110 = math.tanh %109 : vector<2x128xf32>
    %111 = arith.mulf %106, %110 : vector<2x128xf32>
    %c2_i32 = arith.constant 2 : i32
    %112 = tpu.concatenate %89, %111 in 1 : vector<2x128xf32>, vector<2x128xf32> -> vector<2x256xf32>
    %c0_34 = arith.constant 0 : index
    %c0_35 = arith.constant 0 : index
    %113 = vector.load %arg4[%c0_34, %c0_35] : memref<256x1024xf32, #tpu.memory_space<vmem>>, vector<256x1024xf32>
    %cst_36 = arith.constant dense<0.000000e+00> : vector<2x1024xf32>
    %114 = tpu.matmul %112, %113, %cst_36 {dimension_numbers = #tpu.dot_dimension_numbers<[1], [0], [0], [1], [0, 0, 1, 1], [], []>} : vector<2x256xf32>, vector<256x1024xf32>, vector<2x1024xf32> -> vector<2x1024xf32>
    %115 = arith.index_cast %c2_i32 : i32 to index
    %c0_37 = arith.constant 0 : index
    %c0_38 = arith.constant 0 : index
    %116 = vector.load %arg1[%115, %c0_37, %c0_38] : memref<8x2x1xf32, #tpu.memory_space<vmem>>, vector<1x2x1xf32>
    %117 = vector.shape_cast %116 : vector<1x2x1xf32> to vector<2x1xf32>
    %118 = vector.broadcast %117 : vector<2x1xf32> to vector<2x512xf32>
    %119 = vector.broadcast %3 : vector<1x512xf32> to vector<2x512xf32>
    %120 = arith.mulf %118, %119 : vector<2x512xf32>
    %121 = vector.broadcast %4 : vector<1x512xf32> to vector<2x512xf32>
    %122 = arith.addf %120, %121 : vector<2x512xf32>
    %123 = vector.extract_strided_slice %114 {offsets = [0, 0], sizes = [2, 512], strides = [1, 1]} : vector<2x1024xf32> to vector<2x512xf32>
    %124 = arith.addf %122, %123 : vector<2x512xf32>
    %125 = vector.extract_strided_slice %124 {offsets = [0, 0], sizes = [2, 384], strides = [1, 1]} : vector<2x512xf32> to vector<2x384xf32>
    %126 = arith.negf %125 : vector<2x384xf32>
    %127 = math.exp %126 : vector<2x384xf32>
    %cst_39 = arith.constant 1.000000e+00 : f32
    %128 = vector.broadcast %cst_39 : f32 to vector<2x384xf32>
    %129 = arith.addf %128, %127 : vector<2x384xf32>
    %130 = arith.divf %128, %129 : vector<2x384xf32>
    %131 = vector.extract_strided_slice %124 {offsets = [0, 384], sizes = [2, 128], strides = [1, 1]} : vector<2x512xf32> to vector<2x128xf32>
    %132 = math.tanh %131 : vector<2x128xf32>
    %133 = vector.extract_strided_slice %130 {offsets = [0, 0], sizes = [2, 128], strides = [1, 1]} : vector<2x384xf32> to vector<2x128xf32>
    %134 = vector.extract_strided_slice %130 {offsets = [0, 128], sizes = [2, 128], strides = [1, 1]} : vector<2x384xf32> to vector<2x128xf32>
    %135 = vector.extract_strided_slice %130 {offsets = [0, 256], sizes = [2, 128], strides = [1, 1]} : vector<2x384xf32> to vector<2x128xf32>
    %136 = arith.mulf %134, %87 : vector<2x128xf32>
    %137 = arith.mulf %133, %132 : vector<2x128xf32>
    %138 = arith.addf %136, %137 : vector<2x128xf32>
    %139 = math.tanh %138 : vector<2x128xf32>
    %140 = arith.mulf %135, %139 : vector<2x128xf32>
    %c0_40 = arith.constant 0 : index
    %c0_41 = arith.constant 0 : index
    %141 = vector.load %arg5[%c0_40, %c0_41] : memref<128x512xf32, #tpu.memory_space<vmem>>, vector<128x512xf32>
    %cst_42 = arith.constant dense<0.000000e+00> : vector<2x512xf32>
    %142 = tpu.matmul %140, %141, %cst_42 {dimension_numbers = #tpu.dot_dimension_numbers<[1], [0], [0], [1], [0, 0, 1, 1], [], []>} : vector<2x128xf32>, vector<128x512xf32>, vector<2x512xf32> -> vector<2x512xf32>
    %143 = vector.broadcast %5 : vector<1x512xf32> to vector<2x512xf32>
    %144 = arith.addf %142, %143 : vector<2x512xf32>
    %145 = vector.extract_strided_slice %114 {offsets = [0, 512], sizes = [2, 512], strides = [1, 1]} : vector<2x1024xf32> to vector<2x512xf32>
    %146 = arith.addf %144, %145 : vector<2x512xf32>
    %147 = vector.extract_strided_slice %146 {offsets = [0, 0], sizes = [2, 384], strides = [1, 1]} : vector<2x512xf32> to vector<2x384xf32>
    %148 = arith.negf %147 : vector<2x384xf32>
    %149 = math.exp %148 : vector<2x384xf32>
    %cst_43 = arith.constant 1.000000e+00 : f32
    %150 = vector.broadcast %cst_43 : f32 to vector<2x384xf32>
    %151 = arith.addf %150, %149 : vector<2x384xf32>
    %152 = arith.divf %150, %151 : vector<2x384xf32>
    %153 = vector.extract_strided_slice %146 {offsets = [0, 384], sizes = [2, 128], strides = [1, 1]} : vector<2x512xf32> to vector<2x128xf32>
    %154 = math.tanh %153 : vector<2x128xf32>
    %155 = vector.extract_strided_slice %152 {offsets = [0, 0], sizes = [2, 128], strides = [1, 1]} : vector<2x384xf32> to vector<2x128xf32>
    %156 = vector.extract_strided_slice %152 {offsets = [0, 128], sizes = [2, 128], strides = [1, 1]} : vector<2x384xf32> to vector<2x128xf32>
    %157 = vector.extract_strided_slice %152 {offsets = [0, 256], sizes = [2, 128], strides = [1, 1]} : vector<2x384xf32> to vector<2x128xf32>
    %158 = arith.mulf %156, %109 : vector<2x128xf32>
    %159 = arith.mulf %155, %154 : vector<2x128xf32>
    %160 = arith.addf %158, %159 : vector<2x128xf32>
    %161 = math.tanh %160 : vector<2x128xf32>
    %162 = arith.mulf %157, %161 : vector<2x128xf32>
    %c3_i32 = arith.constant 3 : i32
    %163 = tpu.concatenate %140, %162 in 1 : vector<2x128xf32>, vector<2x128xf32> -> vector<2x256xf32>
    %c0_44 = arith.constant 0 : index
    %c0_45 = arith.constant 0 : index
    %164 = vector.load %arg4[%c0_44, %c0_45] : memref<256x1024xf32, #tpu.memory_space<vmem>>, vector<256x1024xf32>
    %cst_46 = arith.constant dense<0.000000e+00> : vector<2x1024xf32>
    %165 = tpu.matmul %163, %164, %cst_46 {dimension_numbers = #tpu.dot_dimension_numbers<[1], [0], [0], [1], [0, 0, 1, 1], [], []>} : vector<2x256xf32>, vector<256x1024xf32>, vector<2x1024xf32> -> vector<2x1024xf32>
    %166 = arith.index_cast %c3_i32 : i32 to index
    %c0_47 = arith.constant 0 : index
    %c0_48 = arith.constant 0 : index
    %167 = vector.load %arg1[%166, %c0_47, %c0_48] : memref<8x2x1xf32, #tpu.memory_space<vmem>>, vector<1x2x1xf32>
    %168 = vector.shape_cast %167 : vector<1x2x1xf32> to vector<2x1xf32>
    %169 = vector.broadcast %168 : vector<2x1xf32> to vector<2x512xf32>
    %170 = vector.broadcast %3 : vector<1x512xf32> to vector<2x512xf32>
    %171 = arith.mulf %169, %170 : vector<2x512xf32>
    %172 = vector.broadcast %4 : vector<1x512xf32> to vector<2x512xf32>
    %173 = arith.addf %171, %172 : vector<2x512xf32>
    %174 = vector.extract_strided_slice %165 {offsets = [0, 0], sizes = [2, 512], strides = [1, 1]} : vector<2x1024xf32> to vector<2x512xf32>
    %175 = arith.addf %173, %174 : vector<2x512xf32>
    %176 = vector.extract_strided_slice %175 {offsets = [0, 0], sizes = [2, 384], strides = [1, 1]} : vector<2x512xf32> to vector<2x384xf32>
    %177 = arith.negf %176 : vector<2x384xf32>
    %178 = math.exp %177 : vector<2x384xf32>
    %cst_49 = arith.constant 1.000000e+00 : f32
    %179 = vector.broadcast %cst_49 : f32 to vector<2x384xf32>
    %180 = arith.addf %179, %178 : vector<2x384xf32>
    %181 = arith.divf %179, %180 : vector<2x384xf32>
    %182 = vector.extract_strided_slice %175 {offsets = [0, 384], sizes = [2, 128], strides = [1, 1]} : vector<2x512xf32> to vector<2x128xf32>
    %183 = math.tanh %182 : vector<2x128xf32>
    %184 = vector.extract_strided_slice %181 {offsets = [0, 0], sizes = [2, 128], strides = [1, 1]} : vector<2x384xf32> to vector<2x128xf32>
    %185 = vector.extract_strided_slice %181 {offsets = [0, 128], sizes = [2, 128], strides = [1, 1]} : vector<2x384xf32> to vector<2x128xf32>
    %186 = vector.extract_strided_slice %181 {offsets = [0, 256], sizes = [2, 128], strides = [1, 1]} : vector<2x384xf32> to vector<2x128xf32>
    %187 = arith.mulf %185, %138 : vector<2x128xf32>
    %188 = arith.mulf %184, %183 : vector<2x128xf32>
    %189 = arith.addf %187, %188 : vector<2x128xf32>
    %190 = math.tanh %189 : vector<2x128xf32>
    %191 = arith.mulf %186, %190 : vector<2x128xf32>
    %c0_50 = arith.constant 0 : index
    %c0_51 = arith.constant 0 : index
    %192 = vector.load %arg5[%c0_50, %c0_51] : memref<128x512xf32, #tpu.memory_space<vmem>>, vector<128x512xf32>
    %cst_52 = arith.constant dense<0.000000e+00> : vector<2x512xf32>
    %193 = tpu.matmul %191, %192, %cst_52 {dimension_numbers = #tpu.dot_dimension_numbers<[1], [0], [0], [1], [0, 0, 1, 1], [], []>} : vector<2x128xf32>, vector<128x512xf32>, vector<2x512xf32> -> vector<2x512xf32>
    %194 = vector.broadcast %5 : vector<1x512xf32> to vector<2x512xf32>
    %195 = arith.addf %193, %194 : vector<2x512xf32>
    %196 = vector.extract_strided_slice %165 {offsets = [0, 512], sizes = [2, 512], strides = [1, 1]} : vector<2x1024xf32> to vector<2x512xf32>
    %197 = arith.addf %195, %196 : vector<2x512xf32>
    %198 = vector.extract_strided_slice %197 {offsets = [0, 0], sizes = [2, 384], strides = [1, 1]} : vector<2x512xf32> to vector<2x384xf32>
    %199 = arith.negf %198 : vector<2x384xf32>
    %200 = math.exp %199 : vector<2x384xf32>
    %cst_53 = arith.constant 1.000000e+00 : f32
    %201 = vector.broadcast %cst_53 : f32 to vector<2x384xf32>
    %202 = arith.addf %201, %200 : vector<2x384xf32>
    %203 = arith.divf %201, %202 : vector<2x384xf32>
    %204 = vector.extract_strided_slice %197 {offsets = [0, 384], sizes = [2, 128], strides = [1, 1]} : vector<2x512xf32> to vector<2x128xf32>
    %205 = math.tanh %204 : vector<2x128xf32>
    %206 = vector.extract_strided_slice %203 {offsets = [0, 0], sizes = [2, 128], strides = [1, 1]} : vector<2x384xf32> to vector<2x128xf32>
    %207 = vector.extract_strided_slice %203 {offsets = [0, 128], sizes = [2, 128], strides = [1, 1]} : vector<2x384xf32> to vector<2x128xf32>
    %208 = vector.extract_strided_slice %203 {offsets = [0, 256], sizes = [2, 128], strides = [1, 1]} : vector<2x384xf32> to vector<2x128xf32>
    %209 = arith.mulf %207, %160 : vector<2x128xf32>
    %210 = arith.mulf %206, %205 : vector<2x128xf32>
    %211 = arith.addf %209, %210 : vector<2x128xf32>
    %212 = math.tanh %211 : vector<2x128xf32>
    %213 = arith.mulf %208, %212 : vector<2x128xf32>
    %c4_i32 = arith.constant 4 : i32
    %214 = tpu.concatenate %191, %213 in 1 : vector<2x128xf32>, vector<2x128xf32> -> vector<2x256xf32>
    %c0_54 = arith.constant 0 : index
    %c0_55 = arith.constant 0 : index
    %215 = vector.load %arg4[%c0_54, %c0_55] : memref<256x1024xf32, #tpu.memory_space<vmem>>, vector<256x1024xf32>
    %cst_56 = arith.constant dense<0.000000e+00> : vector<2x1024xf32>
    %216 = tpu.matmul %214, %215, %cst_56 {dimension_numbers = #tpu.dot_dimension_numbers<[1], [0], [0], [1], [0, 0, 1, 1], [], []>} : vector<2x256xf32>, vector<256x1024xf32>, vector<2x1024xf32> -> vector<2x1024xf32>
    %217 = arith.index_cast %c4_i32 : i32 to index
    %c0_57 = arith.constant 0 : index
    %c0_58 = arith.constant 0 : index
    %218 = vector.load %arg1[%217, %c0_57, %c0_58] : memref<8x2x1xf32, #tpu.memory_space<vmem>>, vector<1x2x1xf32>
    %219 = vector.shape_cast %218 : vector<1x2x1xf32> to vector<2x1xf32>
    %220 = vector.broadcast %219 : vector<2x1xf32> to vector<2x512xf32>
    %221 = vector.broadcast %3 : vector<1x512xf32> to vector<2x512xf32>
    %222 = arith.mulf %220, %221 : vector<2x512xf32>
    %223 = vector.broadcast %4 : vector<1x512xf32> to vector<2x512xf32>
    %224 = arith.addf %222, %223 : vector<2x512xf32>
    %225 = vector.extract_strided_slice %216 {offsets = [0, 0], sizes = [2, 512], strides = [1, 1]} : vector<2x1024xf32> to vector<2x512xf32>
    %226 = arith.addf %224, %225 : vector<2x512xf32>
    %227 = vector.extract_strided_slice %226 {offsets = [0, 0], sizes = [2, 384], strides = [1, 1]} : vector<2x512xf32> to vector<2x384xf32>
    %228 = arith.negf %227 : vector<2x384xf32>
    %229 = math.exp %228 : vector<2x384xf32>
    %cst_59 = arith.constant 1.000000e+00 : f32
    %230 = vector.broadcast %cst_59 : f32 to vector<2x384xf32>
    %231 = arith.addf %230, %229 : vector<2x384xf32>
    %232 = arith.divf %230, %231 : vector<2x384xf32>
    %233 = vector.extract_strided_slice %226 {offsets = [0, 384], sizes = [2, 128], strides = [1, 1]} : vector<2x512xf32> to vector<2x128xf32>
    %234 = math.tanh %233 : vector<2x128xf32>
    %235 = vector.extract_strided_slice %232 {offsets = [0, 0], sizes = [2, 128], strides = [1, 1]} : vector<2x384xf32> to vector<2x128xf32>
    %236 = vector.extract_strided_slice %232 {offsets = [0, 128], sizes = [2, 128], strides = [1, 1]} : vector<2x384xf32> to vector<2x128xf32>
    %237 = vector.extract_strided_slice %232 {offsets = [0, 256], sizes = [2, 128], strides = [1, 1]} : vector<2x384xf32> to vector<2x128xf32>
    %238 = arith.mulf %236, %189 : vector<2x128xf32>
    %239 = arith.mulf %235, %234 : vector<2x128xf32>
    %240 = arith.addf %238, %239 : vector<2x128xf32>
    %241 = math.tanh %240 : vector<2x128xf32>
    %242 = arith.mulf %237, %241 : vector<2x128xf32>
    %c0_60 = arith.constant 0 : index
    %c0_61 = arith.constant 0 : index
    %243 = vector.load %arg5[%c0_60, %c0_61] : memref<128x512xf32, #tpu.memory_space<vmem>>, vector<128x512xf32>
    %cst_62 = arith.constant dense<0.000000e+00> : vector<2x512xf32>
    %244 = tpu.matmul %242, %243, %cst_62 {dimension_numbers = #tpu.dot_dimension_numbers<[1], [0], [0], [1], [0, 0, 1, 1], [], []>} : vector<2x128xf32>, vector<128x512xf32>, vector<2x512xf32> -> vector<2x512xf32>
    %245 = vector.broadcast %5 : vector<1x512xf32> to vector<2x512xf32>
    %246 = arith.addf %244, %245 : vector<2x512xf32>
    %247 = vector.extract_strided_slice %216 {offsets = [0, 512], sizes = [2, 512], strides = [1, 1]} : vector<2x1024xf32> to vector<2x512xf32>
    %248 = arith.addf %246, %247 : vector<2x512xf32>
    %249 = vector.extract_strided_slice %248 {offsets = [0, 0], sizes = [2, 384], strides = [1, 1]} : vector<2x512xf32> to vector<2x384xf32>
    %250 = arith.negf %249 : vector<2x384xf32>
    %251 = math.exp %250 : vector<2x384xf32>
    %cst_63 = arith.constant 1.000000e+00 : f32
    %252 = vector.broadcast %cst_63 : f32 to vector<2x384xf32>
    %253 = arith.addf %252, %251 : vector<2x384xf32>
    %254 = arith.divf %252, %253 : vector<2x384xf32>
    %255 = vector.extract_strided_slice %248 {offsets = [0, 384], sizes = [2, 128], strides = [1, 1]} : vector<2x512xf32> to vector<2x128xf32>
    %256 = math.tanh %255 : vector<2x128xf32>
    %257 = vector.extract_strided_slice %254 {offsets = [0, 0], sizes = [2, 128], strides = [1, 1]} : vector<2x384xf32> to vector<2x128xf32>
    %258 = vector.extract_strided_slice %254 {offsets = [0, 128], sizes = [2, 128], strides = [1, 1]} : vector<2x384xf32> to vector<2x128xf32>
    %259 = vector.extract_strided_slice %254 {offsets = [0, 256], sizes = [2, 128], strides = [1, 1]} : vector<2x384xf32> to vector<2x128xf32>
    %260 = arith.mulf %258, %211 : vector<2x128xf32>
    %261 = arith.mulf %257, %256 : vector<2x128xf32>
    %262 = arith.addf %260, %261 : vector<2x128xf32>
    %263 = math.tanh %262 : vector<2x128xf32>
    %264 = arith.mulf %259, %263 : vector<2x128xf32>
    %c5_i32 = arith.constant 5 : i32
    %265 = tpu.concatenate %242, %264 in 1 : vector<2x128xf32>, vector<2x128xf32> -> vector<2x256xf32>
    %c0_64 = arith.constant 0 : index
    %c0_65 = arith.constant 0 : index
    %266 = vector.load %arg4[%c0_64, %c0_65] : memref<256x1024xf32, #tpu.memory_space<vmem>>, vector<256x1024xf32>
    %cst_66 = arith.constant dense<0.000000e+00> : vector<2x1024xf32>
    %267 = tpu.matmul %265, %266, %cst_66 {dimension_numbers = #tpu.dot_dimension_numbers<[1], [0], [0], [1], [0, 0, 1, 1], [], []>} : vector<2x256xf32>, vector<256x1024xf32>, vector<2x1024xf32> -> vector<2x1024xf32>
    %268 = arith.index_cast %c5_i32 : i32 to index
    %c0_67 = arith.constant 0 : index
    %c0_68 = arith.constant 0 : index
    %269 = vector.load %arg1[%268, %c0_67, %c0_68] : memref<8x2x1xf32, #tpu.memory_space<vmem>>, vector<1x2x1xf32>
    %270 = vector.shape_cast %269 : vector<1x2x1xf32> to vector<2x1xf32>
    %271 = vector.broadcast %270 : vector<2x1xf32> to vector<2x512xf32>
    %272 = vector.broadcast %3 : vector<1x512xf32> to vector<2x512xf32>
    %273 = arith.mulf %271, %272 : vector<2x512xf32>
    %274 = vector.broadcast %4 : vector<1x512xf32> to vector<2x512xf32>
    %275 = arith.addf %273, %274 : vector<2x512xf32>
    %276 = vector.extract_strided_slice %267 {offsets = [0, 0], sizes = [2, 512], strides = [1, 1]} : vector<2x1024xf32> to vector<2x512xf32>
    %277 = arith.addf %275, %276 : vector<2x512xf32>
    %278 = vector.extract_strided_slice %277 {offsets = [0, 0], sizes = [2, 384], strides = [1, 1]} : vector<2x512xf32> to vector<2x384xf32>
    %279 = arith.negf %278 : vector<2x384xf32>
    %280 = math.exp %279 : vector<2x384xf32>
    %cst_69 = arith.constant 1.000000e+00 : f32
    %281 = vector.broadcast %cst_69 : f32 to vector<2x384xf32>
    %282 = arith.addf %281, %280 : vector<2x384xf32>
    %283 = arith.divf %281, %282 : vector<2x384xf32>
    %284 = vector.extract_strided_slice %277 {offsets = [0, 384], sizes = [2, 128], strides = [1, 1]} : vector<2x512xf32> to vector<2x128xf32>
    %285 = math.tanh %284 : vector<2x128xf32>
    %286 = vector.extract_strided_slice %283 {offsets = [0, 0], sizes = [2, 128], strides = [1, 1]} : vector<2x384xf32> to vector<2x128xf32>
    %287 = vector.extract_strided_slice %283 {offsets = [0, 128], sizes = [2, 128], strides = [1, 1]} : vector<2x384xf32> to vector<2x128xf32>
    %288 = vector.extract_strided_slice %283 {offsets = [0, 256], sizes = [2, 128], strides = [1, 1]} : vector<2x384xf32> to vector<2x128xf32>
    %289 = arith.mulf %287, %240 : vector<2x128xf32>
    %290 = arith.mulf %286, %285 : vector<2x128xf32>
    %291 = arith.addf %289, %290 : vector<2x128xf32>
    %292 = math.tanh %291 : vector<2x128xf32>
    %293 = arith.mulf %288, %292 : vector<2x128xf32>
    %c0_70 = arith.constant 0 : index
    %c0_71 = arith.constant 0 : index
    %294 = vector.load %arg5[%c0_70, %c0_71] : memref<128x512xf32, #tpu.memory_space<vmem>>, vector<128x512xf32>
    %cst_72 = arith.constant dense<0.000000e+00> : vector<2x512xf32>
    %295 = tpu.matmul %293, %294, %cst_72 {dimension_numbers = #tpu.dot_dimension_numbers<[1], [0], [0], [1], [0, 0, 1, 1], [], []>} : vector<2x128xf32>, vector<128x512xf32>, vector<2x512xf32> -> vector<2x512xf32>
    %296 = vector.broadcast %5 : vector<1x512xf32> to vector<2x512xf32>
    %297 = arith.addf %295, %296 : vector<2x512xf32>
    %298 = vector.extract_strided_slice %267 {offsets = [0, 512], sizes = [2, 512], strides = [1, 1]} : vector<2x1024xf32> to vector<2x512xf32>
    %299 = arith.addf %297, %298 : vector<2x512xf32>
    %300 = vector.extract_strided_slice %299 {offsets = [0, 0], sizes = [2, 384], strides = [1, 1]} : vector<2x512xf32> to vector<2x384xf32>
    %301 = arith.negf %300 : vector<2x384xf32>
    %302 = math.exp %301 : vector<2x384xf32>
    %cst_73 = arith.constant 1.000000e+00 : f32
    %303 = vector.broadcast %cst_73 : f32 to vector<2x384xf32>
    %304 = arith.addf %303, %302 : vector<2x384xf32>
    %305 = arith.divf %303, %304 : vector<2x384xf32>
    %306 = vector.extract_strided_slice %299 {offsets = [0, 384], sizes = [2, 128], strides = [1, 1]} : vector<2x512xf32> to vector<2x128xf32>
    %307 = math.tanh %306 : vector<2x128xf32>
    %308 = vector.extract_strided_slice %305 {offsets = [0, 0], sizes = [2, 128], strides = [1, 1]} : vector<2x384xf32> to vector<2x128xf32>
    %309 = vector.extract_strided_slice %305 {offsets = [0, 128], sizes = [2, 128], strides = [1, 1]} : vector<2x384xf32> to vector<2x128xf32>
    %310 = vector.extract_strided_slice %305 {offsets = [0, 256], sizes = [2, 128], strides = [1, 1]} : vector<2x384xf32> to vector<2x128xf32>
    %311 = arith.mulf %309, %262 : vector<2x128xf32>
    %312 = arith.mulf %308, %307 : vector<2x128xf32>
    %313 = arith.addf %311, %312 : vector<2x128xf32>
    %314 = math.tanh %313 : vector<2x128xf32>
    %315 = arith.mulf %310, %314 : vector<2x128xf32>
    %c6_i32 = arith.constant 6 : i32
    %316 = tpu.concatenate %293, %315 in 1 : vector<2x128xf32>, vector<2x128xf32> -> vector<2x256xf32>
    %c0_74 = arith.constant 0 : index
    %c0_75 = arith.constant 0 : index
    %317 = vector.load %arg4[%c0_74, %c0_75] : memref<256x1024xf32, #tpu.memory_space<vmem>>, vector<256x1024xf32>
    %cst_76 = arith.constant dense<0.000000e+00> : vector<2x1024xf32>
    %318 = tpu.matmul %316, %317, %cst_76 {dimension_numbers = #tpu.dot_dimension_numbers<[1], [0], [0], [1], [0, 0, 1, 1], [], []>} : vector<2x256xf32>, vector<256x1024xf32>, vector<2x1024xf32> -> vector<2x1024xf32>
    %319 = arith.index_cast %c6_i32 : i32 to index
    %c0_77 = arith.constant 0 : index
    %c0_78 = arith.constant 0 : index
    %320 = vector.load %arg1[%319, %c0_77, %c0_78] : memref<8x2x1xf32, #tpu.memory_space<vmem>>, vector<1x2x1xf32>
    %321 = vector.shape_cast %320 : vector<1x2x1xf32> to vector<2x1xf32>
    %322 = vector.broadcast %321 : vector<2x1xf32> to vector<2x512xf32>
    %323 = vector.broadcast %3 : vector<1x512xf32> to vector<2x512xf32>
    %324 = arith.mulf %322, %323 : vector<2x512xf32>
    %325 = vector.broadcast %4 : vector<1x512xf32> to vector<2x512xf32>
    %326 = arith.addf %324, %325 : vector<2x512xf32>
    %327 = vector.extract_strided_slice %318 {offsets = [0, 0], sizes = [2, 512], strides = [1, 1]} : vector<2x1024xf32> to vector<2x512xf32>
    %328 = arith.addf %326, %327 : vector<2x512xf32>
    %329 = vector.extract_strided_slice %328 {offsets = [0, 0], sizes = [2, 384], strides = [1, 1]} : vector<2x512xf32> to vector<2x384xf32>
    %330 = arith.negf %329 : vector<2x384xf32>
    %331 = math.exp %330 : vector<2x384xf32>
    %cst_79 = arith.constant 1.000000e+00 : f32
    %332 = vector.broadcast %cst_79 : f32 to vector<2x384xf32>
    %333 = arith.addf %332, %331 : vector<2x384xf32>
    %334 = arith.divf %332, %333 : vector<2x384xf32>
    %335 = vector.extract_strided_slice %328 {offsets = [0, 384], sizes = [2, 128], strides = [1, 1]} : vector<2x512xf32> to vector<2x128xf32>
    %336 = math.tanh %335 : vector<2x128xf32>
    %337 = vector.extract_strided_slice %334 {offsets = [0, 0], sizes = [2, 128], strides = [1, 1]} : vector<2x384xf32> to vector<2x128xf32>
    %338 = vector.extract_strided_slice %334 {offsets = [0, 128], sizes = [2, 128], strides = [1, 1]} : vector<2x384xf32> to vector<2x128xf32>
    %339 = vector.extract_strided_slice %334 {offsets = [0, 256], sizes = [2, 128], strides = [1, 1]} : vector<2x384xf32> to vector<2x128xf32>
    %340 = arith.mulf %338, %291 : vector<2x128xf32>
    %341 = arith.mulf %337, %336 : vector<2x128xf32>
    %342 = arith.addf %340, %341 : vector<2x128xf32>
    %343 = math.tanh %342 : vector<2x128xf32>
    %344 = arith.mulf %339, %343 : vector<2x128xf32>
    %c0_80 = arith.constant 0 : index
    %c0_81 = arith.constant 0 : index
    %345 = vector.load %arg5[%c0_80, %c0_81] : memref<128x512xf32, #tpu.memory_space<vmem>>, vector<128x512xf32>
    %cst_82 = arith.constant dense<0.000000e+00> : vector<2x512xf32>
    %346 = tpu.matmul %344, %345, %cst_82 {dimension_numbers = #tpu.dot_dimension_numbers<[1], [0], [0], [1], [0, 0, 1, 1], [], []>} : vector<2x128xf32>, vector<128x512xf32>, vector<2x512xf32> -> vector<2x512xf32>
    %347 = vector.broadcast %5 : vector<1x512xf32> to vector<2x512xf32>
    %348 = arith.addf %346, %347 : vector<2x512xf32>
    %349 = vector.extract_strided_slice %318 {offsets = [0, 512], sizes = [2, 512], strides = [1, 1]} : vector<2x1024xf32> to vector<2x512xf32>
    %350 = arith.addf %348, %349 : vector<2x512xf32>
    %351 = vector.extract_strided_slice %350 {offsets = [0, 0], sizes = [2, 384], strides = [1, 1]} : vector<2x512xf32> to vector<2x384xf32>
    %352 = arith.negf %351 : vector<2x384xf32>
    %353 = math.exp %352 : vector<2x384xf32>
    %cst_83 = arith.constant 1.000000e+00 : f32
    %354 = vector.broadcast %cst_83 : f32 to vector<2x384xf32>
    %355 = arith.addf %354, %353 : vector<2x384xf32>
    %356 = arith.divf %354, %355 : vector<2x384xf32>
    %357 = vector.extract_strided_slice %350 {offsets = [0, 384], sizes = [2, 128], strides = [1, 1]} : vector<2x512xf32> to vector<2x128xf32>
    %358 = math.tanh %357 : vector<2x128xf32>
    %359 = vector.extract_strided_slice %356 {offsets = [0, 0], sizes = [2, 128], strides = [1, 1]} : vector<2x384xf32> to vector<2x128xf32>
    %360 = vector.extract_strided_slice %356 {offsets = [0, 128], sizes = [2, 128], strides = [1, 1]} : vector<2x384xf32> to vector<2x128xf32>
    %361 = vector.extract_strided_slice %356 {offsets = [0, 256], sizes = [2, 128], strides = [1, 1]} : vector<2x384xf32> to vector<2x128xf32>
    %362 = arith.mulf %360, %313 : vector<2x128xf32>
    %363 = arith.mulf %359, %358 : vector<2x128xf32>
    %364 = arith.addf %362, %363 : vector<2x128xf32>
    %365 = math.tanh %364 : vector<2x128xf32>
    %366 = arith.mulf %361, %365 : vector<2x128xf32>
    %c7_i32 = arith.constant 7 : i32
    %367 = tpu.concatenate %344, %366 in 1 : vector<2x128xf32>, vector<2x128xf32> -> vector<2x256xf32>
    %c0_84 = arith.constant 0 : index
    %c0_85 = arith.constant 0 : index
    %368 = vector.load %arg4[%c0_84, %c0_85] : memref<256x1024xf32, #tpu.memory_space<vmem>>, vector<256x1024xf32>
    %cst_86 = arith.constant dense<0.000000e+00> : vector<2x1024xf32>
    %369 = tpu.matmul %367, %368, %cst_86 {dimension_numbers = #tpu.dot_dimension_numbers<[1], [0], [0], [1], [0, 0, 1, 1], [], []>} : vector<2x256xf32>, vector<256x1024xf32>, vector<2x1024xf32> -> vector<2x1024xf32>
    %370 = arith.index_cast %c7_i32 : i32 to index
    %c0_87 = arith.constant 0 : index
    %c0_88 = arith.constant 0 : index
    %371 = vector.load %arg1[%370, %c0_87, %c0_88] : memref<8x2x1xf32, #tpu.memory_space<vmem>>, vector<1x2x1xf32>
    %372 = vector.shape_cast %371 : vector<1x2x1xf32> to vector<2x1xf32>
    %373 = vector.broadcast %372 : vector<2x1xf32> to vector<2x512xf32>
    %374 = vector.broadcast %3 : vector<1x512xf32> to vector<2x512xf32>
    %375 = arith.mulf %373, %374 : vector<2x512xf32>
    %376 = vector.broadcast %4 : vector<1x512xf32> to vector<2x512xf32>
    %377 = arith.addf %375, %376 : vector<2x512xf32>
    %378 = vector.extract_strided_slice %369 {offsets = [0, 0], sizes = [2, 512], strides = [1, 1]} : vector<2x1024xf32> to vector<2x512xf32>
    %379 = arith.addf %377, %378 : vector<2x512xf32>
    %380 = vector.extract_strided_slice %379 {offsets = [0, 0], sizes = [2, 384], strides = [1, 1]} : vector<2x512xf32> to vector<2x384xf32>
    %381 = arith.negf %380 : vector<2x384xf32>
    %382 = math.exp %381 : vector<2x384xf32>
    %cst_89 = arith.constant 1.000000e+00 : f32
    %383 = vector.broadcast %cst_89 : f32 to vector<2x384xf32>
    %384 = arith.addf %383, %382 : vector<2x384xf32>
    %385 = arith.divf %383, %384 : vector<2x384xf32>
    %386 = vector.extract_strided_slice %379 {offsets = [0, 384], sizes = [2, 128], strides = [1, 1]} : vector<2x512xf32> to vector<2x128xf32>
    %387 = math.tanh %386 : vector<2x128xf32>
    %388 = vector.extract_strided_slice %385 {offsets = [0, 0], sizes = [2, 128], strides = [1, 1]} : vector<2x384xf32> to vector<2x128xf32>
    %389 = vector.extract_strided_slice %385 {offsets = [0, 128], sizes = [2, 128], strides = [1, 1]} : vector<2x384xf32> to vector<2x128xf32>
    %390 = vector.extract_strided_slice %385 {offsets = [0, 256], sizes = [2, 128], strides = [1, 1]} : vector<2x384xf32> to vector<2x128xf32>
    %391 = arith.mulf %389, %342 : vector<2x128xf32>
    %392 = arith.mulf %388, %387 : vector<2x128xf32>
    %393 = arith.addf %391, %392 : vector<2x128xf32>
    %394 = math.tanh %393 : vector<2x128xf32>
    %395 = arith.mulf %390, %394 : vector<2x128xf32>
    %c0_90 = arith.constant 0 : index
    %c0_91 = arith.constant 0 : index
    %396 = vector.load %arg5[%c0_90, %c0_91] : memref<128x512xf32, #tpu.memory_space<vmem>>, vector<128x512xf32>
    %cst_92 = arith.constant dense<0.000000e+00> : vector<2x512xf32>
    %397 = tpu.matmul %395, %396, %cst_92 {dimension_numbers = #tpu.dot_dimension_numbers<[1], [0], [0], [1], [0, 0, 1, 1], [], []>} : vector<2x128xf32>, vector<128x512xf32>, vector<2x512xf32> -> vector<2x512xf32>
    %398 = vector.broadcast %5 : vector<1x512xf32> to vector<2x512xf32>
    %399 = arith.addf %397, %398 : vector<2x512xf32>
    %400 = vector.extract_strided_slice %369 {offsets = [0, 512], sizes = [2, 512], strides = [1, 1]} : vector<2x1024xf32> to vector<2x512xf32>
    %401 = arith.addf %399, %400 : vector<2x512xf32>
    %402 = vector.extract_strided_slice %401 {offsets = [0, 0], sizes = [2, 384], strides = [1, 1]} : vector<2x512xf32> to vector<2x384xf32>
    %403 = arith.negf %402 : vector<2x384xf32>
    %404 = math.exp %403 : vector<2x384xf32>
    %cst_93 = arith.constant 1.000000e+00 : f32
    %405 = vector.broadcast %cst_93 : f32 to vector<2x384xf32>
    %406 = arith.addf %405, %404 : vector<2x384xf32>
    %407 = arith.divf %405, %406 : vector<2x384xf32>
    %408 = vector.extract_strided_slice %401 {offsets = [0, 384], sizes = [2, 128], strides = [1, 1]} : vector<2x512xf32> to vector<2x128xf32>
    %409 = math.tanh %408 : vector<2x128xf32>
    %410 = vector.extract_strided_slice %407 {offsets = [0, 0], sizes = [2, 128], strides = [1, 1]} : vector<2x384xf32> to vector<2x128xf32>
    %411 = vector.extract_strided_slice %407 {offsets = [0, 128], sizes = [2, 128], strides = [1, 1]} : vector<2x384xf32> to vector<2x128xf32>
    %412 = vector.extract_strided_slice %407 {offsets = [0, 256], sizes = [2, 128], strides = [1, 1]} : vector<2x384xf32> to vector<2x128xf32>
    %413 = arith.mulf %411, %364 : vector<2x128xf32>
    %414 = arith.mulf %410, %409 : vector<2x128xf32>
    %415 = arith.addf %413, %414 : vector<2x128xf32>
    %416 = math.tanh %415 : vector<2x128xf32>
    %417 = arith.mulf %412, %416 : vector<2x128xf32>
    %c8_i32 = arith.constant 8 : i32
    %c0_94 = arith.constant 0 : index
    %c0_95 = arith.constant 0 : index
    %418 = vector.load %arg10[%c0_94, %c0_95] : memref<2x128xf32, #tpu.memory_space<vmem>>, vector<2x128xf32>
    tpu.vector_store %arg10[%c0_94, %c0_95], %395 {strides = array<i32>} : memref<2x128xf32, #tpu.memory_space<vmem>>, vector<2x128xf32>,
    %c0_96 = arith.constant 0 : index
    %c0_97 = arith.constant 0 : index
    %419 = vector.load %arg11[%c0_96, %c0_97] : memref<2x128xf32, #tpu.memory_space<vmem>>, vector<2x128xf32>
    tpu.vector_store %arg11[%c0_96, %c0_97], %393 {strides = array<i32>} : memref<2x128xf32, #tpu.memory_space<vmem>>, vector<2x128xf32>,
    %c0_98 = arith.constant 0 : index
    %c0_99 = arith.constant 0 : index
    %420 = vector.load %arg12[%c0_98, %c0_99] : memref<2x128xf32, #tpu.memory_space<vmem>>, vector<2x128xf32>
    tpu.vector_store %arg12[%c0_98, %c0_99], %417 {strides = array<i32>} : memref<2x128xf32, #tpu.memory_space<vmem>>, vector<2x128xf32>,
    %c0_100 = arith.constant 0 : index
    %c0_101 = arith.constant 0 : index
    %421 = vector.load %arg13[%c0_100, %c0_101] : memref<2x128xf32, #tpu.memory_space<vmem>>, vector<2x128xf32>
    tpu.vector_store %arg13[%c0_100, %c0_101], %415 {strides = array<i32>} : memref<2x128xf32, #tpu.memory_space<vmem>>, vector<2x128xf32>,
    %c0_102 = arith.constant 0 : index
    %c0_103 = arith.constant 0 : index
    %422 = vector.load %arg7[%c0_102, %c0_103] : memref<1x128xf32, #tpu.memory_space<vmem>>, vector<1x128xf32>
    %423 = vector.broadcast %422 : vector<1x128xf32> to vector<2x128xf32>
    %424 = arith.mulf %417, %423 : vector<2x128xf32>
    %cst_104 = arith.constant dense<0.000000e+00> : vector<2xf32>
    %425 = vector.multi_reduction <add>, %424, %cst_104 [1] : vector<2x128xf32> to vector<2xf32>
    %426 = vector.shape_cast %425 : vector<2xf32> to vector<2x1xf32>
    %c0_105 = arith.constant 0 : index
    %c0_106 = arith.constant 0 : index
    %427 = vector.load %arg8[%c0_105, %c0_106] : memref<1x128xf32, #tpu.memory_space<vmem>>, vector<1x128xf32>
    %428 = vector.broadcast %426 : vector<2x1xf32> to vector<2x128xf32>
    %429 = vector.broadcast %427 : vector<1x128xf32> to vector<2x128xf32>
    %430 = arith.addf %428, %429 : vector<2x128xf32>
    %c0_107 = arith.constant 0 : index
    %c0_108 = arith.constant 0 : index
    %431 = vector.load %arg9[%c0_107, %c0_108] : memref<2x128xf32, #tpu.memory_space<vmem>>, vector<2x128xf32>
    tpu.vector_store %arg9[%c0_107, %c0_108], %430 {strides = array<i32>} : memref<2x128xf32, #tpu.memory_space<vmem>>, vector<2x128xf32>,
    return
  }
  func.func @transform_0(%arg0: i32) -> (i32, i32, i32) {
    %c0_i32 = arith.constant 0 : i32
    %c0_i32_0 = arith.constant 0 : i32
    %c0_i32_1 = arith.constant 0 : i32
    return %arg0, %c0_i32, %c0_i32_0 : i32, i32, i32
  }
  func.func @transform_1(%arg0: i32) -> (i32, i32) {
    %c0_i32 = arith.constant 0 : i32
    %c0_i32_0 = arith.constant 0 : i32
    %c0_i32_1 = arith.constant 0 : i32
    return %c0_i32, %c0_i32_0 : i32, i32
  }
  func.func @transform_2(%arg0: i32) -> (i32, i32) {
    %c0_i32 = arith.constant 0 : i32
    %c0_i32_0 = arith.constant 0 : i32
    %c0_i32_1 = arith.constant 0 : i32
    return %c0_i32, %c0_i32_0 : i32, i32
  }
  func.func @transform_3(%arg0: i32) -> (i32, i32) {
    %c0_i32 = arith.constant 0 : i32
    %c0_i32_0 = arith.constant 0 : i32
    %c0_i32_1 = arith.constant 0 : i32
    return %c0_i32, %c0_i32_0 : i32, i32
  }
  func.func @transform_4(%arg0: i32) -> (i32, i32) {
    %c0_i32 = arith.constant 0 : i32
    %c0_i32_0 = arith.constant 0 : i32
    %c0_i32_1 = arith.constant 0 : i32
    return %c0_i32, %c0_i32_0 : i32, i32
  }
  func.func @transform_5(%arg0: i32) -> (i32, i32) {
    %c0_i32 = arith.constant 0 : i32
    %c0_i32_0 = arith.constant 0 : i32
    %c0_i32_1 = arith.constant 0 : i32
    return %c0_i32, %c0_i32_0 : i32, i32
  }
  func.func @transform_6(%arg0: i32) -> (i32, i32) {
    %c0_i32 = arith.constant 0 : i32
    %c0_i32_0 = arith.constant 0 : i32
    %c0_i32_1 = arith.constant 0 : i32
    return %c0_i32, %c0_i32_0 : i32, i32
  }
  func.func @transform_7(%arg0: i32) -> (i32, i32) {
    %c0_i32 = arith.constant 0 : i32
    %c0_i32_0 = arith.constant 0 : i32
    %c0_i32_1 = arith.constant 0 : i32
    return %c0_i32, %c0_i32_0 : i32, i32
  }
  func.func @transform_8(%arg0: i32) -> (i32, i32) {
    %c0_i32 = arith.constant 0 : i32
    %c0_i32_0 = arith.constant 0 : i32
    %c0_i32_1 = arith.constant 0 : i32
    return %c0_i32, %c0_i32_0 : i32, i32
  }
}

</mosaic_0001>

<llo_original>
// kernel: tpu_custom_call.1
$region0: #{tpu_custom_call.1}
  #allocation0 [shape = 'u32[]', space=smem, size = 0x4, offset = 0x4, fixed_abs, tag = 'smem constant byte address 0x4 - core index']
  #allocation1 [shape = 'u32[72,128]{1,0:T(1,128)}', space=vmem, size = 0x9000, scoped, tag = 'internal scratch']
  #allocation2 [shape = 'f32[2,128]{1,0:T(2,128)}', space=vmem, size = 0x400, scoped, tag = 'scratch operand']
  #allocation3 [shape = 'f32[2,128]{1,0:T(2,128)}', space=vmem, size = 0x400, scoped, tag = 'scratch operand']
  #allocation4 [shape = 'f32[2,128]{1,0:T(2,128)}', space=vmem, size = 0x400, scoped, tag = 'scratch operand']
  #allocation5 [shape = 'f32[2,128]{1,0:T(2,128)}', space=vmem, size = 0x400, scoped, tag = 'scratch operand']
  %s0 = inlined_call_operand.vmem [shape: f32[8,2,1], index: 0, kind: input, shape index: {}]
  %s1 = inlined_call_operand.vmem [shape: f32[1,512], index: 1, kind: input, shape index: {}]
  %s2 = inlined_call_operand.vmem [shape: f32[1,512], index: 2, kind: input, shape index: {}]
  %s3 = inlined_call_operand.hbm [shape: f32[256,1024], index: 3, kind: input, shape index: {}]
  %s4 = inlined_call_operand.hbm [shape: f32[128,512], index: 4, kind: input, shape index: {}]
  %s5 = inlined_call_operand.vmem [shape: f32[1,512], index: 5, kind: input, shape index: {}]
  %s6 = inlined_call_operand.vmem [shape: f32[1,128], index: 6, kind: input, shape index: {}]
  %s7 = inlined_call_operand.vmem [shape: f32[1,128], index: 7, kind: input, shape index: {}]
  %s8 = inlined_call_operand.hbm [shape: f32[2,128], index: 8, kind: output, shape index: {}]
  %s9 = sld [smem:[#allocation0]]
  $region54: #{tpu_custom_call.1} parent=0
    _
  %s11 = ssub.s32 1, %s9
  %s12 = scalar_select 0, %s11, %s9
  $region1: #{tpu_custom_call.1} parent=0
    #allocation6 [shape = 'u8[1048576]{0}', space=vmem, size = 0x100000, scoped, tag = 'input window, operand 3, single buffered']
    #allocation7 [shape = 's32[1]{0}', space=sflag, size = 0x4, scoped, tag = 'scoped memory for tpu_custom_call.1']
    #allocation8 [shape = 's32[1]{0}', space=sflag, size = 0x4, scoped, tag = 'scoped memory for tpu_custom_call.1']
    #allocation9 [shape = 'u8[262144]{0}', space=vmem, size = 0x40000, scoped, tag = 'input window, operand 4, single buffered']
    #allocation10 [shape = 's32[1]{0}', space=sflag, size = 0x4, scoped, tag = 'scoped memory for tpu_custom_call.1']
    #allocation11 [shape = 'u8[1024]{0}', space=vmem, size = 0x400, scoped, tag = 'output window, operand 0, single buffered']
    %13 = vsyncpa [#allocation7], 0
    %14 = vsyncpa [#allocation10], 0
    %15 = vsyncpa [#allocation8], 0
    // Predicated region
    $region2: #{tpu_custom_call.1} parent=1 // pred_check
      _
    $region3: #{tpu_custom_call.1} parent=1 // pred_check_branch
      %17 = sbr.rel (0) target = $region5
    $region4: #{tpu_custom_call.1} parent=1 // pred_region
      _
    $region5: #{tpu_custom_call.1} parent=1 // pred_fallthru
      _
    // Predicated region
    $region6: #{tpu_custom_call.1} parent=1 // pred_check
      _
    $region7: #{tpu_custom_call.1} parent=1 // pred_check_branch
      %19 = sbr.rel (0) target = $region9
    $region8: #{tpu_custom_call.1} parent=1 // pred_region
      _
    $region9: #{tpu_custom_call.1} parent=1 // pred_fallthru
      _
    // Predicated region
    $region10: #{tpu_custom_call.1} parent=1 // pred_check
      _
    $region11: #{tpu_custom_call.1} parent=1 // pred_check_branch
      %21 = sbr.rel (0) target = $region13
    $region12: #{tpu_custom_call.1} parent=1 // pred_region
      _
    $region13: #{tpu_custom_call.1} parent=1 // pred_fallthru
      _
    // Predicated region
    $region14: #{tpu_custom_call.1} parent=1 // pred_check
      _
    $region15: #{tpu_custom_call.1} parent=1 // pred_check_branch
      %23 = sbr.rel (0) target = $region17
    $region16: #{tpu_custom_call.1} parent=1 // pred_region
      %25 = vsyncadd [#allocation7], 0
      %s26 = sshll.u32 %s3, 4
      %s27 = int_to_ptr.hbm [resolvable:$true] %s26
      %s28 = sshll.u32 [#allocation6], 4
      %s29 = int_to_ptr.vmem [resolvable:$true] %s28
      %34 = dma.hbm_to_vmem [thread:$0]  %s27, 32768, %s29, [#allocation7], 1024, 1024, 64
    $region17: #{tpu_custom_call.1} parent=1 // pred_fallthru
      _
    // Predicated region
    $region18: #{tpu_custom_call.1} parent=1 // pred_check
      _
    $region19: #{tpu_custom_call.1} parent=1 // pred_check_branch
      %36 = sbr.rel (0) target = $region21
    $region20: #{tpu_custom_call.1} parent=1 // pred_region
      %38 = vsyncadd [#allocation10], 0
      %s39 = sshll.u32 %s4, 4
      %s40 = int_to_ptr.hbm [resolvable:$true] %s39
      %s41 = sshll.u32 [#allocation9], 4
      %s42 = int_to_ptr.vmem [resolvable:$true] %s41
      %47 = dma.hbm_to_vmem [thread:$0]  %s40, 8192, %s42, [#allocation10], 512, 512, 32
    $region21: #{tpu_custom_call.1} parent=1 // pred_fallthru
      _
    // Predicated region
    $region22: #{tpu_custom_call.1} parent=1 // pred_check
      _
    $region23: #{tpu_custom_call.1} parent=1 // pred_check_branch
      %49 = sbr.rel (0) target = $region25
    $region24: #{tpu_custom_call.1} parent=1 // pred_region
      _
    $region25: #{tpu_custom_call.1} parent=1 // pred_fallthru
      _
    // Predicated region
    $region26: #{tpu_custom_call.1} parent=1 // pred_check
      _
    $region27: #{tpu_custom_call.1} parent=1 // pred_check_branch
      %51 = sbr.rel (0) target = $region29
    $region28: #{tpu_custom_call.1} parent=1 // pred_region
      _
    $region29: #{tpu_custom_call.1} parent=1 // pred_fallthru
      _
    // Predicated region
    $region30: #{tpu_custom_call.1} parent=1 // pred_check
      _
    $region31: #{tpu_custom_call.1} parent=1 // pred_check_branch
      %53 = sbr.rel (0) target = $region33
    $region32: #{tpu_custom_call.1} parent=1 // pred_region
      _
    $region33: #{tpu_custom_call.1} parent=1 // pred_fallthru
      _
    // Predicated region
    $region34: #{tpu_custom_call.1} parent=1 // pred_check
      _
    $region35: #{tpu_custom_call.1} parent=1 // pred_check_branch
      %55 = sbr.rel (0) target = $region37
    $region36: #{tpu_custom_call.1} parent=1 // pred_region
      %57 = dma.done [#allocation7], 32768
    $region37: #{tpu_custom_call.1} parent=1 // pred_fallthru
      _
    // Predicated region
    $region38: #{tpu_custom_call.1} parent=1 // pred_check
      _
    $region39: #{tpu_custom_call.1} parent=1 // pred_check_branch
      %59 = sbr.rel (0) target = $region41
    $region40: #{tpu_custom_call.1} parent=1 // pred_region
      %61 = dma.done [#allocation10], 8192
    $region41: #{tpu_custom_call.1} parent=1 // pred_fallthru
      _
    %p62 = scmp.eq.s32.totalorder 0, 0
    // Predicated region
    $region42: #{tpu_custom_call.1} parent=1 // pred_check
      %p63 = pneg %p62
    $region43: #{tpu_custom_call.1} parent=1 // pred_check_branch
      %65 = sbr.rel (%p63) target = $region45
    $region44: #{tpu_custom_call.1} parent=1 // pred_region
      %66 = vst [vmem:[#allocation2] sm:$0x3] 0.0
      %67 = vst [vmem:[#allocation3] sm:$0x3] 0.0
      %68 = vst [vmem:[#allocation4] sm:$0x3] 0.0
      %69 = vst [vmem:[#allocation5] sm:$0x3] 0.0
    $region45: #{tpu_custom_call.1} parent=1 // pred_fallthru
      _
    %v70 = vld [vmem:[%s1] sm:$0xf]
    %v71 = vld [vmem:[%s2] sm:$0xf]
    %v72 = vld [vmem:[%s5] sm:$0xf]
    %v73 = vld [vmem:[#allocation2] sm:$0x3]
    %v74 = vld [vmem:[#allocation3] sm:$0x3]
    %v75 = vld [vmem:[#allocation4] sm:$0x3]
    %v76 = vld [vmem:[#allocation5] sm:$0x3]
    %v77 = vld [vmem:[#allocation6] sm:$0xff]
    %v78 = vld [vmem:[#allocation6 + $0x8] sm:$0xff]
    %v79 = vld [vmem:[#allocation6 + $0x10] sm:$0xff]
    %v80 = vld [vmem:[#allocation6 + $0x18] sm:$0xff]
    %v81 = vld [vmem:[#allocation6 + $0x20] sm:$0xff]
    %v82 = vld [vmem:[#allocation6 + $0x28] sm:$0xff]
    %v83 = vld [vmem:[#allocation6 + $0x30] sm:$0xff]
    %v84 = vld [vmem:[#allocation6 + $0x38] sm:$0xff]
    %v85 = vld [vmem:[#allocation6 + $0x40] sm:$0xff]
    %v86 = vld [vmem:[#allocation6 + $0x48] sm:$0xff]
    %v87 = vld [vmem:[#allocation6 + $0x50] sm:$0xff]
    %v88 = vld [vmem:[#allocation6 + $0x58] sm:$0xff]
    %v89 = vld [vmem:[#allocation6 + $0x60] sm:$0xff]
    %v90 = vld [vmem:[#allocation6 + $0x68] sm:$0xff]
    %v91 = vld [vmem:[#allocation6 + $0x70] sm:$0xff]
    %v92 = vld [vmem:[#allocation6 + $0x78] sm:$0xff]
    %v93 = vld [vmem:[#allocation6 + $0x80] sm:$0xff]
    %v94 = vld [vmem:[#allocation6 + $0x88] sm:$0xff]
    %v95 = vld [vmem:[#allocation6 + $0x90] sm:$0xff]
    %v96 = vld [vmem:[#allocation6 + $0x98] sm:$0xff]
    %v97 = vld [vmem:[#allocation6 + $0xa0] sm:$0xff]
    %v98 = vld [vmem:[#allocation6 + $0xa8] sm:$0xff]
    %v99 = vld [vmem:[#allocation6 + $0xb0] sm:$0xff]
    %v100 = vld [vmem:[#allocation6 + $0xb8] sm:$0xff]
    %v101 = vld [vmem:[#allocation6 + $0xc0] sm:$0xff]
    %v102 = vld [vmem:[#allocation6 + $0xc8] sm:$0xff]
    %v103 = vld [vmem:[#allocation6 + $0xd0] sm:$0xff]
    %v104 = vld [vmem:[#allocation6 + $0xd8] sm:$0xff]
    %v105 = vld [vmem:[#allocation6 + $0xe0] sm:$0xff]
    %v106 = vld [vmem:[#allocation6 + $0xe8] sm:$0xff]
    %v107 = vld [vmem:[#allocation6 + $0xf0] sm:$0xff]
    %v108 = vld [vmem:[#allocation6 + $0xf8] sm:$0xff]
    %v109 = vld [vmem:[#allocation6 + $0x100] sm:$0xff]
    %v110 = vld [vmem:[#allocation6 + $0x108] sm:$0xff]
    %v111 = vld [vmem:[#allocation6 + $0x110] sm:$0xff]
    %v112 = vld [vmem:[#allocation6 + $0x118] sm:$0xff]
    %v113 = vld [vmem:[#allocation6 + $0x120] sm:$0xff]
    %v114 = vld [vmem:[#allocation6 + $0x128] sm:$0xff]
    %v115 = vld [vmem:[#allocation6 + $0x130] sm:$0xff]
    %v116 = vld [vmem:[#allocation6 + $0x138] sm:$0xff]
    %v117 = vld [vmem:[#allocation6 + $0x140] sm:$0xff]
    %v118 = vld [vmem:[#allocation6 + $0x148] sm:$0xff]
    %v119 = vld [vmem:[#allocation6 + $0x150] sm:$0xff]
    %v120 = vld [vmem:[#allocation6 + $0x158] sm:$0xff]
    %v121 = vld [vmem:[#allocation6 + $0x160] sm:$0xff]
    %v122 = vld [vmem:[#allocation6 + $0x168] sm:$0xff]
    %v123 = vld [vmem:[#allocation6 + $0x170] sm:$0xff]
    %v124 = vld [vmem:[#allocation6 + $0x178] sm:$0xff]
    %v125 = vld [vmem:[#allocation6 + $0x180] sm:$0xff]
    %v126 = vld [vmem:[#allocation6 + $0x188] sm:$0xff]
    %v127 = vld [vmem:[#allocation6 + $0x190] sm:$0xff]
    %v128 = vld [vmem:[#allocation6 + $0x198] sm:$0xff]
    %v129 = vld [vmem:[#allocation6 + $0x1a0] sm:$0xff]
    %v130 = vld [vmem:[#allocation6 + $0x1a8] sm:$0xff]
    %v131 = vld [vmem:[#allocation6 + $0x1b0] sm:$0xff]
    %v132 = vld [vmem:[#allocation6 + $0x1b8] sm:$0xff]
    %v133 = vld [vmem:[#allocation6 + $0x1c0] sm:$0xff]
    %v134 = vld [vmem:[#allocation6 + $0x1c8] sm:$0xff]
    %v135 = vld [vmem:[#allocation6 + $0x1d0] sm:$0xff]
    %v136 = vld [vmem:[#allocation6 + $0x1d8] sm:$0xff]
    %v137 = vld [vmem:[#allocation6 + $0x1e0] sm:$0xff]
    %v138 = vld [vmem:[#allocation6 + $0x1e8] sm:$0xff]
    %v139 = vld [vmem:[#allocation6 + $0x1f0] sm:$0xff]
    %v140 = vld [vmem:[#allocation6 + $0x1f8] sm:$0xff]
    %v141 = vld [vmem:[#allocation6 + $0x200] sm:$0xff]
    %v142 = vld [vmem:[#allocation6 + $0x208] sm:$0xff]
    %v143 = vld [vmem:[#allocation6 + $0x210] sm:$0xff]
    %v144 = vld [vmem:[#allocation6 + $0x218] sm:$0xff]
    %v145 = vld [vmem:[#allocation6 + $0x220] sm:$0xff]
    %v146 = vld [vmem:[#allocation6 + $0x228] sm:$0xff]
    %v147 = vld [vmem:[#allocation6 + $0x230] sm:$0xff]
    %v148 = vld [vmem:[#allocation6 + $0x238] sm:$0xff]
    %v149 = vld [vmem:[#allocation6 + $0x240] sm:$0xff]
    %v150 = vld [vmem:[#allocation6 + $0x248] sm:$0xff]
    %v151 = vld [vmem:[#allocation6 + $0x250] sm:$0xff]
    %v152 = vld [vmem:[#allocation6 + $0x258] sm:$0xff]
    %v153 = vld [vmem:[#allocation6 + $0x260] sm:$0xff]
    %v154 = vld [vmem:[#allocation6 + $0x268] sm:$0xff]
    %v155 = vld [vmem:[#allocation6 + $0x270] sm:$0xff]
    %v156 = vld [vmem:[#allocation6 + $0x278] sm:$0xff]
    %v157 = vld [vmem:[#allocation6 + $0x280] sm:$0xff]
    %v158 = vld [vmem:[#allocation6 + $0x288] sm:$0xff]
    %v159 = vld [vmem:[#allocation6 + $0x290] sm:$0xff]
    %v160 = vld [vmem:[#allocation6 + $0x298] sm:$0xff]
    %v161 = vld [vmem:[#allocation6 + $0x2a0] sm:$0xff]
    %v162 = vld [vmem:[#allocation6 + $0x2a8] sm:$0xff]
    %v163 = vld [vmem:[#allocation6 + $0x2b0] sm:$0xff]
    %v164 = vld [vmem:[#allocation6 + $0x2b8] sm:$0xff]
    %v165 = vld [vmem:[#allocation6 + $0x2c0] sm:$0xff]
    %v166 = vld [vmem:[#allocation6 + $0x2c8] sm:$0xff]
    %v167 = vld [vmem:[#allocation6 + $0x2d0] sm:$0xff]
    %v168 = vld [vmem:[#allocation6 + $0x2d8] sm:$0xff]
    %v169 = vld [vmem:[#allocation6 + $0x2e0] sm:$0xff]
    %v170 = vld [vmem:[#allocation6 + $0x2e8] sm:$0xff]
    %v171 = vld [vmem:[#allocation6 + $0x2f0] sm:$0xff]
    %v172 = vld [vmem:[#allocation6 + $0x2f8] sm:$0xff]
    %v173 = vld [vmem:[#allocation6 + $0x300] sm:$0xff]
    %v174 = vld [vmem:[#allocation6 + $0x308] sm:$0xff]
    %v175 = vld [vmem:[#allocation6 + $0x310] sm:$0xff]
    %v176 = vld [vmem:[#allocation6 + $0x318] sm:$0xff]
    %v177 = vld [vmem:[#allocation6 + $0x320] sm:$0xff]
    %v178 = vld [vmem:[#allocation6 + $0x328] sm:$0xff]
    %v179 = vld [vmem:[#allocation6 + $0x330] sm:$0xff]
    %v180 = vld [vmem:[#allocation6 + $0x338] sm:$0xff]
    %v181 = vld [vmem:[#allocation6 + $0x340] sm:$0xff]
    %v182 = vld [vmem:[#allocation6 + $0x348] sm:$0xff]
    %v183 = vld [vmem:[#allocation6 + $0x350] sm:$0xff]
    %v184 = vld [vmem:[#allocation6 + $0x358] sm:$0xff]
    %v185 = vld [vmem:[#allocation6 + $0x360] sm:$0xff]
    %v186 = vld [vmem:[#allocation6 + $0x368] sm:$0xff]
    %v187 = vld [vmem:[#allocation6 + $0x370] sm:$0xff]
    %v188 = vld [vmem:[#allocation6 + $0x378] sm:$0xff]
    %v189 = vld [vmem:[#allocation6 + $0x380] sm:$0xff]
    %v190 = vld [vmem:[#allocation6 + $0x388] sm:$0xff]
    %v191 = vld [vmem:[#allocation6 + $0x390] sm:$0xff]
    %v192 = vld [vmem:[#allocation6 + $0x398] sm:$0xff]
    %v193 = vld [vmem:[#allocation6 + $0x3a0] sm:$0xff]
    %v194 = vld [vmem:[#allocation6 + $0x3a8] sm:$0xff]
    %v195 = vld [vmem:[#allocation6 + $0x3b0] sm:$0xff]
    %v196 = vld [vmem:[#allocation6 + $0x3b8] sm:$0xff]
    %v197 = vld [vmem:[#allocation6 + $0x3c0] sm:$0xff]
    %v198 = vld [vmem:[#allocation6 + $0x3c8] sm:$0xff]
    %v199 = vld [vmem:[#allocation6 + $0x3d0] sm:$0xff]
    %v200 = vld [vmem:[#allocation6 + $0x3d8] sm:$0xff]
    %v201 = vld [vmem:[#allocation6 + $0x3e0] sm:$0xff]
    %v202 = vld [vmem:[#allocation6 + $0x3e8] sm:$0xff]
    %v203 = vld [vmem:[#allocation6 + $0x3f0] sm:$0xff]
    %v204 = vld [vmem:[#allocation6 + $0x3f8] sm:$0xff]
    %v205 = vld [vmem:[#allocation6 + $0x400] sm:$0xff]
    %v206 = vld [vmem:[#allocation6 + $0x408] sm:$0xff]
    %v207 = vld [vmem:[#allocation6 + $0x410] sm:$0xff]
    %v208 = vld [vmem:[#allocation6 + $0x418] sm:$0xff]
    %v209 = vld [vmem:[#allocation6 + $0x420] sm:$0xff]
    %v210 = vld [vmem:[#allocation6 + $0x428] sm:$0xff]
    %v211 = vld [vmem:[#allocation6 + $0x430] sm:$0xff]
    %v212 = vld [vmem:[#allocation6 + $0x438] sm:$0xff]
    %v213 = vld [vmem:[#allocation6 + $0x440] sm:$0xff]
    %v214 = vld [vmem:[#allocation6 + $0x448] sm:$0xff]
    %v215 = vld [vmem:[#allocation6 + $0x450] sm:$0xff]
    %v216 = vld [vmem:[#allocation6 + $0x458] sm:$0xff]
    %v217 = vld [vmem:[#allocation6 + $0x460] sm:$0xff]
    %v218 = vld [vmem:[#allocation6 + $0x468] sm:$0xff]
    %v219 = vld [vmem:[#allocation6 + $0x470] sm:$0xff]
    %v220 = vld [vmem:[#allocation6 + $0x478] sm:$0xff]
    %v221 = vld [vmem:[#allocation6 + $0x480] sm:$0xff]
    %v222 = vld [vmem:[#allocation6 + $0x488] sm:$0xff]
    %v223 = vld [vmem:[#allocation6 + $0x490] sm:$0xff]
    %v224 = vld [vmem:[#allocation6 + $0x498] sm:$0xff]
    %v225 = vld [vmem:[#allocation6 + $0x4a0] sm:$0xff]
    %v226 = vld [vmem:[#allocation6 + $0x4a8] sm:$0xff]
    %v227 = vld [vmem:[#allocation6 + $0x4b0] sm:$0xff]
    %v228 = vld [vmem:[#allocation6 + $0x4b8] sm:$0xff]
    %v229 = vld [vmem:[#allocation6 + $0x4c0] sm:$0xff]
    %v230 = vld [vmem:[#allocation6 + $0x4c8] sm:$0xff]
    %v231 = vld [vmem:[#allocation6 + $0x4d0] sm:$0xff]
    %v232 = vld [vmem:[#allocation6 + $0x4d8] sm:$0xff]
    %v233 = vld [vmem:[#allocation6 + $0x4e0] sm:$0xff]
    %v234 = vld [vmem:[#allocation6 + $0x4e8] sm:$0xff]
    %v235 = vld [vmem:[#allocation6 + $0x4f0] sm:$0xff]
    %v236 = vld [vmem:[#allocation6 + $0x4f8] sm:$0xff]
    %v237 = vld [vmem:[#allocation6 + $0x500] sm:$0xff]
    %v238 = vld [vmem:[#allocation6 + $0x508] sm:$0xff]
    %v239 = vld [vmem:[#allocation6 + $0x510] sm:$0xff]
    %v240 = vld [vmem:[#allocation6 + $0x518] sm:$0xff]
    %v241 = vld [vmem:[#allocation6 + $0x520] sm:$0xff]
    %v242 = vld [vmem:[#allocation6 + $0x528] sm:$0xff]
    %v243 = vld [vmem:[#allocation6 + $0x530] sm:$0xff]
    %v244 = vld [vmem:[#allocation6 + $0x538] sm:$0xff]
    %v245 = vld [vmem:[#allocation6 + $0x540] sm:$0xff]
    %v246 = vld [vmem:[#allocation6 + $0x548] sm:$0xff]
    %v247 = vld [vmem:[#allocation6 + $0x550] sm:$0xff]
    %v248 = vld [vmem:[#allocation6 + $0x558] sm:$0xff]
    %v249 = vld [vmem:[#allocation6 + $0x560] sm:$0xff]
    %v250 = vld [vmem:[#allocation6 + $0x568] sm:$0xff]
    %v251 = vld [vmem:[#allocation6 + $0x570] sm:$0xff]
    %v252 = vld [vmem:[#allocation6 + $0x578] sm:$0xff]
    %v253 = vld [vmem:[#allocation6 + $0x580] sm:$0xff]
    %v254 = vld [vmem:[#allocation6 + $0x588] sm:$0xff]
    %v255 = vld [vmem:[#allocation6 + $0x590] sm:$0xff]
    %v256 = vld [vmem:[#allocation6 + $0x598] sm:$0xff]
    %v257 = vld [vmem:[#allocation6 + $0x5a0] sm:$0xff]
    %v258 = vld [vmem:[#allocation6 + $0x5a8] sm:$0xff]
    %v259 = vld [vmem:[#allocation6 + $0x5b0] sm:$0xff]
    %v260 = vld [vmem:[#allocation6 + $0x5b8] sm:$0xff]
    %v261 = vld [vmem:[#allocation6 + $0x5c0] sm:$0xff]
    %v262 = vld [vmem:[#allocation6 + $0x5c8] sm:$0xff]
    %v263 = vld [vmem:[#allocation6 + $0x5d0] sm:$0xff]
    %v264 = vld [vmem:[#allocation6 + $0x5d8] sm:$0xff]
    %v265 = vld [vmem:[#allocation6 + $0x5e0] sm:$0xff]
    %v266 = vld [vmem:[#allocation6 + $0x5e8] sm:$0xff]
    %v267 = vld [vmem:[#allocation6 + $0x5f0] sm:$0xff]
    %v268 = vld [vmem:[#allocation6 + $0x5f8] sm:$0xff]
    %v269 = vld [vmem:[#allocation6 + $0x600] sm:$0xff]
    %v270 = vld [vmem:[#allocation6 + $0x608] sm:$0xff]
    %v271 = vld [vmem:[#allocation6 + $0x610] sm:$0xff]
    %v272 = vld [vmem:[#allocation6 + $0x618] sm:$0xff]
    %v273 = vld [vmem:[#allocation6 + $0x620] sm:$0xff]
    %v274 = vld [vmem:[#allocation6 + $0x628] sm:$0xff]
    %v275 = vld [vmem:[#allocation6 + $0x630] sm:$0xff]
    %v276 = vld [vmem:[#allocation6 + $0x638] sm:$0xff]
    %v277 = vld [vmem:[#allocation6 + $0x640] sm:$0xff]
    %v278 = vld [vmem:[#allocation6 + $0x648] sm:$0xff]
    %v279 = vld [vmem:[#allocation6 + $0x650] sm:$0xff]
    %v280 = vld [vmem:[#allocation6 + $0x658] sm:$0xff]
    %v281 = vld [vmem:[#allocation6 + $0x660] sm:$0xff]
    %v282 = vld [vmem:[#allocation6 + $0x668] sm:$0xff]
    %v283 = vld [vmem:[#allocation6 + $0x670] sm:$0xff]
    %v284 = vld [vmem:[#allocation6 + $0x678] sm:$0xff]
    %v285 = vld [vmem:[#allocation6 + $0x680] sm:$0xff]
    %v286 = vld [vmem:[#allocation6 + $0x688] sm:$0xff]
    %v287 = vld [vmem:[#allocation6 + $0x690] sm:$0xff]
    %v288 = vld [vmem:[#allocation6 + $0x698] sm:$0xff]
    %v289 = vld [vmem:[#allocation6 + $0x6a0] sm:$0xff]
    %v290 = vld [vmem:[#allocation6 + $0x6a8] sm:$0xff]
    %v291 = vld [vmem:[#allocation6 + $0x6b0] sm:$0xff]
    %v292 = vld [vmem:[#allocation6 + $0x6b8] sm:$0xff]
    %v293 = vld [vmem:[#allocation6 + $0x6c0] sm:$0xff]
    %v294 = vld [vmem:[#allocation6 + $0x6c8] sm:$0xff]
    %v295 = vld [vmem:[#allocation6 + $0x6d0] sm:$0xff]
    %v296 = vld [vmem:[#allocation6 + $0x6d8] sm:$0xff]
    %v297 = vld [vmem:[#allocation6 + $0x6e0] sm:$0xff]
    %v298 = vld [vmem:[#allocation6 + $0x6e8] sm:$0xff]
    %v299 = vld [vmem:[#allocation6 + $0x6f0] sm:$0xff]
    %v300 = vld [vmem:[#allocation6 + $0x6f8] sm:$0xff]
    %v301 = vld [vmem:[#allocation6 + $0x700] sm:$0xff]
    %v302 = vld [vmem:[#allocation6 + $0x708] sm:$0xff]
    %v303 = vld [vmem:[#allocation6 + $0x710] sm:$0xff]
    %v304 = vld [vmem:[#allocation6 + $0x718] sm:$0xff]
    %v305 = vld [vmem:[#allocation6 + $0x720] sm:$0xff]
    %v306 = vld [vmem:[#allocation6 + $0x728] sm:$0xff]
    %v307 = vld [vmem:[#allocation6 + $0x730] sm:$0xff]
    %v308 = vld [vmem:[#allocation6 + $0x738] sm:$0xff]
    %v309 = vld [vmem:[#allocation6 + $0x740] sm:$0xff]
    %v310 = vld [vmem:[#allocation6 + $0x748] sm:$0xff]
    %v311 = vld [vmem:[#allocation6 + $0x750] sm:$0xff]
    %v312 = vld [vmem:[#allocation6 + $0x758] sm:$0xff]
    %v313 = vld [vmem:[#allocation6 + $0x760] sm:$0xff]
    %v314 = vld [vmem:[#allocation6 + $0x768] sm:$0xff]
    %v315 = vld [vmem:[#allocation6 + $0x770] sm:$0xff]
    %v316 = vld [vmem:[#allocation6 + $0x778] sm:$0xff]
    %v317 = vld [vmem:[#allocation6 + $0x780] sm:$0xff]
    %v318 = vld [vmem:[#allocation6 + $0x788] sm:$0xff]
    %v319 = vld [vmem:[#allocation6 + $0x790] sm:$0xff]
    %v320 = vld [vmem:[#allocation6 + $0x798] sm:$0xff]
    %v321 = vld [vmem:[#allocation6 + $0x7a0] sm:$0xff]
    %v322 = vld [vmem:[#allocation6 + $0x7a8] sm:$0xff]
    %v323 = vld [vmem:[#allocation6 + $0x7b0] sm:$0xff]
    %v324 = vld [vmem:[#allocation6 + $0x7b8] sm:$0xff]
    %v325 = vld [vmem:[#allocation6 + $0x7c0] sm:$0xff]
    %v326 = vld [vmem:[#allocation6 + $0x7c8] sm:$0xff]
    %v327 = vld [vmem:[#allocation6 + $0x7d0] sm:$0xff]
    %v328 = vld [vmem:[#allocation6 + $0x7d8] sm:$0xff]
    %v329 = vld [vmem:[#allocation6 + $0x7e0] sm:$0xff]
    %v330 = vld [vmem:[#allocation6 + $0x7e8] sm:$0xff]
    %v331 = vld [vmem:[#allocation6 + $0x7f0] sm:$0xff]
    %v332 = vld [vmem:[#allocation6 + $0x7f8] sm:$0xff]
    %333 = vmatpush.msra.mxu0 %v197
    %334 = vmatpush.msra.mxu0 %v189
    %335 = vmatpush.msra.mxu0 %v181
    %336 = vmatpush.msra.mxu0 %v173
    %337 = vmatpush.msra.mxu0 %v165
    %338 = vmatpush.msra.mxu0 %v157
    %339 = vmatpush.msra.mxu0 %v149
    %340 = vmatpush.msra.mxu0 %v141
    %341 = vmatpush.msra.mxu0 %v133
    %342 = vmatpush.msra.mxu0 %v125
    %343 = vmatpush.msra.mxu0 %v117
    %344 = vmatpush.msra.mxu0 %v109
    %345 = vmatpush.msra.mxu0 %v101
    %346 = vmatpush.msra.mxu0 %v93
    %347 = vmatpush.msra.mxu0 %v85
    %348 = vmatpush.msra.mxu0 %v77
    %349 = vmatmul.f32.gmra.mxu0 %v73
    %v350 = vpop.f32.mrf.mxu0
    %v351 = vadd.f32 0.0, %v350
    %352 = vdwg.mxu0
    %353 = vmatpush.msra.mxu0 %v325
    %354 = vmatpush.msra.mxu0 %v317
    %355 = vmatpush.msra.mxu0 %v309
    %356 = vmatpush.msra.mxu0 %v301
    %357 = vmatpush.msra.mxu0 %v293
    %358 = vmatpush.msra.mxu0 %v285
    %359 = vmatpush.msra.mxu0 %v277
    %360 = vmatpush.msra.mxu0 %v269
    %361 = vmatpush.msra.mxu0 %v261
    %362 = vmatpush.msra.mxu0 %v253
    %363 = vmatpush.msra.mxu0 %v245
    %364 = vmatpush.msra.mxu0 %v237
    %365 = vmatpush.msra.mxu0 %v229
    %366 = vmatpush.msra.mxu0 %v221
    %367 = vmatpush.msra.mxu0 %v213
    %368 = vmatpush.msra.mxu0 %v205
    %369 = vmatmul.f32.gmra.mxu0 %v75
    %v370 = vpop.f32.mrf.mxu0
    %v371 = vadd.f32 %v351, %v370
    %372 = vdwg.mxu0
    %373 = vmatpush.msra.mxu0 %v198
    %374 = vmatpush.msra.mxu0 %v190
    %375 = vmatpush.msra.mxu0 %v182
    %376 = vmatpush.msra.mxu0 %v174
    %377 = vmatpush.msra.mxu0 %v166
    %378 = vmatpush.msra.mxu0 %v158
    %379 = vmatpush.msra.mxu0 %v150
    %380 = vmatpush.msra.mxu0 %v142
    %381 = vmatpush.msra.mxu0 %v134
    %382 = vmatpush.msra.mxu0 %v126
    %383 = vmatpush.msra.mxu0 %v118
    %384 = vmatpush.msra.mxu0 %v110
    %385 = vmatpush.msra.mxu0 %v102
    %386 = vmatpush.msra.mxu0 %v94
    %387 = vmatpush.msra.mxu0 %v86
    %388 = vmatpush.msra.mxu0 %v78
    %389 = vmatmul.f32.gmra.mxu0 %v73
    %v390 = vpop.f32.mrf.mxu0
    %v391 = vadd.f32 0.0, %v390
    %392 = vdwg.mxu0
    %393 = vmatpush.msra.mxu0 %v326
    %394 = vmatpush.msra.mxu0 %v318
    %395 = vmatpush.msra.mxu0 %v310
    %396 = vmatpush.msra.mxu0 %v302
    %397 = vmatpush.msra.mxu0 %v294
    %398 = vmatpush.msra.mxu0 %v286
    %399 = vmatpush.msra.mxu0 %v278
    %400 = vmatpush.msra.mxu0 %v270
    %401 = vmatpush.msra.mxu0 %v262
    %402 = vmatpush.msra.mxu0 %v254
    %403 = vmatpush.msra.mxu0 %v246
    %404 = vmatpush.msra.mxu0 %v238
    %405 = vmatpush.msra.mxu0 %v230
    %406 = vmatpush.msra.mxu0 %v222
    %407 = vmatpush.msra.mxu0 %v214
    %408 = vmatpush.msra.mxu0 %v206
    %409 = vmatmul.f32.gmra.mxu0 %v75
    %v410 = vpop.f32.mrf.mxu0
    %v411 = vadd.f32 %v391, %v410
    %412 = vdwg.mxu0
    %413 = vmatpush.msra.mxu0 %v199
    %414 = vmatpush.msra.mxu0 %v191
    %415 = vmatpush.msra.mxu0 %v183
    %416 = vmatpush.msra.mxu0 %v175
    %417 = vmatpush.msra.mxu0 %v167
    %418 = vmatpush.msra.mxu0 %v159
    %419 = vmatpush.msra.mxu0 %v151
    %420 = vmatpush.msra.mxu0 %v143
    %421 = vmatpush.msra.mxu0 %v135
    %422 = vmatpush.msra.mxu0 %v127
    %423 = vmatpush.msra.mxu0 %v119
    %424 = vmatpush.msra.mxu0 %v111
    %425 = vmatpush.msra.mxu0 %v103
    %426 = vmatpush.msra.mxu0 %v95
    %427 = vmatpush.msra.mxu0 %v87
    %428 = vmatpush.msra.mxu0 %v79
    %429 = vmatmul.f32.gmra.mxu0 %v73
    %v430 = vpop.f32.mrf.mxu0
    %v431 = vadd.f32 0.0, %v430
    %432 = vdwg.mxu0
    %433 = vmatpush.msra.mxu0 %v327
    %434 = vmatpush.msra.mxu0 %v319
    %435 = vmatpush.msra.mxu0 %v311
    %436 = vmatpush.msra.mxu0 %v303
    %437 = vmatpush.msra.mxu0 %v295
    %438 = vmatpush.msra.mxu0 %v287
    %439 = vmatpush.msra.mxu0 %v279
    %440 = vmatpush.msra.mxu0 %v271
    %441 = vmatpush.msra.mxu0 %v263
    %442 = vmatpush.msra.mxu0 %v255
    %443 = vmatpush.msra.mxu0 %v247
    %444 = vmatpush.msra.mxu0 %v239
    %445 = vmatpush.msra.mxu0 %v231
    %446 = vmatpush.msra.mxu0 %v223
    %447 = vmatpush.msra.mxu0 %v215
    %448 = vmatpush.msra.mxu0 %v207
    %449 = vmatmul.f32.gmra.mxu0 %v75
    %v450 = vpop.f32.mrf.mxu0
    %v451 = vadd.f32 %v431, %v450
    %452 = vdwg.mxu0
    %453 = vmatpush.msra.mxu0 %v200
    %454 = vmatpush.msra.mxu0 %v192
    %455 = vmatpush.msra.mxu0 %v184
    %456 = vmatpush.msra.mxu0 %v176
    %457 = vmatpush.msra.mxu0 %v168
    %458 = vmatpush.msra.mxu0 %v160
    %459 = vmatpush.msra.mxu0 %v152
    %460 = vmatpush.msra.mxu0 %v144
    %461 = vmatpush.msra.mxu0 %v136
    %462 = vmatpush.msra.mxu0 %v128
    %463 = vmatpush.msra.mxu0 %v120
    %464 = vmatpush.msra.mxu0 %v112
    %465 = vmatpush.msra.mxu0 %v104
    %466 = vmatpush.msra.mxu0 %v96
    %467 = vmatpush.msra.mxu0 %v88
    %468 = vmatpush.msra.mxu0 %v80
    %469 = vmatmul.f32.gmra.mxu0 %v73
    %v470 = vpop.f32.mrf.mxu0
    %v471 = vadd.f32 0.0, %v470
    %472 = vdwg.mxu0
    %473 = vmatpush.msra.mxu0 %v328
    %474 = vmatpush.msra.mxu0 %v320
    %475 = vmatpush.msra.mxu0 %v312
    %476 = vmatpush.msra.mxu0 %v304
    %477 = vmatpush.msra.mxu0 %v296
    %478 = vmatpush.msra.mxu0 %v288
    %479 = vmatpush.msra.mxu0 %v280
    %480 = vmatpush.msra.mxu0 %v272
    %481 = vmatpush.msra.mxu0 %v264
    %482 = vmatpush.msra.mxu0 %v256
    %483 = vmatpush.msra.mxu0 %v248
    %484 = vmatpush.msra.mxu0 %v240
    %485 = vmatpush.msra.mxu0 %v232
    %486 = vmatpush.msra.mxu0 %v224
    %487 = vmatpush.msra.mxu0 %v216
    %488 = vmatpush.msra.mxu0 %v208
    %489 = vmatmul.f32.gmra.mxu0 %v75
    %v490 = vpop.f32.mrf.mxu0
    %v491 = vadd.f32 %v471, %v490
    %492 = vdwg.mxu0
    %493 = vmatpush.msra.mxu0 %v201
    %494 = vmatpush.msra.mxu0 %v193
    %495 = vmatpush.msra.mxu0 %v185
    %496 = vmatpush.msra.mxu0 %v177
    %497 = vmatpush.msra.mxu0 %v169
    %498 = vmatpush.msra.mxu0 %v161
    %499 = vmatpush.msra.mxu0 %v153
    %500 = vmatpush.msra.mxu0 %v145
    %501 = vmatpush.msra.mxu0 %v137
    %502 = vmatpush.msra.mxu0 %v129
    %503 = vmatpush.msra.mxu0 %v121
    %504 = vmatpush.msra.mxu0 %v113
    %505 = vmatpush.msra.mxu0 %v105
    %506 = vmatpush.msra.mxu0 %v97
    %507 = vmatpush.msra.mxu0 %v89
    %508 = vmatpush.msra.mxu0 %v81
    %509 = vmatmul.f32.gmra.mxu0 %v73
    %v510 = vpop.f32.mrf.mxu0
    %v511 = vadd.f32 0.0, %v510
    %512 = vdwg.mxu0
    %513 = vmatpush.msra.mxu0 %v329
    %514 = vmatpush.msra.mxu0 %v321
    %515 = vmatpush.msra.mxu0 %v313
    %516 = vmatpush.msra.mxu0 %v305
    %517 = vmatpush.msra.mxu0 %v297
    %518 = vmatpush.msra.mxu0 %v289
    %519 = vmatpush.msra.mxu0 %v281
    %520 = vmatpush.msra.mxu0 %v273
    %521 = vmatpush.msra.mxu0 %v265
    %522 = vmatpush.msra.mxu0 %v257
    %523 = vmatpush.msra.mxu0 %v249
    %524 = vmatpush.msra.mxu0 %v241
    %525 = vmatpush.msra.mxu0 %v233
    %526 = vmatpush.msra.mxu0 %v225
    %527 = vmatpush.msra.mxu0 %v217
    %528 = vmatpush.msra.mxu0 %v209
    %529 = vmatmul.f32.gmra.mxu0 %v75
    %v530 = vpop.f32.mrf.mxu0
    %v531 = vadd.f32 %v511, %v530
    %532 = vdwg.mxu0
    %533 = vmatpush.msra.mxu0 %v202
    %534 = vmatpush.msra.mxu0 %v194
    %535 = vmatpush.msra.mxu0 %v186
    %536 = vmatpush.msra.mxu0 %v178
    %537 = vmatpush.msra.mxu0 %v170
    %538 = vmatpush.msra.mxu0 %v162
    %539 = vmatpush.msra.mxu0 %v154
    %540 = vmatpush.msra.mxu0 %v146
    %541 = vmatpush.msra.mxu0 %v138
    %542 = vmatpush.msra.mxu0 %v130
    %543 = vmatpush.msra.mxu0 %v122
    %544 = vmatpush.msra.mxu0 %v114
    %545 = vmatpush.msra.mxu0 %v106
    %546 = vmatpush.msra.mxu0 %v98
    %547 = vmatpush.msra.mxu0 %v90
    %548 = vmatpush.msra.mxu0 %v82
    %549 = vmatmul.f32.gmra.mxu0 %v73
    %v550 = vpop.f32.mrf.mxu0
    %v551 = vadd.f32 0.0, %v550
    %552 = vdwg.mxu0
    %553 = vmatpush.msra.mxu0 %v330
    %554 = vmatpush.msra.mxu0 %v322
    %555 = vmatpush.msra.mxu0 %v314
    %556 = vmatpush.msra.mxu0 %v306
    %557 = vmatpush.msra.mxu0 %v298
    %558 = vmatpush.msra.mxu0 %v290
    %559 = vmatpush.msra.mxu0 %v282
    %560 = vmatpush.msra.mxu0 %v274
    %561 = vmatpush.msra.mxu0 %v266
    %562 = vmatpush.msra.mxu0 %v258
    %563 = vmatpush.msra.mxu0 %v250
    %564 = vmatpush.msra.mxu0 %v242
    %565 = vmatpush.msra.mxu0 %v234
    %566 = vmatpush.msra.mxu0 %v226
    %567 = vmatpush.msra.mxu0 %v218
    %568 = vmatpush.msra.mxu0 %v210
    %569 = vmatmul.f32.gmra.mxu0 %v75
    %v570 = vpop.f32.mrf.mxu0
    %v571 = vadd.f32 %v551, %v570
    %572 = vdwg.mxu0
    %573 = vmatpush.msra.mxu0 %v203
    %574 = vmatpush.msra.mxu0 %v195
    %575 = vmatpush.msra.mxu0 %v187
    %576 = vmatpush.msra.mxu0 %v179
    %577 = vmatpush.msra.mxu0 %v171
    %578 = vmatpush.msra.mxu0 %v163
    %579 = vmatpush.msra.mxu0 %v155
    %580 = vmatpush.msra.mxu0 %v147
    %581 = vmatpush.msra.mxu0 %v139
    %582 = vmatpush.msra.mxu0 %v131
    %583 = vmatpush.msra.mxu0 %v123
    %584 = vmatpush.msra.mxu0 %v115
    %585 = vmatpush.msra.mxu0 %v107
    %586 = vmatpush.msra.mxu0 %v99
    %587 = vmatpush.msra.mxu0 %v91
    %588 = vmatpush.msra.mxu0 %v83
    %589 = vmatmul.f32.gmra.mxu0 %v73
    %v590 = vpop.f32.mrf.mxu0
    %v591 = vadd.f32 0.0, %v590
    %592 = vdwg.mxu0
    %593 = vmatpush.msra.mxu0 %v331
    %594 = vmatpush.msra.mxu0 %v323
    %595 = vmatpush.msra.mxu0 %v315
    %596 = vmatpush.msra.mxu0 %v307
    %597 = vmatpush.msra.mxu0 %v299
    %598 = vmatpush.msra.mxu0 %v291
    %599 = vmatpush.msra.mxu0 %v283
    %600 = vmatpush.msra.mxu0 %v275
    %601 = vmatpush.msra.mxu0 %v267
    %602 = vmatpush.msra.mxu0 %v259
    %603 = vmatpush.msra.mxu0 %v251
    %604 = vmatpush.msra.mxu0 %v243
    %605 = vmatpush.msra.mxu0 %v235
    %606 = vmatpush.msra.mxu0 %v227
    %607 = vmatpush.msra.mxu0 %v219
    %608 = vmatpush.msra.mxu0 %v211
    %609 = vmatmul.f32.gmra.mxu0 %v75
    %v610 = vpop.f32.mrf.mxu0
    %v611 = vadd.f32 %v591, %v610
    %612 = vdwg.mxu0
    %613 = vmatpush.msra.mxu0 %v204
    %614 = vmatpush.msra.mxu0 %v196
    %615 = vmatpush.msra.mxu0 %v188
    %616 = vmatpush.msra.mxu0 %v180
    %617 = vmatpush.msra.mxu0 %v172
    %618 = vmatpush.msra.mxu0 %v164
    %619 = vmatpush.msra.mxu0 %v156
    %620 = vmatpush.msra.mxu0 %v148
    %621 = vmatpush.msra.mxu0 %v140
    %622 = vmatpush.msra.mxu0 %v132
    %623 = vmatpush.msra.mxu0 %v124
    %624 = vmatpush.msra.mxu0 %v116
    %625 = vmatpush.msra.mxu0 %v108
    %626 = vmatpush.msra.mxu0 %v100
    %627 = vmatpush.msra.mxu0 %v92
    %628 = vmatpush.msra.mxu0 %v84
    %629 = vmatmul.f32.gmra.mxu0 %v73
    %v630 = vpop.f32.mrf.mxu0
    %v631 = vadd.f32 0.0, %v630
    %632 = vdwg.mxu0
    %633 = vmatpush.msra.mxu0 %v332
    %634 = vmatpush.msra.mxu0 %v324
    %635 = vmatpush.msra.mxu0 %v316
    %636 = vmatpush.msra.mxu0 %v308
    %637 = vmatpush.msra.mxu0 %v300
    %638 = vmatpush.msra.mxu0 %v292
    %639 = vmatpush.msra.mxu0 %v284
    %640 = vmatpush.msra.mxu0 %v276
    %641 = vmatpush.msra.mxu0 %v268
    %642 = vmatpush.msra.mxu0 %v260
    %643 = vmatpush.msra.mxu0 %v252
    %644 = vmatpush.msra.mxu0 %v244
    %645 = vmatpush.msra.mxu0 %v236
    %646 = vmatpush.msra.mxu0 %v228
    %647 = vmatpush.msra.mxu0 %v220
    %648 = vmatpush.msra.mxu0 %v212
    %649 = vmatmul.f32.gmra.mxu0 %v75
    %v650 = vpop.f32.mrf.mxu0
    %v651 = vadd.f32 %v631, %v650
    %652 = vdwg.mxu0
    %v653 = vld [vmem:[%s0] sm:$0x3]
    %655 = vset.pattern.permute.xlu0 0
    %656 = vperm.xlu0 %655, %v653
    %v657 = vpop.permute.xlu0 %656
    %v660 = vperm.slane %v70, 0
    %v661 = vperm.slane %v70, 1
    %v662 = vperm.slane %v70, 2
    %v663 = vperm.slane %v70, 3
    %v668 = vmul.f32 %v657, %v660
    %v669 = vmul.f32 %v657, %v661
    %v670 = vmul.f32 %v657, %v662
    %v671 = vmul.f32 %v657, %v663
    %v673 = vperm.slane %v71, 0
    %v674 = vperm.slane %v71, 1
    %v675 = vperm.slane %v71, 2
    %v676 = vperm.slane %v71, 3
    %v681 = vadd.f32 %v668, %v673
    %v682 = vadd.f32 %v669, %v674
    %v683 = vadd.f32 %v670, %v675
    %v684 = vadd.f32 %v671, %v676
    %v685 = vadd.f32 %v681, %v371
    %v686 = vadd.f32 %v682, %v411
    %v687 = vadd.f32 %v683, %v451
    %v688 = vadd.f32 %v684, %v491
    %v689 = vxor.u32 %v685, 2147483648
    %v690 = vxor.u32 %v686, 2147483648
    %v691 = vxor.u32 %v687, 2147483648
    %v692 = vmul.f32 %v689, 1.442695
    %v693 = vpow.pop %v692
    %v694 = vmul.f32 %v690, 1.442695
    %v695 = vpow.pop %v694
    %v696 = vmul.f32 %v691, 1.442695
    %v697 = vpow.pop %v696
    %v698 = vadd.f32 %v693, 1.0
    %v699 = vadd.f32 %v695, 1.0
    %v700 = vadd.f32 %v697, 1.0
    %v701 = vrcp.pop %v698
    %v702 = vmul.f32 %v698, %v701
    %v703 = vsub.f32 1.0, %v702
    %v704 = vmul.f32 %v701, %v703
    %v705 = vadd.f32 %v701, %v704
    %vm706 = vweird.f32 %v698
    %vm707 = vweird.f32 %v701
    %vm708 = vmor %vm706, %vm707
    %v709 = vsel %vm708, %v701, %v705
    %v710 = vand.u32 2147483647, %v698
    %vm711 = vcmp.eq.f32.partialorder %v710, 8.507059e+37
    %v712 = vand.u32 %v698, 2147483648
    %v713 = vor.u32 1.1754944e-38, %v712
    %v714 = vsel %vm711, %v713, %v709
    %v715 = vmul.f32 1.0, %v714
    %v716 = vrcp.pop %v699
    %v717 = vmul.f32 %v699, %v716
    %v718 = vsub.f32 1.0, %v717
    %v719 = vmul.f32 %v716, %v718
    %v720 = vadd.f32 %v716, %v719
    %vm721 = vweird.f32 %v699
    %vm722 = vweird.f32 %v716
    %vm723 = vmor %vm721, %vm722
    %v724 = vsel %vm723, %v716, %v720
    %v725 = vand.u32 2147483647, %v699
    %vm726 = vcmp.eq.f32.partialorder %v725, 8.507059e+37
    %v727 = vand.u32 %v699, 2147483648
    %v728 = vor.u32 1.1754944e-38, %v727
    %v729 = vsel %vm726, %v728, %v724
    %v730 = vmul.f32 1.0, %v729
    %v731 = vrcp.pop %v700
    %v732 = vmul.f32 %v700, %v731
    %v733 = vsub.f32 1.0, %v732
    %v734 = vmul.f32 %v731, %v733
    %v735 = vadd.f32 %v731, %v734
    %vm736 = vweird.f32 %v700
    %vm737 = vweird.f32 %v731
    %vm738 = vmor %vm736, %vm737
    %v739 = vsel %vm738, %v731, %v735
    %v740 = vand.u32 2147483647, %v700
    %vm741 = vcmp.eq.f32.partialorder %v740, 8.507059e+37
    %v742 = vand.u32 %v700, 2147483648
    %v743 = vor.u32 1.1754944e-38, %v742
    %v744 = vsel %vm741, %v743, %v739
    %v745 = vmul.f32 1.0, %v744
    %v746 = vtanh.pop %v688
    %v747 = vmul.f32 %v730, %v74
    %v748 = vmul.f32 %v715, %v746
    %v749 = vadd.f32 %v747, %v748
    %v750 = vtanh.pop %v749
    %v751 = vmul.f32 %v745, %v750
    %v752 = vld [vmem:[#allocation9] sm:$0xff]
    %v753 = vld [vmem:[#allocation9 + $0x8] sm:$0xff]
    %v754 = vld [vmem:[#allocation9 + $0x10] sm:$0xff]
    %v755 = vld [vmem:[#allocation9 + $0x18] sm:$0xff]
    %v756 = vld [vmem:[#allocation9 + $0x20] sm:$0xff]
    %v757 = vld [vmem:[#allocation9 + $0x28] sm:$0xff]
    %v758 = vld [vmem:[#allocation9 + $0x30] sm:$0xff]
    %v759 = vld [vmem:[#allocation9 + $0x38] sm:$0xff]
    %v760 = vld [vmem:[#allocation9 + $0x40] sm:$0xff]
    %v761 = vld [vmem:[#allocation9 + $0x48] sm:$0xff]
    %v762 = vld [vmem:[#allocation9 + $0x50] sm:$0xff]
    %v763 = vld [vmem:[#allocation9 + $0x58] sm:$0xff]
    %v764 = vld [vmem:[#allocation9 + $0x60] sm:$0xff]
    %v765 = vld [vmem:[#allocation9 + $0x68] sm:$0xff]
    %v766 = vld [vmem:[#allocation9 + $0x70] sm:$0xff]
    %v767 = vld [vmem:[#allocation9 + $0x78] sm:$0xff]
    %v768 = vld [vmem:[#allocation9 + $0x80] sm:$0xff]
    %v769 = vld [vmem:[#allocation9 + $0x88] sm:$0xff]
    %v770 = vld [vmem:[#allocation9 + $0x90] sm:$0xff]
    %v771 = vld [vmem:[#allocation9 + $0x98] sm:$0xff]
    %v772 = vld [vmem:[#allocation9 + $0xa0] sm:$0xff]
    %v773 = vld [vmem:[#allocation9 + $0xa8] sm:$0xff]
    %v774 = vld [vmem:[#allocation9 + $0xb0] sm:$0xff]
    %v775 = vld [vmem:[#allocation9 + $0xb8] sm:$0xff]
    %v776 = vld [vmem:[#allocation9 + $0xc0] sm:$0xff]
    %v777 = vld [vmem:[#allocation9 + $0xc8] sm:$0xff]
    %v778 = vld [vmem:[#allocation9 + $0xd0] sm:$0xff]
    %v779 = vld [vmem:[#allocation9 + $0xd8] sm:$0xff]
    %v780 = vld [vmem:[#allocation9 + $0xe0] sm:$0xff]
    %v781 = vld [vmem:[#allocation9 + $0xe8] sm:$0xff]
    %v782 = vld [vmem:[#allocation9 + $0xf0] sm:$0xff]
    %v783 = vld [vmem:[#allocation9 + $0xf8] sm:$0xff]
    %v784 = vld [vmem:[#allocation9 + $0x100] sm:$0xff]
    %v785 = vld [vmem:[#allocation9 + $0x108] sm:$0xff]
    %v786 = vld [vmem:[#allocation9 + $0x110] sm:$0xff]
    %v787 = vld [vmem:[#allocation9 + $0x118] sm:$0xff]
    %v788 = vld [vmem:[#allocation9 + $0x120] sm:$0xff]
    %v789 = vld [vmem:[#allocation9 + $0x128] sm:$0xff]
    %v790 = vld [vmem:[#allocation9 + $0x130] sm:$0xff]
    %v791 = vld [vmem:[#allocation9 + $0x138] sm:$0xff]
    %v792 = vld [vmem:[#allocation9 + $0x140] sm:$0xff]
    %v793 = vld [vmem:[#allocation9 + $0x148] sm:$0xff]
    %v794 = vld [vmem:[#allocation9 + $0x150] sm:$0xff]
    %v795 = vld [vmem:[#allocation9 + $0x158] sm:$0xff]
    %v796 = vld [vmem:[#allocation9 + $0x160] sm:$0xff]
    %v797 = vld [vmem:[#allocation9 + $0x168] sm:$0xff]
    %v798 = vld [vmem:[#allocation9 + $0x170] sm:$0xff]
    %v799 = vld [vmem:[#allocation9 + $0x178] sm:$0xff]
    %v800 = vld [vmem:[#allocation9 + $0x180] sm:$0xff]
    %v801 = vld [vmem:[#allocation9 + $0x188] sm:$0xff]
    %v802 = vld [vmem:[#allocation9 + $0x190] sm:$0xff]
    %v803 = vld [vmem:[#allocation9 + $0x198] sm:$0xff]
    %v804 = vld [vmem:[#allocation9 + $0x1a0] sm:$0xff]
    %v805 = vld [vmem:[#allocation9 + $0x1a8] sm:$0xff]
    %v806 = vld [vmem:[#allocation9 + $0x1b0] sm:$0xff]
    %v807 = vld [vmem:[#allocation9 + $0x1b8] sm:$0xff]
    %v808 = vld [vmem:[#allocation9 + $0x1c0] sm:$0xff]
    %v809 = vld [vmem:[#allocation9 + $0x1c8] sm:$0xff]
    %v810 = vld [vmem:[#allocation9 + $0x1d0] sm:$0xff]
    %v811 = vld [vmem:[#allocation9 + $0x1d8] sm:$0xff]
    %v812 = vld [vmem:[#allocation9 + $0x1e0] sm:$0xff]
    %v813 = vld [vmem:[#allocation9 + $0x1e8] sm:$0xff]
    %v814 = vld [vmem:[#allocation9 + $0x1f0] sm:$0xff]
    %v815 = vld [vmem:[#allocation9 + $0x1f8] sm:$0xff]
    %v817 = vperm.slane %v72, 0
    %v818 = vperm.slane %v72, 1
    %v819 = vperm.slane %v72, 2
    %v820 = vperm.slane %v72, 3
    %825 = vmatpush.msra.mxu0 %v812
    %826 = vmatpush.msra.mxu0 %v808
    %827 = vmatpush.msra.mxu0 %v804
    %828 = vmatpush.msra.mxu0 %v800
    %829 = vmatpush.msra.mxu0 %v796
    %830 = vmatpush.msra.mxu0 %v792
    %831 = vmatpush.msra.mxu0 %v788
    %832 = vmatpush.msra.mxu0 %v784
    %833 = vmatpush.msra.mxu0 %v780
    %834 = vmatpush.msra.mxu0 %v776
    %835 = vmatpush.msra.mxu0 %v772
    %836 = vmatpush.msra.mxu0 %v768
    %837 = vmatpush.msra.mxu0 %v764
    %838 = vmatpush.msra.mxu0 %v760
    %839 = vmatpush.msra.mxu0 %v756
    %840 = vmatpush.msra.mxu0 %v752
    %841 = vmatmul.f32.gmra.mxu0 %v751
    %v842 = vpop.f32.mrf.mxu0
    %v843 = vadd.f32 %v817, %v842
    %844 = vdwg.mxu0
    %845 = vmatpush.msra.mxu0 %v813
    %846 = vmatpush.msra.mxu0 %v809
    %847 = vmatpush.msra.mxu0 %v805
    %848 = vmatpush.msra.mxu0 %v801
    %849 = vmatpush.msra.mxu0 %v797
    %850 = vmatpush.msra.mxu0 %v793
    %851 = vmatpush.msra.mxu0 %v789
    %852 = vmatpush.msra.mxu0 %v785
    %853 = vmatpush.msra.mxu0 %v781
    %854 = vmatpush.msra.mxu0 %v777
    %855 = vmatpush.msra.mxu0 %v773
    %856 = vmatpush.msra.mxu0 %v769
    %857 = vmatpush.msra.mxu0 %v765
    %858 = vmatpush.msra.mxu0 %v761
    %859 = vmatpush.msra.mxu0 %v757
    %860 = vmatpush.msra.mxu0 %v753
    %861 = vmatmul.f32.gmra.mxu0 %v751
    %v862 = vpop.f32.mrf.mxu0
    %v863 = vadd.f32 %v818, %v862
    %864 = vdwg.mxu0
    %865 = vmatpush.msra.mxu0 %v814
    %866 = vmatpush.msra.mxu0 %v810
    %867 = vmatpush.msra.mxu0 %v806
    %868 = vmatpush.msra.mxu0 %v802
    %869 = vmatpush.msra.mxu0 %v798
    %870 = vmatpush.msra.mxu0 %v794
    %871 = vmatpush.msra.mxu0 %v790
    %872 = vmatpush.msra.mxu0 %v786
    %873 = vmatpush.msra.mxu0 %v782
    %874 = vmatpush.msra.mxu0 %v778
    %875 = vmatpush.msra.mxu0 %v774
    %876 = vmatpush.msra.mxu0 %v770
    %877 = vmatpush.msra.mxu0 %v766
    %878 = vmatpush.msra.mxu0 %v762
    %879 = vmatpush.msra.mxu0 %v758
    %880 = vmatpush.msra.mxu0 %v754
    %881 = vmatmul.f32.gmra.mxu0 %v751
    %v882 = vpop.f32.mrf.mxu0
    %v883 = vadd.f32 %v819, %v882
    %884 = vdwg.mxu0
    %885 = vmatpush.msra.mxu0 %v815
    %886 = vmatpush.msra.mxu0 %v811
    %887 = vmatpush.msra.mxu0 %v807
    %888 = vmatpush.msra.mxu0 %v803
    %889 = vmatpush.msra.mxu0 %v799
    %890 = vmatpush.msra.mxu0 %v795
    %891 = vmatpush.msra.mxu0 %v791
    %892 = vmatpush.msra.mxu0 %v787
    %893 = vmatpush.msra.mxu0 %v783
    %894 = vmatpush.msra.mxu0 %v779
    %895 = vmatpush.msra.mxu0 %v775
    %896 = vmatpush.msra.mxu0 %v771
    %897 = vmatpush.msra.mxu0 %v767
    %898 = vmatpush.msra.mxu0 %v763
    %899 = vmatpush.msra.mxu0 %v759
    %900 = vmatpush.msra.mxu0 %v755
    %901 = vmatmul.f32.gmra.mxu0 %v751
    %v902 = vpop.f32.mrf.mxu0
    %v903 = vadd.f32 %v820, %v902
    %904 = vdwg.mxu0
    %v905 = vadd.f32 %v843, %v531
    %v906 = vadd.f32 %v863, %v571
    %v907 = vadd.f32 %v883, %v611
    %v908 = vadd.f32 %v903, %v651
    %v909 = vxor.u32 %v905, 2147483648
    %v910 = vxor.u32 %v906, 2147483648
    %v911 = vxor.u32 %v907, 2147483648
    %v912 = vmul.f32 %v909, 1.442695
    %v913 = vpow.pop %v912
    %v914 = vmul.f32 %v910, 1.442695
    %v915 = vpow.pop %v914
    %v916 = vmul.f32 %v911, 1.442695
    %v917 = vpow.pop %v916
    %v918 = vadd.f32 %v913, 1.0
    %v919 = vadd.f32 %v915, 1.0
    %v920 = vadd.f32 %v917, 1.0
    %v921 = vrcp.pop %v918
    %v922 = vmul.f32 %v918, %v921
    %v923 = vsub.f32 1.0, %v922
    %v924 = vmul.f32 %v921, %v923
    %v925 = vadd.f32 %v921, %v924
    %vm926 = vweird.f32 %v918
    %vm927 = vweird.f32 %v921
    %vm928 = vmor %vm926, %vm927
    %v929 = vsel %vm928, %v921, %v925
    %v930 = vand.u32 2147483647, %v918
    %vm931 = vcmp.eq.f32.partialorder %v930, 8.507059e+37
    %v932 = vand.u32 %v918, 2147483648
    %v933 = vor.u32 1.1754944e-38, %v932
    %v934 = vsel %vm931, %v933, %v929
    %v935 = vmul.f32 1.0, %v934
    %v936 = vrcp.pop %v919
    %v937 = vmul.f32 %v919, %v936
    %v938 = vsub.f32 1.0, %v937
    %v939 = vmul.f32 %v936, %v938
    %v940 = vadd.f32 %v936, %v939
    %vm941 = vweird.f32 %v919
    %vm942 = vweird.f32 %v936
    %vm943 = vmor %vm941, %vm942
    %v944 = vsel %vm943, %v936, %v940
    %v945 = vand.u32 2147483647, %v919
    %vm946 = vcmp.eq.f32.partialorder %v945, 8.507059e+37
    %v947 = vand.u32 %v919, 2147483648
    %v948 = vor.u32 1.1754944e-38, %v947
    %v949 = vsel %vm946, %v948, %v944
    %v950 = vmul.f32 1.0, %v949
    %v951 = vrcp.pop %v920
    %v952 = vmul.f32 %v920, %v951
    %v953 = vsub.f32 1.0, %v952
    %v954 = vmul.f32 %v951, %v953
    %v955 = vadd.f32 %v951, %v954
    %vm956 = vweird.f32 %v920
    %vm957 = vweird.f32 %v951
    %vm958 = vmor %vm956, %vm957
    %v959 = vsel %vm958, %v951, %v955
    %v960 = vand.u32 2147483647, %v920
    %vm961 = vcmp.eq.f32.partialorder %v960, 8.507059e+37
    %v962 = vand.u32 %v920, 2147483648
    %v963 = vor.u32 1.1754944e-38, %v962
    %v964 = vsel %vm961, %v963, %v959
    %v965 = vmul.f32 1.0, %v964
    %v966 = vtanh.pop %v908
    %v967 = vmul.f32 %v950, %v76
    %v968 = vmul.f32 %v935, %v966
    %v969 = vadd.f32 %v967, %v968
    %v970 = vtanh.pop %v969
    %v971 = vmul.f32 %v965, %v970
    %972 = vmatpush.msra.mxu0 %v197
    %973 = vmatpush.msra.mxu0 %v189
    %974 = vmatpush.msra.mxu0 %v181
    %975 = vmatpush.msra.mxu0 %v173
    %976 = vmatpush.msra.mxu0 %v165
    %977 = vmatpush.msra.mxu0 %v157
    %978 = vmatpush.msra.mxu0 %v149
    %979 = vmatpush.msra.mxu0 %v141
    %980 = vmatpush.msra.mxu0 %v133
    %981 = vmatpush.msra.mxu0 %v125
    %982 = vmatpush.msra.mxu0 %v117
    %983 = vmatpush.msra.mxu0 %v109
    %984 = vmatpush.msra.mxu0 %v101
    %985 = vmatpush.msra.mxu0 %v93
    %986 = vmatpush.msra.mxu0 %v85
    %987 = vmatpush.msra.mxu0 %v77
    %988 = vmatmul.f32.gmra.mxu0 %v751
    %v989 = vpop.f32.mrf.mxu0
    %v990 = vadd.f32 0.0, %v989
    %991 = vdwg.mxu0
    %992 = vmatpush.msra.mxu0 %v325
    %993 = vmatpush.msra.mxu0 %v317
    %994 = vmatpush.msra.mxu0 %v309
    %995 = vmatpush.msra.mxu0 %v301
    %996 = vmatpush.msra.mxu0 %v293
    %997 = vmatpush.msra.mxu0 %v285
    %998 = vmatpush.msra.mxu0 %v277
    %999 = vmatpush.msra.mxu0 %v269
    %1000 = vmatpush.msra.mxu0 %v261
    %1001 = vmatpush.msra.mxu0 %v253
    %1002 = vmatpush.msra.mxu0 %v245
    %1003 = vmatpush.msra.mxu0 %v237
    %1004 = vmatpush.msra.mxu0 %v229
    %1005 = vmatpush.msra.mxu0 %v221
    %1006 = vmatpush.msra.mxu0 %v213
    %1007 = vmatpush.msra.mxu0 %v205
    %1008 = vmatmul.f32.gmra.mxu0 %v971
    %v1009 = vpop.f32.mrf.mxu0
    %v1010 = vadd.f32 %v990, %v1009
    %1011 = vdwg.mxu0
    %1012 = vmatpush.msra.mxu0 %v198
    %1013 = vmatpush.msra.mxu0 %v190
    %1014 = vmatpush.msra.mxu0 %v182
    %1015 = vmatpush.msra.mxu0 %v174
    %1016 = vmatpush.msra.mxu0 %v166
    %1017 = vmatpush.msra.mxu0 %v158
    %1018 = vmatpush.msra.mxu0 %v150
    %1019 = vmatpush.msra.mxu0 %v142
    %1020 = vmatpush.msra.mxu0 %v134
    %1021 = vmatpush.msra.mxu0 %v126
    %1022 = vmatpush.msra.mxu0 %v118
    %1023 = vmatpush.msra.mxu0 %v110
    %1024 = vmatpush.msra.mxu0 %v102
    %1025 = vmatpush.msra.mxu0 %v94
    %1026 = vmatpush.msra.mxu0 %v86
    %1027 = vmatpush.msra.mxu0 %v78
    %1028 = vmatmul.f32.gmra.mxu0 %v751
    %v1029 = vpop.f32.mrf.mxu0
    %v1030 = vadd.f32 0.0, %v1029
    %1031 = vdwg.mxu0
    %1032 = vmatpush.msra.mxu0 %v326
    %1033 = vmatpush.msra.mxu0 %v318
    %1034 = vmatpush.msra.mxu0 %v310
    %1035 = vmatpush.msra.mxu0 %v302
    %1036 = vmatpush.msra.mxu0 %v294
    %1037 = vmatpush.msra.mxu0 %v286
    %1038 = vmatpush.msra.mxu0 %v278
    %1039 = vmatpush.msra.mxu0 %v270
    %1040 = vmatpush.msra.mxu0 %v262
    %1041 = vmatpush.msra.mxu0 %v254
    %1042 = vmatpush.msra.mxu0 %v246
    %1043 = vmatpush.msra.mxu0 %v238
    %1044 = vmatpush.msra.mxu0 %v230
    %1045 = vmatpush.msra.mxu0 %v222
    %1046 = vmatpush.msra.mxu0 %v214
    %1047 = vmatpush.msra.mxu0 %v206
    %1048 = vmatmul.f32.gmra.mxu0 %v971
    %v1049 = vpop.f32.mrf.mxu0
    %v1050 = vadd.f32 %v1030, %v1049
    %1051 = vdwg.mxu0
    %1052 = vmatpush.msra.mxu0 %v199
    %1053 = vmatpush.msra.mxu0 %v191
    %1054 = vmatpush.msra.mxu0 %v183
    %1055 = vmatpush.msra.mxu0 %v175
    %1056 = vmatpush.msra.mxu0 %v167
    %1057 = vmatpush.msra.mxu0 %v159
    %1058 = vmatpush.msra.mxu0 %v151
    %1059 = vmatpush.msra.mxu0 %v143
    %1060 = vmatpush.msra.mxu0 %v135
    %1061 = vmatpush.msra.mxu0 %v127
    %1062 = vmatpush.msra.mxu0 %v119
    %1063 = vmatpush.msra.mxu0 %v111
    %1064 = vmatpush.msra.mxu0 %v103
    %1065 = vmatpush.msra.mxu0 %v95
    %1066 = vmatpush.msra.mxu0 %v87
    %1067 = vmatpush.msra.mxu0 %v79
    %1068 = vmatmul.f32.gmra.mxu0 %v751
    %v1069 = vpop.f32.mrf.mxu0
    %v1070 = vadd.f32 0.0, %v1069
    %1071 = vdwg.mxu0
    %1072 = vmatpush.msra.mxu0 %v327
    %1073 = vmatpush.msra.mxu0 %v319
    %1074 = vmatpush.msra.mxu0 %v311
    %1075 = vmatpush.msra.mxu0 %v303
    %1076 = vmatpush.msra.mxu0 %v295
    %1077 = vmatpush.msra.mxu0 %v287
    %1078 = vmatpush.msra.mxu0 %v279
    %1079 = vmatpush.msra.mxu0 %v271
    %1080 = vmatpush.msra.mxu0 %v263
    %1081 = vmatpush.msra.mxu0 %v255
    %1082 = vmatpush.msra.mxu0 %v247
    %1083 = vmatpush.msra.mxu0 %v239
    %1084 = vmatpush.msra.mxu0 %v231
    %1085 = vmatpush.msra.mxu0 %v223
    %1086 = vmatpush.msra.mxu0 %v215
    %1087 = vmatpush.msra.mxu0 %v207
    %1088 = vmatmul.f32.gmra.mxu0 %v971
    %v1089 = vpop.f32.mrf.mxu0
    %v1090 = vadd.f32 %v1070, %v1089
    %1091 = vdwg.mxu0
    %1092 = vmatpush.msra.mxu0 %v200
    %1093 = vmatpush.msra.mxu0 %v192
    %1094 = vmatpush.msra.mxu0 %v184
    %1095 = vmatpush.msra.mxu0 %v176
    %1096 = vmatpush.msra.mxu0 %v168
    %1097 = vmatpush.msra.mxu0 %v160
    %1098 = vmatpush.msra.mxu0 %v152
    %1099 = vmatpush.msra.mxu0 %v144
    %1100 = vmatpush.msra.mxu0 %v136
    %1101 = vmatpush.msra.mxu0 %v128
    %1102 = vmatpush.msra.mxu0 %v120
    %1103 = vmatpush.msra.mxu0 %v112
    %1104 = vmatpush.msra.mxu0 %v104
    %1105 = vmatpush.msra.mxu0 %v96
    %1106 = vmatpush.msra.mxu0 %v88
    %1107 = vmatpush.msra.mxu0 %v80
    %1108 = vmatmul.f32.gmra.mxu0 %v751
    %v1109 = vpop.f32.mrf.mxu0
    %v1110 = vadd.f32 0.0, %v1109
    %1111 = vdwg.mxu0
    %1112 = vmatpush.msra.mxu0 %v328
    %1113 = vmatpush.msra.mxu0 %v320
    %1114 = vmatpush.msra.mxu0 %v312
    %1115 = vmatpush.msra.mxu0 %v304
    %1116 = vmatpush.msra.mxu0 %v296
    %1117 = vmatpush.msra.mxu0 %v288
    %1118 = vmatpush.msra.mxu0 %v280
    %1119 = vmatpush.msra.mxu0 %v272
    %1120 = vmatpush.msra.mxu0 %v264
    %1121 = vmatpush.msra.mxu0 %v256
    %1122 = vmatpush.msra.mxu0 %v248
    %1123 = vmatpush.msra.mxu0 %v240
    %1124 = vmatpush.msra.mxu0 %v232
    %1125 = vmatpush.msra.mxu0 %v224
    %1126 = vmatpush.msra.mxu0 %v216
    %1127 = vmatpush.msra.mxu0 %v208
    %1128 = vmatmul.f32.gmra.mxu0 %v971
    %v1129 = vpop.f32.mrf.mxu0
    %v1130 = vadd.f32 %v1110, %v1129
    %1131 = vdwg.mxu0
    %1132 = vmatpush.msra.mxu0 %v201
    %1133 = vmatpush.msra.mxu0 %v193
    %1134 = vmatpush.msra.mxu0 %v185
    %1135 = vmatpush.msra.mxu0 %v177
    %1136 = vmatpush.msra.mxu0 %v169
    %1137 = vmatpush.msra.mxu0 %v161
    %1138 = vmatpush.msra.mxu0 %v153
    %1139 = vmatpush.msra.mxu0 %v145
    %1140 = vmatpush.msra.mxu0 %v137
    %1141 = vmatpush.msra.mxu0 %v129
    %1142 = vmatpush.msra.mxu0 %v121
    %1143 = vmatpush.msra.mxu0 %v113
    %1144 = vmatpush.msra.mxu0 %v105
    %1145 = vmatpush.msra.mxu0 %v97
    %1146 = vmatpush.msra.mxu0 %v89
    %1147 = vmatpush.msra.mxu0 %v81
    %1148 = vmatmul.f32.gmra.mxu0 %v751
    %v1149 = vpop.f32.mrf.mxu0
    %v1150 = vadd.f32 0.0, %v1149
    %1151 = vdwg.mxu0
    %1152 = vmatpush.msra.mxu0 %v329
    %1153 = vmatpush.msra.mxu0 %v321
    %1154 = vmatpush.msra.mxu0 %v313
    %1155 = vmatpush.msra.mxu0 %v305
    %1156 = vmatpush.msra.mxu0 %v297
    %1157 = vmatpush.msra.mxu0 %v289
    %1158 = vmatpush.msra.mxu0 %v281
    %1159 = vmatpush.msra.mxu0 %v273
    %1160 = vmatpush.msra.mxu0 %v265
    %1161 = vmatpush.msra.mxu0 %v257
    %1162 = vmatpush.msra.mxu0 %v249
    %1163 = vmatpush.msra.mxu0 %v241
    %1164 = vmatpush.msra.mxu0 %v233
    %1165 = vmatpush.msra.mxu0 %v225
    %1166 = vmatpush.msra.mxu0 %v217
    %1167 = vmatpush.msra.mxu0 %v209
    %1168 = vmatmul.f32.gmra.mxu0 %v971
    %v1169 = vpop.f32.mrf.mxu0
    %v1170 = vadd.f32 %v1150, %v1169
    %1171 = vdwg.mxu0
    %1172 = vmatpush.msra.mxu0 %v202
    %1173 = vmatpush.msra.mxu0 %v194
    %1174 = vmatpush.msra.mxu0 %v186
    %1175 = vmatpush.msra.mxu0 %v178
    %1176 = vmatpush.msra.mxu0 %v170
    %1177 = vmatpush.msra.mxu0 %v162
    %1178 = vmatpush.msra.mxu0 %v154
    %1179 = vmatpush.msra.mxu0 %v146
    %1180 = vmatpush.msra.mxu0 %v138
    %1181 = vmatpush.msra.mxu0 %v130
    %1182 = vmatpush.msra.mxu0 %v122
    %1183 = vmatpush.msra.mxu0 %v114
    %1184 = vmatpush.msra.mxu0 %v106
    %1185 = vmatpush.msra.mxu0 %v98
    %1186 = vmatpush.msra.mxu0 %v90
    %1187 = vmatpush.msra.mxu0 %v82
    %1188 = vmatmul.f32.gmra.mxu0 %v751
    %v1189 = vpop.f32.mrf.mxu0
    %v1190 = vadd.f32 0.0, %v1189
    %1191 = vdwg.mxu0
    %1192 = vmatpush.msra.mxu0 %v330
    %1193 = vmatpush.msra.mxu0 %v322
    %1194 = vmatpush.msra.mxu0 %v314
    %1195 = vmatpush.msra.mxu0 %v306
    %1196 = vmatpush.msra.mxu0 %v298
    %1197 = vmatpush.msra.mxu0 %v290
    %1198 = vmatpush.msra.mxu0 %v282
    %1199 = vmatpush.msra.mxu0 %v274
    %1200 = vmatpush.msra.mxu0 %v266
    %1201 = vmatpush.msra.mxu0 %v258
    %1202 = vmatpush.msra.mxu0 %v250
    %1203 = vmatpush.msra.mxu0 %v242
    %1204 = vmatpush.msra.mxu0 %v234
    %1205 = vmatpush.msra.mxu0 %v226
    %1206 = vmatpush.msra.mxu0 %v218
    %1207 = vmatpush.msra.mxu0 %v210
    %1208 = vmatmul.f32.gmra.mxu0 %v971
    %v1209 = vpop.f32.mrf.mxu0
    %v1210 = vadd.f32 %v1190, %v1209
    %1211 = vdwg.mxu0
    %1212 = vmatpush.msra.mxu0 %v203
    %1213 = vmatpush.msra.mxu0 %v195
    %1214 = vmatpush.msra.mxu0 %v187
    %1215 = vmatpush.msra.mxu0 %v179
    %1216 = vmatpush.msra.mxu0 %v171
    %1217 = vmatpush.msra.mxu0 %v163
    %1218 = vmatpush.msra.mxu0 %v155
    %1219 = vmatpush.msra.mxu0 %v147
    %1220 = vmatpush.msra.mxu0 %v139
    %1221 = vmatpush.msra.mxu0 %v131
    %1222 = vmatpush.msra.mxu0 %v123
    %1223 = vmatpush.msra.mxu0 %v115
    %1224 = vmatpush.msra.mxu0 %v107
    %1225 = vmatpush.msra.mxu0 %v99
    %1226 = vmatpush.msra.mxu0 %v91
    %1227 = vmatpush.msra.mxu0 %v83
    %1228 = vmatmul.f32.gmra.mxu0 %v751
    %v1229 = vpop.f32.mrf.mxu0
    %v1230 = vadd.f32 0.0, %v1229
    %1231 = vdwg.mxu0
    %1232 = vmatpush.msra.mxu0 %v331
    %1233 = vmatpush.msra.mxu0 %v323
    %1234 = vmatpush.msra.mxu0 %v315
    %1235 = vmatpush.msra.mxu0 %v307
    %1236 = vmatpush.msra.mxu0 %v299
    %1237 = vmatpush.msra.mxu0 %v291
    %1238 = vmatpush.msra.mxu0 %v283
    %1239 = vmatpush.msra.mxu0 %v275
    %1240 = vmatpush.msra.mxu0 %v267
    %1241 = vmatpush.msra.mxu0 %v259
    %1242 = vmatpush.msra.mxu0 %v251
    %1243 = vmatpush.msra.mxu0 %v243
    %1244 = vmatpush.msra.mxu0 %v235
    %1245 = vmatpush.msra.mxu0 %v227
    %1246 = vmatpush.msra.mxu0 %v219
    %1247 = vmatpush.msra.mxu0 %v211
    %1248 = vmatmul.f32.gmra.mxu0 %v971
    %v1249 = vpop.f32.mrf.mxu0
    %v1250 = vadd.f32 %v1230, %v1249
    %1251 = vdwg.mxu0
    %1252 = vmatpush.msra.mxu0 %v204
    %1253 = vmatpush.msra.mxu0 %v196
    %1254 = vmatpush.msra.mxu0 %v188
    %1255 = vmatpush.msra.mxu0 %v180
    %1256 = vmatpush.msra.mxu0 %v172
    %1257 = vmatpush.msra.mxu0 %v164
    %1258 = vmatpush.msra.mxu0 %v156
    %1259 = vmatpush.msra.mxu0 %v148
    %1260 = vmatpush.msra.mxu0 %v140
    %1261 = vmatpush.msra.mxu0 %v132
    %1262 = vmatpush.msra.mxu0 %v124
    %1263 = vmatpush.msra.mxu0 %v116
    %1264 = vmatpush.msra.mxu0 %v108
    %1265 = vmatpush.msra.mxu0 %v100
    %1266 = vmatpush.msra.mxu0 %v92
    %1267 = vmatpush.msra.mxu0 %v84
    %1268 = vmatmul.f32.gmra.mxu0 %v751
    %v1269 = vpop.f32.mrf.mxu0
    %v1270 = vadd.f32 0.0, %v1269
    %1271 = vdwg.mxu0
    %1272 = vmatpush.msra.mxu0 %v332
    %1273 = vmatpush.msra.mxu0 %v324
    %1274 = vmatpush.msra.mxu0 %v316
    %1275 = vmatpush.msra.mxu0 %v308
    %1276 = vmatpush.msra.mxu0 %v300
    %1277 = vmatpush.msra.mxu0 %v292
    %1278 = vmatpush.msra.mxu0 %v284
    %1279 = vmatpush.msra.mxu0 %v276
    %1280 = vmatpush.msra.mxu0 %v268
    %1281 = vmatpush.msra.mxu0 %v260
    %1282 = vmatpush.msra.mxu0 %v252
    %1283 = vmatpush.msra.mxu0 %v244
    %1284 = vmatpush.msra.mxu0 %v236
    %1285 = vmatpush.msra.mxu0 %v228
    %1286 = vmatpush.msra.mxu0 %v220
    %1287 = vmatpush.msra.mxu0 %v212
    %1288 = vmatmul.f32.gmra.mxu0 %v971
    %v1289 = vpop.f32.mrf.mxu0
    %v1290 = vadd.f32 %v1270, %v1289
    %1291 = vdwg.mxu0
    %s1292 = scalar_lea.vmem %s0, 2
    %v1293 = vld [vmem:[%s1292] sm:$0x3]
    %1295 = vset.pattern.permute.xlu0 0
    %1296 = vperm.xlu0 %1295, %v1293
    %v1297 = vpop.permute.xlu0 %1296
    %v1299 = vmul.f32 %v1297, %v660
    %v1300 = vmul.f32 %v1297, %v661
    %v1301 = vmul.f32 %v1297, %v662
    %v1302 = vmul.f32 %v1297, %v663
    %v1303 = vadd.f32 %v1299, %v673
    %v1304 = vadd.f32 %v1300, %v674
    %v1305 = vadd.f32 %v1301, %v675
    %v1306 = vadd.f32 %v1302, %v676
    %v1307 = vadd.f32 %v1303, %v1010
    %v1308 = vadd.f32 %v1304, %v1050
    %v1309 = vadd.f32 %v1305, %v1090
    %v1310 = vadd.f32 %v1306, %v1130
    %v1311 = vxor.u32 %v1307, 2147483648
    %v1312 = vxor.u32 %v1308, 2147483648
    %v1313 = vxor.u32 %v1309, 2147483648
    %v1314 = vmul.f32 %v1311, 1.442695
    %v1315 = vpow.pop %v1314
    %v1316 = vmul.f32 %v1312, 1.442695
    %v1317 = vpow.pop %v1316
    %v1318 = vmul.f32 %v1313, 1.442695
    %v1319 = vpow.pop %v1318
    %v1320 = vadd.f32 %v1315, 1.0
    %v1321 = vadd.f32 %v1317, 1.0
    %v1322 = vadd.f32 %v1319, 1.0
    %v1323 = vrcp.pop %v1320
    %v1324 = vmul.f32 %v1320, %v1323
    %v1325 = vsub.f32 1.0, %v1324
    %v1326 = vmul.f32 %v1323, %v1325
    %v1327 = vadd.f32 %v1323, %v1326
    %vm1328 = vweird.f32 %v1320
    %vm1329 = vweird.f32 %v1323
    %vm1330 = vmor %vm1328, %vm1329
    %v1331 = vsel %vm1330, %v1323, %v1327
    %v1332 = vand.u32 2147483647, %v1320
    %vm1333 = vcmp.eq.f32.partialorder %v1332, 8.507059e+37
    %v1334 = vand.u32 %v1320, 2147483648
    %v1335 = vor.u32 1.1754944e-38, %v1334
    %v1336 = vsel %vm1333, %v1335, %v1331
    %v1337 = vmul.f32 1.0, %v1336
    %v1338 = vrcp.pop %v1321
    %v1339 = vmul.f32 %v1321, %v1338
    %v1340 = vsub.f32 1.0, %v1339
    %v1341 = vmul.f32 %v1338, %v1340
    %v1342 = vadd.f32 %v1338, %v1341
    %vm1343 = vweird.f32 %v1321
    %vm1344 = vweird.f32 %v1338
    %vm1345 = vmor %vm1343, %vm1344
    %v1346 = vsel %vm1345, %v1338, %v1342
    %v1347 = vand.u32 2147483647, %v1321
    %vm1348 = vcmp.eq.f32.partialorder %v1347, 8.507059e+37
    %v1349 = vand.u32 %v1321, 2147483648
    %v1350 = vor.u32 1.1754944e-38, %v1349
    %v1351 = vsel %vm1348, %v1350, %v1346
    %v1352 = vmul.f32 1.0, %v1351
    %v1353 = vrcp.pop %v1322
    %v1354 = vmul.f32 %v1322, %v1353
    %v1355 = vsub.f32 1.0, %v1354
    %v1356 = vmul.f32 %v1353, %v1355
    %v1357 = vadd.f32 %v1353, %v1356
    %vm1358 = vweird.f32 %v1322
    %vm1359 = vweird.f32 %v1353
    %vm1360 = vmor %vm1358, %vm1359
    %v1361 = vsel %vm1360, %v1353, %v1357
    %v1362 = vand.u32 2147483647, %v1322
    %vm1363 = vcmp.eq.f32.partialorder %v1362, 8.507059e+37
    %v1364 = vand.u32 %v1322, 2147483648
    %v1365 = vor.u32 1.1754944e-38, %v1364
    %v1366 = vsel %vm1363, %v1365, %v1361
    %v1367 = vmul.f32 1.0, %v1366
    %v1368 = vtanh.pop %v1310
    %v1369 = vmul.f32 %v1352, %v749
    %v1370 = vmul.f32 %v1337, %v1368
    %v1371 = vadd.f32 %v1369, %v1370
    %v1372 = vtanh.pop %v1371
    %v1373 = vmul.f32 %v1367, %v1372
    %1374 = vmatpush.msra.mxu0 %v812
    %1375 = vmatpush.msra.mxu0 %v808
    %1376 = vmatpush.msra.mxu0 %v804
    %1377 = vmatpush.msra.mxu0 %v800
    %1378 = vmatpush.msra.mxu0 %v796
    %1379 = vmatpush.msra.mxu0 %v792
    %1380 = vmatpush.msra.mxu0 %v788
    %1381 = vmatpush.msra.mxu0 %v784
    %1382 = vmatpush.msra.mxu0 %v780
    %1383 = vmatpush.msra.mxu0 %v776
    %1384 = vmatpush.msra.mxu0 %v772
    %1385 = vmatpush.msra.mxu0 %v768
    %1386 = vmatpush.msra.mxu0 %v764
    %1387 = vmatpush.msra.mxu0 %v760
    %1388 = vmatpush.msra.mxu0 %v756
    %1389 = vmatpush.msra.mxu0 %v752
    %1390 = vmatmul.f32.gmra.mxu0 %v1373
    %v1391 = vpop.f32.mrf.mxu0
    %v1392 = vadd.f32 %v817, %v1391
    %1393 = vdwg.mxu0
    %1394 = vmatpush.msra.mxu0 %v813
    %1395 = vmatpush.msra.mxu0 %v809
    %1396 = vmatpush.msra.mxu0 %v805
    %1397 = vmatpush.msra.mxu0 %v801
    %1398 = vmatpush.msra.mxu0 %v797
    %1399 = vmatpush.msra.mxu0 %v793
    %1400 = vmatpush.msra.mxu0 %v789
    %1401 = vmatpush.msra.mxu0 %v785
    %1402 = vmatpush.msra.mxu0 %v781
    %1403 = vmatpush.msra.mxu0 %v777
    %1404 = vmatpush.msra.mxu0 %v773
    %1405 = vmatpush.msra.mxu0 %v769
    %1406 = vmatpush.msra.mxu0 %v765
    %1407 = vmatpush.msra.mxu0 %v761
    %1408 = vmatpush.msra.mxu0 %v757
    %1409 = vmatpush.msra.mxu0 %v753
    %1410 = vmatmul.f32.gmra.mxu0 %v1373
    %v1411 = vpop.f32.mrf.mxu0
    %v1412 = vadd.f32 %v818, %v1411
    %1413 = vdwg.mxu0
    %1414 = vmatpush.msra.mxu0 %v814
    %1415 = vmatpush.msra.mxu0 %v810
    %1416 = vmatpush.msra.mxu0 %v806
    %1417 = vmatpush.msra.mxu0 %v802
    %1418 = vmatpush.msra.mxu0 %v798
    %1419 = vmatpush.msra.mxu0 %v794
    %1420 = vmatpush.msra.mxu0 %v790
    %1421 = vmatpush.msra.mxu0 %v786
    %1422 = vmatpush.msra.mxu0 %v782
    %1423 = vmatpush.msra.mxu0 %v778
    %1424 = vmatpush.msra.mxu0 %v774
    %1425 = vmatpush.msra.mxu0 %v770
    %1426 = vmatpush.msra.mxu0 %v766
    %1427 = vmatpush.msra.mxu0 %v762
    %1428 = vmatpush.msra.mxu0 %v758
    %1429 = vmatpush.msra.mxu0 %v754
    %1430 = vmatmul.f32.gmra.mxu0 %v1373
    %v1431 = vpop.f32.mrf.mxu0
    %v1432 = vadd.f32 %v819, %v1431
    %1433 = vdwg.mxu0
    %1434 = vmatpush.msra.mxu0 %v815
    %1435 = vmatpush.msra.mxu0 %v811
    %1436 = vmatpush.msra.mxu0 %v807
    %1437 = vmatpush.msra.mxu0 %v803
    %1438 = vmatpush.msra.mxu0 %v799
    %1439 = vmatpush.msra.mxu0 %v795
    %1440 = vmatpush.msra.mxu0 %v791
    %1441 = vmatpush.msra.mxu0 %v787
    %1442 = vmatpush.msra.mxu0 %v783
    %1443 = vmatpush.msra.mxu0 %v779
    %1444 = vmatpush.msra.mxu0 %v775
    %1445 = vmatpush.msra.mxu0 %v771
    %1446 = vmatpush.msra.mxu0 %v767
    %1447 = vmatpush.msra.mxu0 %v763
    %1448 = vmatpush.msra.mxu0 %v759
    %1449 = vmatpush.msra.mxu0 %v755
    %1450 = vmatmul.f32.gmra.mxu0 %v1373
    %v1451 = vpop.f32.mrf.mxu0
    %v1452 = vadd.f32 %v820, %v1451
    %1453 = vdwg.mxu0
    %v1454 = vadd.f32 %v1392, %v1170
    %v1455 = vadd.f32 %v1412, %v1210
    %v1456 = vadd.f32 %v1432, %v1250
    %v1457 = vadd.f32 %v1452, %v1290
    %v1458 = vxor.u32 %v1454, 2147483648
    %v1459 = vxor.u32 %v1455, 2147483648
    %v1460 = vxor.u32 %v1456, 2147483648
    %v1461 = vmul.f32 %v1458, 1.442695
    %v1462 = vpow.pop %v1461
    %v1463 = vmul.f32 %v1459, 1.442695
    %v1464 = vpow.pop %v1463
    %v1465 = vmul.f32 %v1460, 1.442695
    %v1466 = vpow.pop %v1465
    %v1467 = vadd.f32 %v1462, 1.0
    %v1468 = vadd.f32 %v1464, 1.0
    %v1469 = vadd.f32 %v1466, 1.0
    %v1470 = vrcp.pop %v1467
    %v1471 = vmul.f32 %v1467, %v1470
    %v1472 = vsub.f32 1.0, %v1471
    %v1473 = vmul.f32 %v1470, %v1472
    %v1474 = vadd.f32 %v1470, %v1473
    %vm1475 = vweird.f32 %v1467
    %vm1476 = vweird.f32 %v1470
    %vm1477 = vmor %vm1475, %vm1476
    %v1478 = vsel %vm1477, %v1470, %v1474
    %v1479 = vand.u32 2147483647, %v1467
    %vm1480 = vcmp.eq.f32.partialorder %v1479, 8.507059e+37
    %v1481 = vand.u32 %v1467, 2147483648
    %v1482 = vor.u32 1.1754944e-38, %v1481
    %v1483 = vsel %vm1480, %v1482, %v1478
    %v1484 = vmul.f32 1.0, %v1483
    %v1485 = vrcp.pop %v1468
    %v1486 = vmul.f32 %v1468, %v1485
    %v1487 = vsub.f32 1.0, %v1486
    %v1488 = vmul.f32 %v1485, %v1487
    %v1489 = vadd.f32 %v1485, %v1488
    %vm1490 = vweird.f32 %v1468
    %vm1491 = vweird.f32 %v1485
    %vm1492 = vmor %vm1490, %vm1491
    %v1493 = vsel %vm1492, %v1485, %v1489
    %v1494 = vand.u32 2147483647, %v1468
    %vm1495 = vcmp.eq.f32.partialorder %v1494, 8.507059e+37
    %v1496 = vand.u32 %v1468, 2147483648
    %v1497 = vor.u32 1.1754944e-38, %v1496
    %v1498 = vsel %vm1495, %v1497, %v1493
    %v1499 = vmul.f32 1.0, %v1498
    %v1500 = vrcp.pop %v1469
    %v1501 = vmul.f32 %v1469, %v1500
    %v1502 = vsub.f32 1.0, %v1501
    %v1503 = vmul.f32 %v1500, %v1502
    %v1504 = vadd.f32 %v1500, %v1503
    %vm1505 = vweird.f32 %v1469
    %vm1506 = vweird.f32 %v1500
    %vm1507 = vmor %vm1505, %vm1506
    %v1508 = vsel %vm1507, %v1500, %v1504
    %v1509 = vand.u32 2147483647, %v1469
    %vm1510 = vcmp.eq.f32.partialorder %v1509, 8.507059e+37
    %v1511 = vand.u32 %v1469, 2147483648
    %v1512 = vor.u32 1.1754944e-38, %v1511
    %v1513 = vsel %vm1510, %v1512, %v1508
    %v1514 = vmul.f32 1.0, %v1513
    %v1515 = vtanh.pop %v1457
    %v1516 = vmul.f32 %v1499, %v969
    %v1517 = vmul.f32 %v1484, %v1515
    %v1518 = vadd.f32 %v1516, %v1517
    %v1519 = vtanh.pop %v1518
    %v1520 = vmul.f32 %v1514, %v1519
    %1521 = vmatpush.msra.mxu0 %v197
    %1522 = vmatpush.msra.mxu0 %v189
    %1523 = vmatpush.msra.mxu0 %v181
    %1524 = vmatpush.msra.mxu0 %v173
    %1525 = vmatpush.msra.mxu0 %v165
    %1526 = vmatpush.msra.mxu0 %v157
    %1527 = vmatpush.msra.mxu0 %v149
    %1528 = vmatpush.msra.mxu0 %v141
    %1529 = vmatpush.msra.mxu0 %v133
    %1530 = vmatpush.msra.mxu0 %v125
    %1531 = vmatpush.msra.mxu0 %v117
    %1532 = vmatpush.msra.mxu0 %v109
    %1533 = vmatpush.msra.mxu0 %v101
    %1534 = vmatpush.msra.mxu0 %v93
    %1535 = vmatpush.msra.mxu0 %v85
    %1536 = vmatpush.msra.mxu0 %v77
    %1537 = vmatmul.f32.gmra.mxu0 %v1373
    %v1538 = vpop.f32.mrf.mxu0
    %v1539 = vadd.f32 0.0, %v1538
    %1540 = vdwg.mxu0
    %1541 = vmatpush.msra.mxu0 %v325
    %1542 = vmatpush.msra.mxu0 %v317
    %1543 = vmatpush.msra.mxu0 %v309
    %1544 = vmatpush.msra.mxu0 %v301
    %1545 = vmatpush.msra.mxu0 %v293
    %1546 = vmatpush.msra.mxu0 %v285
    %1547 = vmatpush.msra.mxu0 %v277
    %1548 = vmatpush.msra.mxu0 %v269
    %1549 = vmatpush.msra.mxu0 %v261
    %1550 = vmatpush.msra.mxu0 %v253
    %1551 = vmatpush.msra.mxu0 %v245
    %1552 = vmatpush.msra.mxu0 %v237
    %1553 = vmatpush.msra.mxu0 %v229
    %1554 = vmatpush.msra.mxu0 %v221
    %1555 = vmatpush.msra.mxu0 %v213
    %1556 = vmatpush.msra.mxu0 %v205
    %1557 = vmatmul.f32.gmra.mxu0 %v1520
    %v1558 = vpop.f32.mrf.mxu0
    %v1559 = vadd.f32 %v1539, %v1558
    %1560 = vdwg.mxu0
    %1561 = vmatpush.msra.mxu0 %v198
    %1562 = vmatpush.msra.mxu0 %v190
    %1563 = vmatpush.msra.mxu0 %v182
    %1564 = vmatpush.msra.mxu0 %v174
    %1565 = vmatpush.msra.mxu0 %v166
    %1566 = vmatpush.msra.mxu0 %v158
    %1567 = vmatpush.msra.mxu0 %v150
    %1568 = vmatpush.msra.mxu0 %v142
    %1569 = vmatpush.msra.mxu0 %v134
    %1570 = vmatpush.msra.mxu0 %v126
    %1571 = vmatpush.msra.mxu0 %v118
    %1572 = vmatpush.msra.mxu0 %v110
    %1573 = vmatpush.msra.mxu0 %v102
    %1574 = vmatpush.msra.mxu0 %v94
    %1575 = vmatpush.msra.mxu0 %v86
    %1576 = vmatpush.msra.mxu0 %v78
    %1577 = vmatmul.f32.gmra.mxu0 %v1373
    %v1578 = vpop.f32.mrf.mxu0
    %v1579 = vadd.f32 0.0, %v1578
    %1580 = vdwg.mxu0
    %1581 = vmatpush.msra.mxu0 %v326
    %1582 = vmatpush.msra.mxu0 %v318
    %1583 = vmatpush.msra.mxu0 %v310
    %1584 = vmatpush.msra.mxu0 %v302
    %1585 = vmatpush.msra.mxu0 %v294
    %1586 = vmatpush.msra.mxu0 %v286
    %1587 = vmatpush.msra.mxu0 %v278
    %1588 = vmatpush.msra.mxu0 %v270
    %1589 = vmatpush.msra.mxu0 %v262
    %1590 = vmatpush.msra.mxu0 %v254
    %1591 = vmatpush.msra.mxu0 %v246
    %1592 = vmatpush.msra.mxu0 %v238
    %1593 = vmatpush.msra.mxu0 %v230
    %1594 = vmatpush.msra.mxu0 %v222
    %1595 = vmatpush.msra.mxu0 %v214
    %1596 = vmatpush.msra.mxu0 %v206
    %1597 = vmatmul.f32.gmra.mxu0 %v1520
    %v1598 = vpop.f32.mrf.mxu0
    %v1599 = vadd.f32 %v1579, %v1598
    %1600 = vdwg.mxu0
    %1601 = vmatpush.msra.mxu0 %v199
    %1602 = vmatpush.msra.mxu0 %v191
    %1603 = vmatpush.msra.mxu0 %v183
    %1604 = vmatpush.msra.mxu0 %v175
    %1605 = vmatpush.msra.mxu0 %v167
    %1606 = vmatpush.msra.mxu0 %v159
    %1607 = vmatpush.msra.mxu0 %v151
    %1608 = vmatpush.msra.mxu0 %v143
    %1609 = vmatpush.msra.mxu0 %v135
    %1610 = vmatpush.msra.mxu0 %v127
    %1611 = vmatpush.msra.mxu0 %v119
    %1612 = vmatpush.msra.mxu0 %v111
    %1613 = vmatpush.msra.mxu0 %v103
    %1614 = vmatpush.msra.mxu0 %v95
    %1615 = vmatpush.msra.mxu0 %v87
    %1616 = vmatpush.msra.mxu0 %v79
    %1617 = vmatmul.f32.gmra.mxu0 %v1373
    %v1618 = vpop.f32.mrf.mxu0
    %v1619 = vadd.f32 0.0, %v1618
    %1620 = vdwg.mxu0
    %1621 = vmatpush.msra.mxu0 %v327
    %1622 = vmatpush.msra.mxu0 %v319
    %1623 = vmatpush.msra.mxu0 %v311
    %1624 = vmatpush.msra.mxu0 %v303
    %1625 = vmatpush.msra.mxu0 %v295
    %1626 = vmatpush.msra.mxu0 %v287
    %1627 = vmatpush.msra.mxu0 %v279
    %1628 = vmatpush.msra.mxu0 %v271
    %1629 = vmatpush.msra.mxu0 %v263
    %1630 = vmatpush.msra.mxu0 %v255
    %1631 = vmatpush.msra.mxu0 %v247
    %1632 = vmatpush.msra.mxu0 %v239
    %1633 = vmatpush.msra.mxu0 %v231
    %1634 = vmatpush.msra.mxu0 %v223
    %1635 = vmatpush.msra.mxu0 %v215
    %1636 = vmatpush.msra.mxu0 %v207
    %1637 = vmatmul.f32.gmra.mxu0 %v1520
    %v1638 = vpop.f32.mrf.mxu0
    %v1639 = vadd.f32 %v1619, %v1638
    %1640 = vdwg.mxu0
    %1641 = vmatpush.msra.mxu0 %v200
    %1642 = vmatpush.msra.mxu0 %v192
    %1643 = vmatpush.msra.mxu0 %v184
    %1644 = vmatpush.msra.mxu0 %v176
    %1645 = vmatpush.msra.mxu0 %v168
    %1646 = vmatpush.msra.mxu0 %v160
    %1647 = vmatpush.msra.mxu0 %v152
    %1648 = vmatpush.msra.mxu0 %v144
    %1649 = vmatpush.msra.mxu0 %v136
    %1650 = vmatpush.msra.mxu0 %v128
    %1651 = vmatpush.msra.mxu0 %v120
    %1652 = vmatpush.msra.mxu0 %v112
    %1653 = vmatpush.msra.mxu0 %v104
    %1654 = vmatpush.msra.mxu0 %v96
    %1655 = vmatpush.msra.mxu0 %v88
    %1656 = vmatpush.msra.mxu0 %v80
    %1657 = vmatmul.f32.gmra.mxu0 %v1373
    %v1658 = vpop.f32.mrf.mxu0
    %v1659 = vadd.f32 0.0, %v1658
    %1660 = vdwg.mxu0
    %1661 = vmatpush.msra.mxu0 %v328
    %1662 = vmatpush.msra.mxu0 %v320
    %1663 = vmatpush.msra.mxu0 %v312
    %1664 = vmatpush.msra.mxu0 %v304
    %1665 = vmatpush.msra.mxu0 %v296
    %1666 = vmatpush.msra.mxu0 %v288
    %1667 = vmatpush.msra.mxu0 %v280
    %1668 = vmatpush.msra.mxu0 %v272
    %1669 = vmatpush.msra.mxu0 %v264
    %1670 = vmatpush.msra.mxu0 %v256
    %1671 = vmatpush.msra.mxu0 %v248
    %1672 = vmatpush.msra.mxu0 %v240
    %1673 = vmatpush.msra.mxu0 %v232
    %1674 = vmatpush.msra.mxu0 %v224
    %1675 = vmatpush.msra.mxu0 %v216
    %1676 = vmatpush.msra.mxu0 %v208
    %1677 = vmatmul.f32.gmra.mxu0 %v1520
    %v1678 = vpop.f32.mrf.mxu0
    %v1679 = vadd.f32 %v1659, %v1678
    %1680 = vdwg.mxu0
    %1681 = vmatpush.msra.mxu0 %v201
    %1682 = vmatpush.msra.mxu0 %v193
    %1683 = vmatpush.msra.mxu0 %v185
    %1684 = vmatpush.msra.mxu0 %v177
    %1685 = vmatpush.msra.mxu0 %v169
    %1686 = vmatpush.msra.mxu0 %v161
    %1687 = vmatpush.msra.mxu0 %v153
    %1688 = vmatpush.msra.mxu0 %v145
    %1689 = vmatpush.msra.mxu0 %v137
    %1690 = vmatpush.msra.mxu0 %v129
    %1691 = vmatpush.msra.mxu0 %v121
    %1692 = vmatpush.msra.mxu0 %v113
    %1693 = vmatpush.msra.mxu0 %v105
    %1694 = vmatpush.msra.mxu0 %v97
    %1695 = vmatpush.msra.mxu0 %v89
    %1696 = vmatpush.msra.mxu0 %v81
    %1697 = vmatmul.f32.gmra.mxu0 %v1373
    %v1698 = vpop.f32.mrf.mxu0
    %v1699 = vadd.f32 0.0, %v1698
    %1700 = vdwg.mxu0
    %1701 = vmatpush.msra.mxu0 %v329
    %1702 = vmatpush.msra.mxu0 %v321
    %1703 = vmatpush.msra.mxu0 %v313
    %1704 = vmatpush.msra.mxu0 %v305
    %1705 = vmatpush.msra.mxu0 %v297
    %1706 = vmatpush.msra.mxu0 %v289
    %1707 = vmatpush.msra.mxu0 %v281
    %1708 = vmatpush.msra.mxu0 %v273
    %1709 = vmatpush.msra.mxu0 %v265
    %1710 = vmatpush.msra.mxu0 %v257
    %1711 = vmatpush.msra.mxu0 %v249
    %1712 = vmatpush.msra.mxu0 %v241
    %1713 = vmatpush.msra.mxu0 %v233
    %1714 = vmatpush.msra.mxu0 %v225
    %1715 = vmatpush.msra.mxu0 %v217
    %1716 = vmatpush.msra.mxu0 %v209
    %1717 = vmatmul.f32.gmra.mxu0 %v1520
    %v1718 = vpop.f32.mrf.mxu0
    %v1719 = vadd.f32 %v1699, %v1718
    %1720 = vdwg.mxu0
    %1721 = vmatpush.msra.mxu0 %v202
    %1722 = vmatpush.msra.mxu0 %v194
    %1723 = vmatpush.msra.mxu0 %v186
    %1724 = vmatpush.msra.mxu0 %v178
    %1725 = vmatpush.msra.mxu0 %v170
    %1726 = vmatpush.msra.mxu0 %v162
    %1727 = vmatpush.msra.mxu0 %v154
    %1728 = vmatpush.msra.mxu0 %v146
    %1729 = vmatpush.msra.mxu0 %v138
    %1730 = vmatpush.msra.mxu0 %v130
    %1731 = vmatpush.msra.mxu0 %v122
    %1732 = vmatpush.msra.mxu0 %v114
    %1733 = vmatpush.msra.mxu0 %v106
    %1734 = vmatpush.msra.mxu0 %v98
    %1735 = vmatpush.msra.mxu0 %v90
    %1736 = vmatpush.msra.mxu0 %v82
    %1737 = vmatmul.f32.gmra.mxu0 %v1373
    %v1738 = vpop.f32.mrf.mxu0
    %v1739 = vadd.f32 0.0, %v1738
    %1740 = vdwg.mxu0
    %1741 = vmatpush.msra.mxu0 %v330
    %1742 = vmatpush.msra.mxu0 %v322
    %1743 = vmatpush.msra.mxu0 %v314
    %1744 = vmatpush.msra.mxu0 %v306
    %1745 = vmatpush.msra.mxu0 %v298
    %1746 = vmatpush.msra.mxu0 %v290
    %1747 = vmatpush.msra.mxu0 %v282
    %1748 = vmatpush.msra.mxu0 %v274
    %1749 = vmatpush.msra.mxu0 %v266
    %1750 = vmatpush.msra.mxu0 %v258
    %1751 = vmatpush.msra.mxu0 %v250
    %1752 = vmatpush.msra.mxu0 %v242
    %1753 = vmatpush.msra.mxu0 %v234
    %1754 = vmatpush.msra.mxu0 %v226
    %1755 = vmatpush.msra.mxu0 %v218
    %1756 = vmatpush.msra.mxu0 %v210
    %1757 = vmatmul.f32.gmra.mxu0 %v1520
    %v1758 = vpop.f32.mrf.mxu0
    %v1759 = vadd.f32 %v1739, %v1758
    %1760 = vdwg.mxu0
    %1761 = vmatpush.msra.mxu0 %v203
    %1762 = vmatpush.msra.mxu0 %v195
    %1763 = vmatpush.msra.mxu0 %v187
    %1764 = vmatpush.msra.mxu0 %v179
    %1765 = vmatpush.msra.mxu0 %v171
    %1766 = vmatpush.msra.mxu0 %v163
    %1767 = vmatpush.msra.mxu0 %v155
    %1768 = vmatpush.msra.mxu0 %v147
    %1769 = vmatpush.msra.mxu0 %v139
    %1770 = vmatpush.msra.mxu0 %v131
    %1771 = vmatpush.msra.mxu0 %v123
    %1772 = vmatpush.msra.mxu0 %v115
    %1773 = vmatpush.msra.mxu0 %v107
    %1774 = vmatpush.msra.mxu0 %v99
    %1775 = vmatpush.msra.mxu0 %v91
    %1776 = vmatpush.msra.mxu0 %v83
    %1777 = vmatmul.f32.gmra.mxu0 %v1373
    %v1778 = vpop.f32.mrf.mxu0
    %v1779 = vadd.f32 0.0, %v1778
    %1780 = vdwg.mxu0
    %1781 = vmatpush.msra.mxu0 %v331
    %1782 = vmatpush.msra.mxu0 %v323
    %1783 = vmatpush.msra.mxu0 %v315
    %1784 = vmatpush.msra.mxu0 %v307
    %1785 = vmatpush.msra.mxu0 %v299
    %1786 = vmatpush.msra.mxu0 %v291
    %1787 = vmatpush.msra.mxu0 %v283
    %1788 = vmatpush.msra.mxu0 %v275
    %1789 = vmatpush.msra.mxu0 %v267
    %1790 = vmatpush.msra.mxu0 %v259
    %1791 = vmatpush.msra.mxu0 %v251
    %1792 = vmatpush.msra.mxu0 %v243
    %1793 = vmatpush.msra.mxu0 %v235
    %1794 = vmatpush.msra.mxu0 %v227
    %1795 = vmatpush.msra.mxu0 %v219
    %1796 = vmatpush.msra.mxu0 %v211
    %1797 = vmatmul.f32.gmra.mxu0 %v1520
    %v1798 = vpop.f32.mrf.mxu0
    %v1799 = vadd.f32 %v1779, %v1798
    %1800 = vdwg.mxu0
    %1801 = vmatpush.msra.mxu0 %v204
    %1802 = vmatpush.msra.mxu0 %v196
    %1803 = vmatpush.msra.mxu0 %v188
    %1804 = vmatpush.msra.mxu0 %v180
    %1805 = vmatpush.msra.mxu0 %v172
    %1806 = vmatpush.msra.mxu0 %v164
    %1807 = vmatpush.msra.mxu0 %v156
    %1808 = vmatpush.msra.mxu0 %v148
    %1809 = vmatpush.msra.mxu0 %v140
    %1810 = vmatpush.msra.mxu0 %v132
    %1811 = vmatpush.msra.mxu0 %v124
    %1812 = vmatpush.msra.mxu0 %v116
    %1813 = vmatpush.msra.mxu0 %v108
    %1814 = vmatpush.msra.mxu0 %v100
    %1815 = vmatpush.msra.mxu0 %v92
    %1816 = vmatpush.msra.mxu0 %v84
    %1817 = vmatmul.f32.gmra.mxu0 %v1373
    %v1818 = vpop.f32.mrf.mxu0
    %v1819 = vadd.f32 0.0, %v1818
    %1820 = vdwg.mxu0
    %1821 = vmatpush.msra.mxu0 %v332
    %1822 = vmatpush.msra.mxu0 %v324
    %1823 = vmatpush.msra.mxu0 %v316
    %1824 = vmatpush.msra.mxu0 %v308
    %1825 = vmatpush.msra.mxu0 %v300
    %1826 = vmatpush.msra.mxu0 %v292
    %1827 = vmatpush.msra.mxu0 %v284
    %1828 = vmatpush.msra.mxu0 %v276
    %1829 = vmatpush.msra.mxu0 %v268
    %1830 = vmatpush.msra.mxu0 %v260
    %1831 = vmatpush.msra.mxu0 %v252
    %1832 = vmatpush.msra.mxu0 %v244
    %1833 = vmatpush.msra.mxu0 %v236
    %1834 = vmatpush.msra.mxu0 %v228
    %1835 = vmatpush.msra.mxu0 %v220
    %1836 = vmatpush.msra.mxu0 %v212
    %1837 = vmatmul.f32.gmra.mxu0 %v1520
    %v1838 = vpop.f32.mrf.mxu0
    %v1839 = vadd.f32 %v1819, %v1838
    %1840 = vdwg.mxu0
    %s1841 = scalar_lea.vmem %s0, 4
    %v1842 = vld [vmem:[%s1841] sm:$0x3]
    %1844 = vset.pattern.permute.xlu0 0
    %1845 = vperm.xlu0 %1844, %v1842
    %v1846 = vpop.permute.xlu0 %1845
    %v1848 = vmul.f32 %v1846, %v660
    %v1849 = vmul.f32 %v1846, %v661
    %v1850 = vmul.f32 %v1846, %v662
    %v1851 = vmul.f32 %v1846, %v663
    %v1852 = vadd.f32 %v1848, %v673
    %v1853 = vadd.f32 %v1849, %v674
    %v1854 = vadd.f32 %v1850, %v675
    %v1855 = vadd.f32 %v1851, %v676
    %v1856 = vadd.f32 %v1852, %v1559
    %v1857 = vadd.f32 %v1853, %v1599
    %v1858 = vadd.f32 %v1854, %v1639
    %v1859 = vadd.f32 %v1855, %v1679
    %v1860 = vxor.u32 %v1856, 2147483648
    %v1861 = vxor.u32 %v1857, 2147483648
    %v1862 = vxor.u32 %v1858, 2147483648
    %v1863 = vmul.f32 %v1860, 1.442695
    %v1864 = vpow.pop %v1863
    %v1865 = vmul.f32 %v1861, 1.442695
    %v1866 = vpow.pop %v1865
    %v1867 = vmul.f32 %v1862, 1.442695
    %v1868 = vpow.pop %v1867
    %v1869 = vadd.f32 %v1864, 1.0
    %v1870 = vadd.f32 %v1866, 1.0
    %v1871 = vadd.f32 %v1868, 1.0
    %v1872 = vrcp.pop %v1869
    %v1873 = vmul.f32 %v1869, %v1872
    %v1874 = vsub.f32 1.0, %v1873
    %v1875 = vmul.f32 %v1872, %v1874
    %v1876 = vadd.f32 %v1872, %v1875
    %vm1877 = vweird.f32 %v1869
    %vm1878 = vweird.f32 %v1872
    %vm1879 = vmor %vm1877, %vm1878
    %v1880 = vsel %vm1879, %v1872, %v1876
    %v1881 = vand.u32 2147483647, %v1869
    %vm1882 = vcmp.eq.f32.partialorder %v1881, 8.507059e+37
    %v1883 = vand.u32 %v1869, 2147483648
    %v1884 = vor.u32 1.1754944e-38, %v1883
    %v1885 = vsel %vm1882, %v1884, %v1880
    %v1886 = vmul.f32 1.0, %v1885
    %v1887 = vrcp.pop %v1870
    %v1888 = vmul.f32 %v1870, %v1887
    %v1889 = vsub.f32 1.0, %v1888
    %v1890 = vmul.f32 %v1887, %v1889
    %v1891 = vadd.f32 %v1887, %v1890
    %vm1892 = vweird.f32 %v1870
    %vm1893 = vweird.f32 %v1887
    %vm1894 = vmor %vm1892, %vm1893
    %v1895 = vsel %vm1894, %v1887, %v1891
    %v1896 = vand.u32 2147483647, %v1870
    %vm1897 = vcmp.eq.f32.partialorder %v1896, 8.507059e+37
    %v1898 = vand.u32 %v1870, 2147483648
    %v1899 = vor.u32 1.1754944e-38, %v1898
    %v1900 = vsel %vm1897, %v1899, %v1895
    %v1901 = vmul.f32 1.0, %v1900
    %v1902 = vrcp.pop %v1871
    %v1903 = vmul.f32 %v1871, %v1902
    %v1904 = vsub.f32 1.0, %v1903
    %v1905 = vmul.f32 %v1902, %v1904
    %v1906 = vadd.f32 %v1902, %v1905
    %vm1907 = vweird.f32 %v1871
    %vm1908 = vweird.f32 %v1902
    %vm1909 = vmor %vm1907, %vm1908
    %v1910 = vsel %vm1909, %v1902, %v1906
    %v1911 = vand.u32 2147483647, %v1871
    %vm1912 = vcmp.eq.f32.partialorder %v1911, 8.507059e+37
    %v1913 = vand.u32 %v1871, 2147483648
    %v1914 = vor.u32 1.1754944e-38, %v1913
    %v1915 = vsel %vm1912, %v1914, %v1910
    %v1916 = vmul.f32 1.0, %v1915
    %v1917 = vtanh.pop %v1859
    %v1918 = vmul.f32 %v1901, %v1371
    %v1919 = vmul.f32 %v1886, %v1917
    %v1920 = vadd.f32 %v1918, %v1919
    %v1921 = vtanh.pop %v1920
    %v1922 = vmul.f32 %v1916, %v1921
    %1923 = vmatpush.msra.mxu0 %v812
    %1924 = vmatpush.msra.mxu0 %v808
    %1925 = vmatpush.msra.mxu0 %v804
    %1926 = vmatpush.msra.mxu0 %v800
    %1927 = vmatpush.msra.mxu0 %v796
    %1928 = vmatpush.msra.mxu0 %v792
    %1929 = vmatpush.msra.mxu0 %v788
    %1930 = vmatpush.msra.mxu0 %v784
    %1931 = vmatpush.msra.mxu0 %v780
    %1932 = vmatpush.msra.mxu0 %v776
    %1933 = vmatpush.msra.mxu0 %v772
    %1934 = vmatpush.msra.mxu0 %v768
    %1935 = vmatpush.msra.mxu0 %v764
    %1936 = vmatpush.msra.mxu0 %v760
    %1937 = vmatpush.msra.mxu0 %v756
    %1938 = vmatpush.msra.mxu0 %v752
    %1939 = vmatmul.f32.gmra.mxu0 %v1922
    %v1940 = vpop.f32.mrf.mxu0
    %v1941 = vadd.f32 %v817, %v1940
    %1942 = vdwg.mxu0
    %1943 = vmatpush.msra.mxu0 %v813
    %1944 = vmatpush.msra.mxu0 %v809
    %1945 = vmatpush.msra.mxu0 %v805
    %1946 = vmatpush.msra.mxu0 %v801
    %1947 = vmatpush.msra.mxu0 %v797
    %1948 = vmatpush.msra.mxu0 %v793
    %1949 = vmatpush.msra.mxu0 %v789
    %1950 = vmatpush.msra.mxu0 %v785
    %1951 = vmatpush.msra.mxu0 %v781
    %1952 = vmatpush.msra.mxu0 %v777
    %1953 = vmatpush.msra.mxu0 %v773
    %1954 = vmatpush.msra.mxu0 %v769
    %1955 = vmatpush.msra.mxu0 %v765
    %1956 = vmatpush.msra.mxu0 %v761
    %1957 = vmatpush.msra.mxu0 %v757
    %1958 = vmatpush.msra.mxu0 %v753
    %1959 = vmatmul.f32.gmra.mxu0 %v1922
    %v1960 = vpop.f32.mrf.mxu0
    %v1961 = vadd.f32 %v818, %v1960
    %1962 = vdwg.mxu0
    %1963 = vmatpush.msra.mxu0 %v814
    %1964 = vmatpush.msra.mxu0 %v810
    %1965 = vmatpush.msra.mxu0 %v806
    %1966 = vmatpush.msra.mxu0 %v802
    %1967 = vmatpush.msra.mxu0 %v798
    %1968 = vmatpush.msra.mxu0 %v794
    %1969 = vmatpush.msra.mxu0 %v790
    %1970 = vmatpush.msra.mxu0 %v786
    %1971 = vmatpush.msra.mxu0 %v782
    %1972 = vmatpush.msra.mxu0 %v778
    %1973 = vmatpush.msra.mxu0 %v774
    %1974 = vmatpush.msra.mxu0 %v770
    %1975 = vmatpush.msra.mxu0 %v766
    %1976 = vmatpush.msra.mxu0 %v762
    %1977 = vmatpush.msra.mxu0 %v758
    %1978 = vmatpush.msra.mxu0 %v754
    %1979 = vmatmul.f32.gmra.mxu0 %v1922
    %v1980 = vpop.f32.mrf.mxu0
    %v1981 = vadd.f32 %v819, %v1980
    %1982 = vdwg.mxu0
    %1983 = vmatpush.msra.mxu0 %v815
    %1984 = vmatpush.msra.mxu0 %v811
    %1985 = vmatpush.msra.mxu0 %v807
    %1986 = vmatpush.msra.mxu0 %v803
    %1987 = vmatpush.msra.mxu0 %v799
    %1988 = vmatpush.msra.mxu0 %v795
    %1989 = vmatpush.msra.mxu0 %v791
    %1990 = vmatpush.msra.mxu0 %v787
    %1991 = vmatpush.msra.mxu0 %v783
    %1992 = vmatpush.msra.mxu0 %v779
    %1993 = vmatpush.msra.mxu0 %v775
    %1994 = vmatpush.msra.mxu0 %v771
    %1995 = vmatpush.msra.mxu0 %v767
    %1996 = vmatpush.msra.mxu0 %v763
    %1997 = vmatpush.msra.mxu0 %v759
    %1998 = vmatpush.msra.mxu0 %v755
    %1999 = vmatmul.f32.gmra.mxu0 %v1922
    %v2000 = vpop.f32.mrf.mxu0
    %v2001 = vadd.f32 %v820, %v2000
    %2002 = vdwg.mxu0
    %v2003 = vadd.f32 %v1941, %v1719
    %v2004 = vadd.f32 %v1961, %v1759
    %v2005 = vadd.f32 %v1981, %v1799
    %v2006 = vadd.f32 %v2001, %v1839
    %v2007 = vxor.u32 %v2003, 2147483648
    %v2008 = vxor.u32 %v2004, 2147483648
    %v2009 = vxor.u32 %v2005, 2147483648
    %v2010 = vmul.f32 %v2007, 1.442695
    %v2011 = vpow.pop %v2010
    %v2012 = vmul.f32 %v2008, 1.442695
    %v2013 = vpow.pop %v2012
    %v2014 = vmul.f32 %v2009, 1.442695
    %v2015 = vpow.pop %v2014
    %v2016 = vadd.f32 %v2011, 1.0
    %v2017 = vadd.f32 %v2013, 1.0
    %v2018 = vadd.f32 %v2015, 1.0
    %v2019 = vrcp.pop %v2016
    %v2020 = vmul.f32 %v2016, %v2019
    %v2021 = vsub.f32 1.0, %v2020
    %v2022 = vmul.f32 %v2019, %v2021
    %v2023 = vadd.f32 %v2019, %v2022
    %vm2024 = vweird.f32 %v2016
    %vm2025 = vweird.f32 %v2019
    %vm2026 = vmor %vm2024, %vm2025
    %v2027 = vsel %vm2026, %v2019, %v2023
    %v2028 = vand.u32 2147483647, %v2016
    %vm2029 = vcmp.eq.f32.partialorder %v2028, 8.507059e+37
    %v2030 = vand.u32 %v2016, 2147483648
    %v2031 = vor.u32 1.1754944e-38, %v2030
    %v2032 = vsel %vm2029, %v2031, %v2027
    %v2033 = vmul.f32 1.0, %v2032
    %v2034 = vrcp.pop %v2017
    %v2035 = vmul.f32 %v2017, %v2034
    %v2036 = vsub.f32 1.0, %v2035
    %v2037 = vmul.f32 %v2034, %v2036
    %v2038 = vadd.f32 %v2034, %v2037
    %vm2039 = vweird.f32 %v2017
    %vm2040 = vweird.f32 %v2034
    %vm2041 = vmor %vm2039, %vm2040
    %v2042 = vsel %vm2041, %v2034, %v2038
    %v2043 = vand.u32 2147483647, %v2017
    %vm2044 = vcmp.eq.f32.partialorder %v2043, 8.507059e+37
    %v2045 = vand.u32 %v2017, 2147483648
    %v2046 = vor.u32 1.1754944e-38, %v2045
    %v2047 = vsel %vm2044, %v2046, %v2042
    %v2048 = vmul.f32 1.0, %v2047
    %v2049 = vrcp.pop %v2018
    %v2050 = vmul.f32 %v2018, %v2049
    %v2051 = vsub.f32 1.0, %v2050
    %v2052 = vmul.f32 %v2049, %v2051
    %v2053 = vadd.f32 %v2049, %v2052
    %vm2054 = vweird.f32 %v2018
    %vm2055 = vweird.f32 %v2049
    %vm2056 = vmor %vm2054, %vm2055
    %v2057 = vsel %vm2056, %v2049, %v2053
    %v2058 = vand.u32 2147483647, %v2018
    %vm2059 = vcmp.eq.f32.partialorder %v2058, 8.507059e+37
    %v2060 = vand.u32 %v2018, 2147483648
    %v2061 = vor.u32 1.1754944e-38, %v2060
    %v2062 = vsel %vm2059, %v2061, %v2057
    %v2063 = vmul.f32 1.0, %v2062
    %v2064 = vtanh.pop %v2006
    %v2065 = vmul.f32 %v2048, %v1518
    %v2066 = vmul.f32 %v2033, %v2064
    %v2067 = vadd.f32 %v2065, %v2066
    %v2068 = vtanh.pop %v2067
    %v2069 = vmul.f32 %v2063, %v2068
    %2070 = vmatpush.msra.mxu0 %v197
    %2071 = vmatpush.msra.mxu0 %v189
    %2072 = vmatpush.msra.mxu0 %v181
    %2073 = vmatpush.msra.mxu0 %v173
    %2074 = vmatpush.msra.mxu0 %v165
    %2075 = vmatpush.msra.mxu0 %v157
    %2076 = vmatpush.msra.mxu0 %v149
    %2077 = vmatpush.msra.mxu0 %v141
    %2078 = vmatpush.msra.mxu0 %v133
    %2079 = vmatpush.msra.mxu0 %v125
    %2080 = vmatpush.msra.mxu0 %v117
    %2081 = vmatpush.msra.mxu0 %v109
    %2082 = vmatpush.msra.mxu0 %v101
    %2083 = vmatpush.msra.mxu0 %v93
    %2084 = vmatpush.msra.mxu0 %v85
    %2085 = vmatpush.msra.mxu0 %v77
    %2086 = vmatmul.f32.gmra.mxu0 %v1922
    %v2087 = vpop.f32.mrf.mxu0
    %v2088 = vadd.f32 0.0, %v2087
    %2089 = vdwg.mxu0
    %2090 = vmatpush.msra.mxu0 %v325
    %2091 = vmatpush.msra.mxu0 %v317
    %2092 = vmatpush.msra.mxu0 %v309
    %2093 = vmatpush.msra.mxu0 %v301
    %2094 = vmatpush.msra.mxu0 %v293
    %2095 = vmatpush.msra.mxu0 %v285
    %2096 = vmatpush.msra.mxu0 %v277
    %2097 = vmatpush.msra.mxu0 %v269
    %2098 = vmatpush.msra.mxu0 %v261
    %2099 = vmatpush.msra.mxu0 %v253
    %2100 = vmatpush.msra.mxu0 %v245
    %2101 = vmatpush.msra.mxu0 %v237
    %2102 = vmatpush.msra.mxu0 %v229
    %2103 = vmatpush.msra.mxu0 %v221
    %2104 = vmatpush.msra.mxu0 %v213
    %2105 = vmatpush.msra.mxu0 %v205
    %2106 = vmatmul.f32.gmra.mxu0 %v2069
    %v2107 = vpop.f32.mrf.mxu0
    %v2108 = vadd.f32 %v2088, %v2107
    %2109 = vdwg.mxu0
    %2110 = vmatpush.msra.mxu0 %v198
    %2111 = vmatpush.msra.mxu0 %v190
    %2112 = vmatpush.msra.mxu0 %v182
    %2113 = vmatpush.msra.mxu0 %v174
    %2114 = vmatpush.msra.mxu0 %v166
    %2115 = vmatpush.msra.mxu0 %v158
    %2116 = vmatpush.msra.mxu0 %v150
    %2117 = vmatpush.msra.mxu0 %v142
    %2118 = vmatpush.msra.mxu0 %v134
    %2119 = vmatpush.msra.mxu0 %v126
    %2120 = vmatpush.msra.mxu0 %v118
    %2121 = vmatpush.msra.mxu0 %v110
    %2122 = vmatpush.msra.mxu0 %v102
    %2123 = vmatpush.msra.mxu0 %v94
    %2124 = vmatpush.msra.mxu0 %v86
    %2125 = vmatpush.msra.mxu0 %v78
    %2126 = vmatmul.f32.gmra.mxu0 %v1922
    %v2127 = vpop.f32.mrf.mxu0
    %v2128 = vadd.f32 0.0, %v2127
    %2129 = vdwg.mxu0
    %2130 = vmatpush.msra.mxu0 %v326
    %2131 = vmatpush.msra.mxu0 %v318
    %2132 = vmatpush.msra.mxu0 %v310
    %2133 = vmatpush.msra.mxu0 %v302
    %2134 = vmatpush.msra.mxu0 %v294
    %2135 = vmatpush.msra.mxu0 %v286
    %2136 = vmatpush.msra.mxu0 %v278
    %2137 = vmatpush.msra.mxu0 %v270
    %2138 = vmatpush.msra.mxu0 %v262
    %2139 = vmatpush.msra.mxu0 %v254
    %2140 = vmatpush.msra.mxu0 %v246
    %2141 = vmatpush.msra.mxu0 %v238
    %2142 = vmatpush.msra.mxu0 %v230
    %2143 = vmatpush.msra.mxu0 %v222
    %2144 = vmatpush.msra.mxu0 %v214
    %2145 = vmatpush.msra.mxu0 %v206
    %2146 = vmatmul.f32.gmra.mxu0 %v2069
    %v2147 = vpop.f32.mrf.mxu0
    %v2148 = vadd.f32 %v2128, %v2147
    %2149 = vdwg.mxu0
    %2150 = vmatpush.msra.mxu0 %v199
    %2151 = vmatpush.msra.mxu0 %v191
    %2152 = vmatpush.msra.mxu0 %v183
    %2153 = vmatpush.msra.mxu0 %v175
    %2154 = vmatpush.msra.mxu0 %v167
    %2155 = vmatpush.msra.mxu0 %v159
    %2156 = vmatpush.msra.mxu0 %v151
    %2157 = vmatpush.msra.mxu0 %v143
    %2158 = vmatpush.msra.mxu0 %v135
    %2159 = vmatpush.msra.mxu0 %v127
    %2160 = vmatpush.msra.mxu0 %v119
    %2161 = vmatpush.msra.mxu0 %v111
    %2162 = vmatpush.msra.mxu0 %v103
    %2163 = vmatpush.msra.mxu0 %v95
    %2164 = vmatpush.msra.mxu0 %v87
    %2165 = vmatpush.msra.mxu0 %v79
    %2166 = vmatmul.f32.gmra.mxu0 %v1922
    %v2167 = vpop.f32.mrf.mxu0
    %v2168 = vadd.f32 0.0, %v2167
    %2169 = vdwg.mxu0
    %2170 = vmatpush.msra.mxu0 %v327
    %2171 = vmatpush.msra.mxu0 %v319
    %2172 = vmatpush.msra.mxu0 %v311
    %2173 = vmatpush.msra.mxu0 %v303
    %2174 = vmatpush.msra.mxu0 %v295
    %2175 = vmatpush.msra.mxu0 %v287
    %2176 = vmatpush.msra.mxu0 %v279
    %2177 = vmatpush.msra.mxu0 %v271
    %2178 = vmatpush.msra.mxu0 %v263
    %2179 = vmatpush.msra.mxu0 %v255
    %2180 = vmatpush.msra.mxu0 %v247
    %2181 = vmatpush.msra.mxu0 %v239
    %2182 = vmatpush.msra.mxu0 %v231
    %2183 = vmatpush.msra.mxu0 %v223
    %2184 = vmatpush.msra.mxu0 %v215
    %2185 = vmatpush.msra.mxu0 %v207
    %2186 = vmatmul.f32.gmra.mxu0 %v2069
    %v2187 = vpop.f32.mrf.mxu0
    %v2188 = vadd.f32 %v2168, %v2187
    %2189 = vdwg.mxu0
    %2190 = vmatpush.msra.mxu0 %v200
    %2191 = vmatpush.msra.mxu0 %v192
    %2192 = vmatpush.msra.mxu0 %v184
    %2193 = vmatpush.msra.mxu0 %v176
    %2194 = vmatpush.msra.mxu0 %v168
    %2195 = vmatpush.msra.mxu0 %v160
    %2196 = vmatpush.msra.mxu0 %v152
    %2197 = vmatpush.msra.mxu0 %v144
    %2198 = vmatpush.msra.mxu0 %v136
    %2199 = vmatpush.msra.mxu0 %v128
    %2200 = vmatpush.msra.mxu0 %v120
    %2201 = vmatpush.msra.mxu0 %v112
    %2202 = vmatpush.msra.mxu0 %v104
    %2203 = vmatpush.msra.mxu0 %v96
    %2204 = vmatpush.msra.mxu0 %v88
    %2205 = vmatpush.msra.mxu0 %v80
    %2206 = vmatmul.f32.gmra.mxu0 %v1922
    %v2207 = vpop.f32.mrf.mxu0
    %v2208 = vadd.f32 0.0, %v2207
    %2209 = vdwg.mxu0
    %2210 = vmatpush.msra.mxu0 %v328
    %2211 = vmatpush.msra.mxu0 %v320
    %2212 = vmatpush.msra.mxu0 %v312
    %2213 = vmatpush.msra.mxu0 %v304
    %2214 = vmatpush.msra.mxu0 %v296
    %2215 = vmatpush.msra.mxu0 %v288
    %2216 = vmatpush.msra.mxu0 %v280
    %2217 = vmatpush.msra.mxu0 %v272
    %2218 = vmatpush.msra.mxu0 %v264
    %2219 = vmatpush.msra.mxu0 %v256
    %2220 = vmatpush.msra.mxu0 %v248
    %2221 = vmatpush.msra.mxu0 %v240
    %2222 = vmatpush.msra.mxu0 %v232
    %2223 = vmatpush.msra.mxu0 %v224
    %2224 = vmatpush.msra.mxu0 %v216
    %2225 = vmatpush.msra.mxu0 %v208
    %2226 = vmatmul.f32.gmra.mxu0 %v2069
    %v2227 = vpop.f32.mrf.mxu0
    %v2228 = vadd.f32 %v2208, %v2227
    %2229 = vdwg.mxu0
    %2230 = vmatpush.msra.mxu0 %v201
    %2231 = vmatpush.msra.mxu0 %v193
    %2232 = vmatpush.msra.mxu0 %v185
    %2233 = vmatpush.msra.mxu0 %v177
    %2234 = vmatpush.msra.mxu0 %v169
    %2235 = vmatpush.msra.mxu0 %v161
    %2236 = vmatpush.msra.mxu0 %v153
    %2237 = vmatpush.msra.mxu0 %v145
    %2238 = vmatpush.msra.mxu0 %v137
    %2239 = vmatpush.msra.mxu0 %v129
    %2240 = vmatpush.msra.mxu0 %v121
    %2241 = vmatpush.msra.mxu0 %v113
    %2242 = vmatpush.msra.mxu0 %v105
    %2243 = vmatpush.msra.mxu0 %v97
    %2244 = vmatpush.msra.mxu0 %v89
    %2245 = vmatpush.msra.mxu0 %v81
    %2246 = vmatmul.f32.gmra.mxu0 %v1922
    %v2247 = vpop.f32.mrf.mxu0
    %v2248 = vadd.f32 0.0, %v2247
    %2249 = vdwg.mxu0
    %2250 = vmatpush.msra.mxu0 %v329
    %2251 = vmatpush.msra.mxu0 %v321
    %2252 = vmatpush.msra.mxu0 %v313
    %2253 = vmatpush.msra.mxu0 %v305
    %2254 = vmatpush.msra.mxu0 %v297
    %2255 = vmatpush.msra.mxu0 %v289
    %2256 = vmatpush.msra.mxu0 %v281
    %2257 = vmatpush.msra.mxu0 %v273
    %2258 = vmatpush.msra.mxu0 %v265
    %2259 = vmatpush.msra.mxu0 %v257
    %2260 = vmatpush.msra.mxu0 %v249
    %2261 = vmatpush.msra.mxu0 %v241
    %2262 = vmatpush.msra.mxu0 %v233
    %2263 = vmatpush.msra.mxu0 %v225
    %2264 = vmatpush.msra.mxu0 %v217
    %2265 = vmatpush.msra.mxu0 %v209
    %2266 = vmatmul.f32.gmra.mxu0 %v2069
    %v2267 = vpop.f32.mrf.mxu0
    %v2268 = vadd.f32 %v2248, %v2267
    %2269 = vdwg.mxu0
    %2270 = vmatpush.msra.mxu0 %v202
    %2271 = vmatpush.msra.mxu0 %v194
    %2272 = vmatpush.msra.mxu0 %v186
    %2273 = vmatpush.msra.mxu0 %v178
    %2274 = vmatpush.msra.mxu0 %v170
    %2275 = vmatpush.msra.mxu0 %v162
    %2276 = vmatpush.msra.mxu0 %v154
    %2277 = vmatpush.msra.mxu0 %v146
    %2278 = vmatpush.msra.mxu0 %v138
    %2279 = vmatpush.msra.mxu0 %v130
    %2280 = vmatpush.msra.mxu0 %v122
    %2281 = vmatpush.msra.mxu0 %v114
    %2282 = vmatpush.msra.mxu0 %v106
    %2283 = vmatpush.msra.mxu0 %v98
    %2284 = vmatpush.msra.mxu0 %v90
    %2285 = vmatpush.msra.mxu0 %v82
    %2286 = vmatmul.f32.gmra.mxu0 %v1922
    %v2287 = vpop.f32.mrf.mxu0
    %v2288 = vadd.f32 0.0, %v2287
    %2289 = vdwg.mxu0
    %2290 = vmatpush.msra.mxu0 %v330
    %2291 = vmatpush.msra.mxu0 %v322
    %2292 = vmatpush.msra.mxu0 %v314
    %2293 = vmatpush.msra.mxu0 %v306
    %2294 = vmatpush.msra.mxu0 %v298
    %2295 = vmatpush.msra.mxu0 %v290
    %2296 = vmatpush.msra.mxu0 %v282
    %2297 = vmatpush.msra.mxu0 %v274
    %2298 = vmatpush.msra.mxu0 %v266
    %2299 = vmatpush.msra.mxu0 %v258
    %2300 = vmatpush.msra.mxu0 %v250
    %2301 = vmatpush.msra.mxu0 %v242
    %2302 = vmatpush.msra.mxu0 %v234
    %2303 = vmatpush.msra.mxu0 %v226
    %2304 = vmatpush.msra.mxu0 %v218
    %2305 = vmatpush.msra.mxu0 %v210
    %2306 = vmatmul.f32.gmra.mxu0 %v2069
    %v2307 = vpop.f32.mrf.mxu0
    %v2308 = vadd.f32 %v2288, %v2307
    %2309 = vdwg.mxu0
    %2310 = vmatpush.msra.mxu0 %v203
    %2311 = vmatpush.msra.mxu0 %v195
    %2312 = vmatpush.msra.mxu0 %v187
    %2313 = vmatpush.msra.mxu0 %v179
    %2314 = vmatpush.msra.mxu0 %v171
    %2315 = vmatpush.msra.mxu0 %v163
    %2316 = vmatpush.msra.mxu0 %v155
    %2317 = vmatpush.msra.mxu0 %v147
    %2318 = vmatpush.msra.mxu0 %v139
    %2319 = vmatpush.msra.mxu0 %v131
    %2320 = vmatpush.msra.mxu0 %v123
    %2321 = vmatpush.msra.mxu0 %v115
    %2322 = vmatpush.msra.mxu0 %v107
    %2323 = vmatpush.msra.mxu0 %v99
    %2324 = vmatpush.msra.mxu0 %v91
    %2325 = vmatpush.msra.mxu0 %v83
    %2326 = vmatmul.f32.gmra.mxu0 %v1922
    %v2327 = vpop.f32.mrf.mxu0
    %v2328 = vadd.f32 0.0, %v2327
    %2329 = vdwg.mxu0
    %2330 = vmatpush.msra.mxu0 %v331
    %2331 = vmatpush.msra.mxu0 %v323
    %2332 = vmatpush.msra.mxu0 %v315
    %2333 = vmatpush.msra.mxu0 %v307
    %2334 = vmatpush.msra.mxu0 %v299
    %2335 = vmatpush.msra.mxu0 %v291
    %2336 = vmatpush.msra.mxu0 %v283
    %2337 = vmatpush.msra.mxu0 %v275
    %2338 = vmatpush.msra.mxu0 %v267
    %2339 = vmatpush.msra.mxu0 %v259
    %2340 = vmatpush.msra.mxu0 %v251
    %2341 = vmatpush.msra.mxu0 %v243
    %2342 = vmatpush.msra.mxu0 %v235
    %2343 = vmatpush.msra.mxu0 %v227
    %2344 = vmatpush.msra.mxu0 %v219
    %2345 = vmatpush.msra.mxu0 %v211
    %2346 = vmatmul.f32.gmra.mxu0 %v2069
    %v2347 = vpop.f32.mrf.mxu0
    %v2348 = vadd.f32 %v2328, %v2347
    %2349 = vdwg.mxu0
    %2350 = vmatpush.msra.mxu0 %v204
    %2351 = vmatpush.msra.mxu0 %v196
    %2352 = vmatpush.msra.mxu0 %v188
    %2353 = vmatpush.msra.mxu0 %v180
    %2354 = vmatpush.msra.mxu0 %v172
    %2355 = vmatpush.msra.mxu0 %v164
    %2356 = vmatpush.msra.mxu0 %v156
    %2357 = vmatpush.msra.mxu0 %v148
    %2358 = vmatpush.msra.mxu0 %v140
    %2359 = vmatpush.msra.mxu0 %v132
    %2360 = vmatpush.msra.mxu0 %v124
    %2361 = vmatpush.msra.mxu0 %v116
    %2362 = vmatpush.msra.mxu0 %v108
    %2363 = vmatpush.msra.mxu0 %v100
    %2364 = vmatpush.msra.mxu0 %v92
    %2365 = vmatpush.msra.mxu0 %v84
    %2366 = vmatmul.f32.gmra.mxu0 %v1922
    %v2367 = vpop.f32.mrf.mxu0
    %v2368 = vadd.f32 0.0, %v2367
    %2369 = vdwg.mxu0
    %2370 = vmatpush.msra.mxu0 %v332
    %2371 = vmatpush.msra.mxu0 %v324
    %2372 = vmatpush.msra.mxu0 %v316
    %2373 = vmatpush.msra.mxu0 %v308
    %2374 = vmatpush.msra.mxu0 %v300
    %2375 = vmatpush.msra.mxu0 %v292
    %2376 = vmatpush.msra.mxu0 %v284
    %2377 = vmatpush.msra.mxu0 %v276
    %2378 = vmatpush.msra.mxu0 %v268
    %2379 = vmatpush.msra.mxu0 %v260
    %2380 = vmatpush.msra.mxu0 %v252
    %2381 = vmatpush.msra.mxu0 %v244
    %2382 = vmatpush.msra.mxu0 %v236
    %2383 = vmatpush.msra.mxu0 %v228
    %2384 = vmatpush.msra.mxu0 %v220
    %2385 = vmatpush.msra.mxu0 %v212
    %2386 = vmatmul.f32.gmra.mxu0 %v2069
    %v2387 = vpop.f32.mrf.mxu0
    %v2388 = vadd.f32 %v2368, %v2387
    %2389 = vdwg.mxu0
    %s2390 = scalar_lea.vmem %s0, 6
    %v2391 = vld [vmem:[%s2390] sm:$0x3]
    %2393 = vset.pattern.permute.xlu0 0
    %2394 = vperm.xlu0 %2393, %v2391
    %v2395 = vpop.permute.xlu0 %2394
    %v2397 = vmul.f32 %v2395, %v660
    %v2398 = vmul.f32 %v2395, %v661
    %v2399 = vmul.f32 %v2395, %v662
    %v2400 = vmul.f32 %v2395, %v663
    %v2401 = vadd.f32 %v2397, %v673
    %v2402 = vadd.f32 %v2398, %v674
    %v2403 = vadd.f32 %v2399, %v675
    %v2404 = vadd.f32 %v2400, %v676
    %v2405 = vadd.f32 %v2401, %v2108
    %v2406 = vadd.f32 %v2402, %v2148
    %v2407 = vadd.f32 %v2403, %v2188
    %v2408 = vadd.f32 %v2404, %v2228
    %v2409 = vxor.u32 %v2405, 2147483648
    %v2410 = vxor.u32 %v2406, 2147483648
    %v2411 = vxor.u32 %v2407, 2147483648
    %v2412 = vmul.f32 %v2409, 1.442695
    %v2413 = vpow.pop %v2412
    %v2414 = vmul.f32 %v2410, 1.442695
    %v2415 = vpow.pop %v2414
    %v2416 = vmul.f32 %v2411, 1.442695
    %v2417 = vpow.pop %v2416
    %v2418 = vadd.f32 %v2413, 1.0
    %v2419 = vadd.f32 %v2415, 1.0
    %v2420 = vadd.f32 %v2417, 1.0
    %v2421 = vrcp.pop %v2418
    %v2422 = vmul.f32 %v2418, %v2421
    %v2423 = vsub.f32 1.0, %v2422
    %v2424 = vmul.f32 %v2421, %v2423
    %v2425 = vadd.f32 %v2421, %v2424
    %vm2426 = vweird.f32 %v2418
    %vm2427 = vweird.f32 %v2421
    %vm2428 = vmor %vm2426, %vm2427
    %v2429 = vsel %vm2428, %v2421, %v2425
    %v2430 = vand.u32 2147483647, %v2418
    %vm2431 = vcmp.eq.f32.partialorder %v2430, 8.507059e+37
    %v2432 = vand.u32 %v2418, 2147483648
    %v2433 = vor.u32 1.1754944e-38, %v2432
    %v2434 = vsel %vm2431, %v2433, %v2429
    %v2435 = vmul.f32 1.0, %v2434
    %v2436 = vrcp.pop %v2419
    %v2437 = vmul.f32 %v2419, %v2436
    %v2438 = vsub.f32 1.0, %v2437
    %v2439 = vmul.f32 %v2436, %v2438
    %v2440 = vadd.f32 %v2436, %v2439
    %vm2441 = vweird.f32 %v2419
    %vm2442 = vweird.f32 %v2436
    %vm2443 = vmor %vm2441, %vm2442
    %v2444 = vsel %vm2443, %v2436, %v2440
    %v2445 = vand.u32 2147483647, %v2419
    %vm2446 = vcmp.eq.f32.partialorder %v2445, 8.507059e+37
    %v2447 = vand.u32 %v2419, 2147483648
    %v2448 = vor.u32 1.1754944e-38, %v2447
    %v2449 = vsel %vm2446, %v2448, %v2444
    %v2450 = vmul.f32 1.0, %v2449
    %v2451 = vrcp.pop %v2420
    %v2452 = vmul.f32 %v2420, %v2451
    %v2453 = vsub.f32 1.0, %v2452
    %v2454 = vmul.f32 %v2451, %v2453
    %v2455 = vadd.f32 %v2451, %v2454
    %vm2456 = vweird.f32 %v2420
    %vm2457 = vweird.f32 %v2451
    %vm2458 = vmor %vm2456, %vm2457
    %v2459 = vsel %vm2458, %v2451, %v2455
    %v2460 = vand.u32 2147483647, %v2420
    %vm2461 = vcmp.eq.f32.partialorder %v2460, 8.507059e+37
    %v2462 = vand.u32 %v2420, 2147483648
    %v2463 = vor.u32 1.1754944e-38, %v2462
    %v2464 = vsel %vm2461, %v2463, %v2459
    %v2465 = vmul.f32 1.0, %v2464
    %v2466 = vtanh.pop %v2408
    %v2467 = vmul.f32 %v2450, %v1920
    %v2468 = vmul.f32 %v2435, %v2466
    %v2469 = vadd.f32 %v2467, %v2468
    %v2470 = vtanh.pop %v2469
    %v2471 = vmul.f32 %v2465, %v2470
    %2472 = vmatpush.msra.mxu0 %v812
    %2473 = vmatpush.msra.mxu0 %v808
    %2474 = vmatpush.msra.mxu0 %v804
    %2475 = vmatpush.msra.mxu0 %v800
    %2476 = vmatpush.msra.mxu0 %v796
    %2477 = vmatpush.msra.mxu0 %v792
    %2478 = vmatpush.msra.mxu0 %v788
    %2479 = vmatpush.msra.mxu0 %v784
    %2480 = vmatpush.msra.mxu0 %v780
    %2481 = vmatpush.msra.mxu0 %v776
    %2482 = vmatpush.msra.mxu0 %v772
    %2483 = vmatpush.msra.mxu0 %v768
    %2484 = vmatpush.msra.mxu0 %v764
    %2485 = vmatpush.msra.mxu0 %v760
    %2486 = vmatpush.msra.mxu0 %v756
    %2487 = vmatpush.msra.mxu0 %v752
    %2488 = vmatmul.f32.gmra.mxu0 %v2471
    %v2489 = vpop.f32.mrf.mxu0
    %v2490 = vadd.f32 %v817, %v2489
    %2491 = vdwg.mxu0
    %2492 = vmatpush.msra.mxu0 %v813
    %2493 = vmatpush.msra.mxu0 %v809
    %2494 = vmatpush.msra.mxu0 %v805
    %2495 = vmatpush.msra.mxu0 %v801
    %2496 = vmatpush.msra.mxu0 %v797
    %2497 = vmatpush.msra.mxu0 %v793
    %2498 = vmatpush.msra.mxu0 %v789
    %2499 = vmatpush.msra.mxu0 %v785
    %2500 = vmatpush.msra.mxu0 %v781
    %2501 = vmatpush.msra.mxu0 %v777
    %2502 = vmatpush.msra.mxu0 %v773
    %2503 = vmatpush.msra.mxu0 %v769
    %2504 = vmatpush.msra.mxu0 %v765
    %2505 = vmatpush.msra.mxu0 %v761
    %2506 = vmatpush.msra.mxu0 %v757
    %2507 = vmatpush.msra.mxu0 %v753
    %2508 = vmatmul.f32.gmra.mxu0 %v2471
    %v2509 = vpop.f32.mrf.mxu0
    %v2510 = vadd.f32 %v818, %v2509
    %2511 = vdwg.mxu0
    %2512 = vmatpush.msra.mxu0 %v814
    %2513 = vmatpush.msra.mxu0 %v810
    %2514 = vmatpush.msra.mxu0 %v806
    %2515 = vmatpush.msra.mxu0 %v802
    %2516 = vmatpush.msra.mxu0 %v798
    %2517 = vmatpush.msra.mxu0 %v794
    %2518 = vmatpush.msra.mxu0 %v790
    %2519 = vmatpush.msra.mxu0 %v786
    %2520 = vmatpush.msra.mxu0 %v782
    %2521 = vmatpush.msra.mxu0 %v778
    %2522 = vmatpush.msra.mxu0 %v774
    %2523 = vmatpush.msra.mxu0 %v770
    %2524 = vmatpush.msra.mxu0 %v766
    %2525 = vmatpush.msra.mxu0 %v762
    %2526 = vmatpush.msra.mxu0 %v758
    %2527 = vmatpush.msra.mxu0 %v754
    %2528 = vmatmul.f32.gmra.mxu0 %v2471
    %v2529 = vpop.f32.mrf.mxu0
    %v2530 = vadd.f32 %v819, %v2529
    %2531 = vdwg.mxu0
    %2532 = vmatpush.msra.mxu0 %v815
    %2533 = vmatpush.msra.mxu0 %v811
    %2534 = vmatpush.msra.mxu0 %v807
    %2535 = vmatpush.msra.mxu0 %v803
    %2536 = vmatpush.msra.mxu0 %v799
    %2537 = vmatpush.msra.mxu0 %v795
    %2538 = vmatpush.msra.mxu0 %v791
    %2539 = vmatpush.msra.mxu0 %v787
    %2540 = vmatpush.msra.mxu0 %v783
    %2541 = vmatpush.msra.mxu0 %v779
    %2542 = vmatpush.msra.mxu0 %v775
    %2543 = vmatpush.msra.mxu0 %v771
    %2544 = vmatpush.msra.mxu0 %v767
    %2545 = vmatpush.msra.mxu0 %v763
    %2546 = vmatpush.msra.mxu0 %v759
    %2547 = vmatpush.msra.mxu0 %v755
    %2548 = vmatmul.f32.gmra.mxu0 %v2471
    %v2549 = vpop.f32.mrf.mxu0
    %v2550 = vadd.f32 %v820, %v2549
    %2551 = vdwg.mxu0
    %v2552 = vadd.f32 %v2490, %v2268
    %v2553 = vadd.f32 %v2510, %v2308
    %v2554 = vadd.f32 %v2530, %v2348
    %v2555 = vadd.f32 %v2550, %v2388
    %v2556 = vxor.u32 %v2552, 2147483648
    %v2557 = vxor.u32 %v2553, 2147483648
    %v2558 = vxor.u32 %v2554, 2147483648
    %v2559 = vmul.f32 %v2556, 1.442695
    %v2560 = vpow.pop %v2559
    %v2561 = vmul.f32 %v2557, 1.442695
    %v2562 = vpow.pop %v2561
    %v2563 = vmul.f32 %v2558, 1.442695
    %v2564 = vpow.pop %v2563
    %v2565 = vadd.f32 %v2560, 1.0
    %v2566 = vadd.f32 %v2562, 1.0
    %v2567 = vadd.f32 %v2564, 1.0
    %v2568 = vrcp.pop %v2565
    %v2569 = vmul.f32 %v2565, %v2568
    %v2570 = vsub.f32 1.0, %v2569
    %v2571 = vmul.f32 %v2568, %v2570
    %v2572 = vadd.f32 %v2568, %v2571
    %vm2573 = vweird.f32 %v2565
    %vm2574 = vweird.f32 %v2568
    %vm2575 = vmor %vm2573, %vm2574
    %v2576 = vsel %vm2575, %v2568, %v2572
    %v2577 = vand.u32 2147483647, %v2565
    %vm2578 = vcmp.eq.f32.partialorder %v2577, 8.507059e+37
    %v2579 = vand.u32 %v2565, 2147483648
    %v2580 = vor.u32 1.1754944e-38, %v2579
    %v2581 = vsel %vm2578, %v2580, %v2576
    %v2582 = vmul.f32 1.0, %v2581
    %v2583 = vrcp.pop %v2566
    %v2584 = vmul.f32 %v2566, %v2583
    %v2585 = vsub.f32 1.0, %v2584
    %v2586 = vmul.f32 %v2583, %v2585
    %v2587 = vadd.f32 %v2583, %v2586
    %vm2588 = vweird.f32 %v2566
    %vm2589 = vweird.f32 %v2583
    %vm2590 = vmor %vm2588, %vm2589
    %v2591 = vsel %vm2590, %v2583, %v2587
    %v2592 = vand.u32 2147483647, %v2566
    %vm2593 = vcmp.eq.f32.partialorder %v2592, 8.507059e+37
    %v2594 = vand.u32 %v2566, 2147483648
    %v2595 = vor.u32 1.1754944e-38, %v2594
    %v2596 = vsel %vm2593, %v2595, %v2591
    %v2597 = vmul.f32 1.0, %v2596
    %v2598 = vrcp.pop %v2567
    %v2599 = vmul.f32 %v2567, %v2598
    %v2600 = vsub.f32 1.0, %v2599
    %v2601 = vmul.f32 %v2598, %v2600
    %v2602 = vadd.f32 %v2598, %v2601
    %vm2603 = vweird.f32 %v2567
    %vm2604 = vweird.f32 %v2598
    %vm2605 = vmor %vm2603, %vm2604
    %v2606 = vsel %vm2605, %v2598, %v2602
    %v2607 = vand.u32 2147483647, %v2567
    %vm2608 = vcmp.eq.f32.partialorder %v2607, 8.507059e+37
    %v2609 = vand.u32 %v2567, 2147483648
    %v2610 = vor.u32 1.1754944e-38, %v2609
    %v2611 = vsel %vm2608, %v2610, %v2606
    %v2612 = vmul.f32 1.0, %v2611
    %v2613 = vtanh.pop %v2555
    %v2614 = vmul.f32 %v2597, %v2067
    %v2615 = vmul.f32 %v2582, %v2613
    %v2616 = vadd.f32 %v2614, %v2615
    %v2617 = vtanh.pop %v2616
    %v2618 = vmul.f32 %v2612, %v2617
    %2619 = vmatpush.msra.mxu0 %v197
    %2620 = vmatpush.msra.mxu0 %v189
    %2621 = vmatpush.msra.mxu0 %v181
    %2622 = vmatpush.msra.mxu0 %v173
    %2623 = vmatpush.msra.mxu0 %v165
    %2624 = vmatpush.msra.mxu0 %v157
    %2625 = vmatpush.msra.mxu0 %v149
    %2626 = vmatpush.msra.mxu0 %v141
    %2627 = vmatpush.msra.mxu0 %v133
    %2628 = vmatpush.msra.mxu0 %v125
    %2629 = vmatpush.msra.mxu0 %v117
    %2630 = vmatpush.msra.mxu0 %v109
    %2631 = vmatpush.msra.mxu0 %v101
    %2632 = vmatpush.msra.mxu0 %v93
    %2633 = vmatpush.msra.mxu0 %v85
    %2634 = vmatpush.msra.mxu0 %v77
    %2635 = vmatmul.f32.gmra.mxu0 %v2471
    %v2636 = vpop.f32.mrf.mxu0
    %v2637 = vadd.f32 0.0, %v2636
    %2638 = vdwg.mxu0
    %2639 = vmatpush.msra.mxu0 %v325
    %2640 = vmatpush.msra.mxu0 %v317
    %2641 = vmatpush.msra.mxu0 %v309
    %2642 = vmatpush.msra.mxu0 %v301
    %2643 = vmatpush.msra.mxu0 %v293
    %2644 = vmatpush.msra.mxu0 %v285
    %2645 = vmatpush.msra.mxu0 %v277
    %2646 = vmatpush.msra.mxu0 %v269
    %2647 = vmatpush.msra.mxu0 %v261
    %2648 = vmatpush.msra.mxu0 %v253
    %2649 = vmatpush.msra.mxu0 %v245
    %2650 = vmatpush.msra.mxu0 %v237
    %2651 = vmatpush.msra.mxu0 %v229
    %2652 = vmatpush.msra.mxu0 %v221
    %2653 = vmatpush.msra.mxu0 %v213
    %2654 = vmatpush.msra.mxu0 %v205
    %2655 = vmatmul.f32.gmra.mxu0 %v2618
    %v2656 = vpop.f32.mrf.mxu0
    %v2657 = vadd.f32 %v2637, %v2656
    %2658 = vdwg.mxu0
    %2659 = vmatpush.msra.mxu0 %v198
    %2660 = vmatpush.msra.mxu0 %v190
    %2661 = vmatpush.msra.mxu0 %v182
    %2662 = vmatpush.msra.mxu0 %v174
    %2663 = vmatpush.msra.mxu0 %v166
    %2664 = vmatpush.msra.mxu0 %v158
    %2665 = vmatpush.msra.mxu0 %v150
    %2666 = vmatpush.msra.mxu0 %v142
    %2667 = vmatpush.msra.mxu0 %v134
    %2668 = vmatpush.msra.mxu0 %v126
    %2669 = vmatpush.msra.mxu0 %v118
    %2670 = vmatpush.msra.mxu0 %v110
    %2671 = vmatpush.msra.mxu0 %v102
    %2672 = vmatpush.msra.mxu0 %v94
    %2673 = vmatpush.msra.mxu0 %v86
    %2674 = vmatpush.msra.mxu0 %v78
    %2675 = vmatmul.f32.gmra.mxu0 %v2471
    %v2676 = vpop.f32.mrf.mxu0
    %v2677 = vadd.f32 0.0, %v2676
    %2678 = vdwg.mxu0
    %2679 = vmatpush.msra.mxu0 %v326
    %2680 = vmatpush.msra.mxu0 %v318
    %2681 = vmatpush.msra.mxu0 %v310
    %2682 = vmatpush.msra.mxu0 %v302
    %2683 = vmatpush.msra.mxu0 %v294
    %2684 = vmatpush.msra.mxu0 %v286
    %2685 = vmatpush.msra.mxu0 %v278
    %2686 = vmatpush.msra.mxu0 %v270
    %2687 = vmatpush.msra.mxu0 %v262
    %2688 = vmatpush.msra.mxu0 %v254
    %2689 = vmatpush.msra.mxu0 %v246
    %2690 = vmatpush.msra.mxu0 %v238
    %2691 = vmatpush.msra.mxu0 %v230
    %2692 = vmatpush.msra.mxu0 %v222
    %2693 = vmatpush.msra.mxu0 %v214
    %2694 = vmatpush.msra.mxu0 %v206
    %2695 = vmatmul.f32.gmra.mxu0 %v2618
    %v2696 = vpop.f32.mrf.mxu0
    %v2697 = vadd.f32 %v2677, %v2696
    %2698 = vdwg.mxu0
    %2699 = vmatpush.msra.mxu0 %v199
    %2700 = vmatpush.msra.mxu0 %v191
    %2701 = vmatpush.msra.mxu0 %v183
    %2702 = vmatpush.msra.mxu0 %v175
    %2703 = vmatpush.msra.mxu0 %v167
    %2704 = vmatpush.msra.mxu0 %v159
    %2705 = vmatpush.msra.mxu0 %v151
    %2706 = vmatpush.msra.mxu0 %v143
    %2707 = vmatpush.msra.mxu0 %v135
    %2708 = vmatpush.msra.mxu0 %v127
    %2709 = vmatpush.msra.mxu0 %v119
    %2710 = vmatpush.msra.mxu0 %v111
    %2711 = vmatpush.msra.mxu0 %v103
    %2712 = vmatpush.msra.mxu0 %v95
    %2713 = vmatpush.msra.mxu0 %v87
    %2714 = vmatpush.msra.mxu0 %v79
    %2715 = vmatmul.f32.gmra.mxu0 %v2471
    %v2716 = vpop.f32.mrf.mxu0
    %v2717 = vadd.f32 0.0, %v2716
    %2718 = vdwg.mxu0
    %2719 = vmatpush.msra.mxu0 %v327
    %2720 = vmatpush.msra.mxu0 %v319
    %2721 = vmatpush.msra.mxu0 %v311
    %2722 = vmatpush.msra.mxu0 %v303
    %2723 = vmatpush.msra.mxu0 %v295
    %2724 = vmatpush.msra.mxu0 %v287
    %2725 = vmatpush.msra.mxu0 %v279
    %2726 = vmatpush.msra.mxu0 %v271
    %2727 = vmatpush.msra.mxu0 %v263
    %2728 = vmatpush.msra.mxu0 %v255
    %2729 = vmatpush.msra.mxu0 %v247
    %2730 = vmatpush.msra.mxu0 %v239
    %2731 = vmatpush.msra.mxu0 %v231
    %2732 = vmatpush.msra.mxu0 %v223
    %2733 = vmatpush.msra.mxu0 %v215
    %2734 = vmatpush.msra.mxu0 %v207
    %2735 = vmatmul.f32.gmra.mxu0 %v2618
    %v2736 = vpop.f32.mrf.mxu0
    %v2737 = vadd.f32 %v2717, %v2736
    %2738 = vdwg.mxu0
    %2739 = vmatpush.msra.mxu0 %v200
    %2740 = vmatpush.msra.mxu0 %v192
    %2741 = vmatpush.msra.mxu0 %v184
    %2742 = vmatpush.msra.mxu0 %v176
    %2743 = vmatpush.msra.mxu0 %v168
    %2744 = vmatpush.msra.mxu0 %v160
    %2745 = vmatpush.msra.mxu0 %v152
    %2746 = vmatpush.msra.mxu0 %v144
    %2747 = vmatpush.msra.mxu0 %v136
    %2748 = vmatpush.msra.mxu0 %v128
    %2749 = vmatpush.msra.mxu0 %v120
    %2750 = vmatpush.msra.mxu0 %v112
    %2751 = vmatpush.msra.mxu0 %v104
    %2752 = vmatpush.msra.mxu0 %v96
    %2753 = vmatpush.msra.mxu0 %v88
    %2754 = vmatpush.msra.mxu0 %v80
    %2755 = vmatmul.f32.gmra.mxu0 %v2471
    %v2756 = vpop.f32.mrf.mxu0
    %v2757 = vadd.f32 0.0, %v2756
    %2758 = vdwg.mxu0
    %2759 = vmatpush.msra.mxu0 %v328
    %2760 = vmatpush.msra.mxu0 %v320
    %2761 = vmatpush.msra.mxu0 %v312
    %2762 = vmatpush.msra.mxu0 %v304
    %2763 = vmatpush.msra.mxu0 %v296
    %2764 = vmatpush.msra.mxu0 %v288
    %2765 = vmatpush.msra.mxu0 %v280
    %2766 = vmatpush.msra.mxu0 %v272
    %2767 = vmatpush.msra.mxu0 %v264
    %2768 = vmatpush.msra.mxu0 %v256
    %2769 = vmatpush.msra.mxu0 %v248
    %2770 = vmatpush.msra.mxu0 %v240
    %2771 = vmatpush.msra.mxu0 %v232
    %2772 = vmatpush.msra.mxu0 %v224
    %2773 = vmatpush.msra.mxu0 %v216
    %2774 = vmatpush.msra.mxu0 %v208
    %2775 = vmatmul.f32.gmra.mxu0 %v2618
    %v2776 = vpop.f32.mrf.mxu0
    %v2777 = vadd.f32 %v2757, %v2776
    %2778 = vdwg.mxu0
    %2779 = vmatpush.msra.mxu0 %v201
    %2780 = vmatpush.msra.mxu0 %v193
    %2781 = vmatpush.msra.mxu0 %v185
    %2782 = vmatpush.msra.mxu0 %v177
    %2783 = vmatpush.msra.mxu0 %v169
    %2784 = vmatpush.msra.mxu0 %v161
    %2785 = vmatpush.msra.mxu0 %v153
    %2786 = vmatpush.msra.mxu0 %v145
    %2787 = vmatpush.msra.mxu0 %v137
    %2788 = vmatpush.msra.mxu0 %v129
    %2789 = vmatpush.msra.mxu0 %v121
    %2790 = vmatpush.msra.mxu0 %v113
    %2791 = vmatpush.msra.mxu0 %v105
    %2792 = vmatpush.msra.mxu0 %v97
    %2793 = vmatpush.msra.mxu0 %v89
    %2794 = vmatpush.msra.mxu0 %v81
    %2795 = vmatmul.f32.gmra.mxu0 %v2471
    %v2796 = vpop.f32.mrf.mxu0
    %v2797 = vadd.f32 0.0, %v2796
    %2798 = vdwg.mxu0
    %2799 = vmatpush.msra.mxu0 %v329
    %2800 = vmatpush.msra.mxu0 %v321
    %2801 = vmatpush.msra.mxu0 %v313
    %2802 = vmatpush.msra.mxu0 %v305
    %2803 = vmatpush.msra.mxu0 %v297
    %2804 = vmatpush.msra.mxu0 %v289
    %2805 = vmatpush.msra.mxu0 %v281
    %2806 = vmatpush.msra.mxu0 %v273
    %2807 = vmatpush.msra.mxu0 %v265
    %2808 = vmatpush.msra.mxu0 %v257
    %2809 = vmatpush.msra.mxu0 %v249
    %2810 = vmatpush.msra.mxu0 %v241
    %2811 = vmatpush.msra.mxu0 %v233
    %2812 = vmatpush.msra.mxu0 %v225
    %2813 = vmatpush.msra.mxu0 %v217
    %2814 = vmatpush.msra.mxu0 %v209
    %2815 = vmatmul.f32.gmra.mxu0 %v2618
    %v2816 = vpop.f32.mrf.mxu0
    %v2817 = vadd.f32 %v2797, %v2816
    %2818 = vdwg.mxu0
    %2819 = vmatpush.msra.mxu0 %v202
    %2820 = vmatpush.msra.mxu0 %v194
    %2821 = vmatpush.msra.mxu0 %v186
    %2822 = vmatpush.msra.mxu0 %v178
    %2823 = vmatpush.msra.mxu0 %v170
    %2824 = vmatpush.msra.mxu0 %v162
    %2825 = vmatpush.msra.mxu0 %v154
    %2826 = vmatpush.msra.mxu0 %v146
    %2827 = vmatpush.msra.mxu0 %v138
    %2828 = vmatpush.msra.mxu0 %v130
    %2829 = vmatpush.msra.mxu0 %v122
    %2830 = vmatpush.msra.mxu0 %v114
    %2831 = vmatpush.msra.mxu0 %v106
    %2832 = vmatpush.msra.mxu0 %v98
    %2833 = vmatpush.msra.mxu0 %v90
    %2834 = vmatpush.msra.mxu0 %v82
    %2835 = vmatmul.f32.gmra.mxu0 %v2471
    %v2836 = vpop.f32.mrf.mxu0
    %v2837 = vadd.f32 0.0, %v2836
    %2838 = vdwg.mxu0
    %2839 = vmatpush.msra.mxu0 %v330
    %2840 = vmatpush.msra.mxu0 %v322
    %2841 = vmatpush.msra.mxu0 %v314
    %2842 = vmatpush.msra.mxu0 %v306
    %2843 = vmatpush.msra.mxu0 %v298
    %2844 = vmatpush.msra.mxu0 %v290
    %2845 = vmatpush.msra.mxu0 %v282
    %2846 = vmatpush.msra.mxu0 %v274
    %2847 = vmatpush.msra.mxu0 %v266
    %2848 = vmatpush.msra.mxu0 %v258
    %2849 = vmatpush.msra.mxu0 %v250
    %2850 = vmatpush.msra.mxu0 %v242
    %2851 = vmatpush.msra.mxu0 %v234
    %2852 = vmatpush.msra.mxu0 %v226
    %2853 = vmatpush.msra.mxu0 %v218
    %2854 = vmatpush.msra.mxu0 %v210
    %2855 = vmatmul.f32.gmra.mxu0 %v2618
    %v2856 = vpop.f32.mrf.mxu0
    %v2857 = vadd.f32 %v2837, %v2856
    %2858 = vdwg.mxu0
    %2859 = vmatpush.msra.mxu0 %v203
    %2860 = vmatpush.msra.mxu0 %v195
    %2861 = vmatpush.msra.mxu0 %v187
    %2862 = vmatpush.msra.mxu0 %v179
    %2863 = vmatpush.msra.mxu0 %v171
    %2864 = vmatpush.msra.mxu0 %v163
    %2865 = vmatpush.msra.mxu0 %v155
    %2866 = vmatpush.msra.mxu0 %v147
    %2867 = vmatpush.msra.mxu0 %v139
    %2868 = vmatpush.msra.mxu0 %v131
    %2869 = vmatpush.msra.mxu0 %v123
    %2870 = vmatpush.msra.mxu0 %v115
    %2871 = vmatpush.msra.mxu0 %v107
    %2872 = vmatpush.msra.mxu0 %v99
    %2873 = vmatpush.msra.mxu0 %v91
    %2874 = vmatpush.msra.mxu0 %v83
    %2875 = vmatmul.f32.gmra.mxu0 %v2471
    %v2876 = vpop.f32.mrf.mxu0
    %v2877 = vadd.f32 0.0, %v2876
    %2878 = vdwg.mxu0
    %2879 = vmatpush.msra.mxu0 %v331
    %2880 = vmatpush.msra.mxu0 %v323
    %2881 = vmatpush.msra.mxu0 %v315
    %2882 = vmatpush.msra.mxu0 %v307
    %2883 = vmatpush.msra.mxu0 %v299
    %2884 = vmatpush.msra.mxu0 %v291
    %2885 = vmatpush.msra.mxu0 %v283
    %2886 = vmatpush.msra.mxu0 %v275
    %2887 = vmatpush.msra.mxu0 %v267
    %2888 = vmatpush.msra.mxu0 %v259
    %2889 = vmatpush.msra.mxu0 %v251
    %2890 = vmatpush.msra.mxu0 %v243
    %2891 = vmatpush.msra.mxu0 %v235
    %2892 = vmatpush.msra.mxu0 %v227
    %2893 = vmatpush.msra.mxu0 %v219
    %2894 = vmatpush.msra.mxu0 %v211
    %2895 = vmatmul.f32.gmra.mxu0 %v2618
    %v2896 = vpop.f32.mrf.mxu0
    %v2897 = vadd.f32 %v2877, %v2896
    %2898 = vdwg.mxu0
    %2899 = vmatpush.msra.mxu0 %v204
    %2900 = vmatpush.msra.mxu0 %v196
    %2901 = vmatpush.msra.mxu0 %v188
    %2902 = vmatpush.msra.mxu0 %v180
    %2903 = vmatpush.msra.mxu0 %v172
    %2904 = vmatpush.msra.mxu0 %v164
    %2905 = vmatpush.msra.mxu0 %v156
    %2906 = vmatpush.msra.mxu0 %v148
    %2907 = vmatpush.msra.mxu0 %v140
    %2908 = vmatpush.msra.mxu0 %v132
    %2909 = vmatpush.msra.mxu0 %v124
    %2910 = vmatpush.msra.mxu0 %v116
    %2911 = vmatpush.msra.mxu0 %v108
    %2912 = vmatpush.msra.mxu0 %v100
    %2913 = vmatpush.msra.mxu0 %v92
    %2914 = vmatpush.msra.mxu0 %v84
    %2915 = vmatmul.f32.gmra.mxu0 %v2471
    %v2916 = vpop.f32.mrf.mxu0
    %v2917 = vadd.f32 0.0, %v2916
    %2918 = vdwg.mxu0
    %2919 = vmatpush.msra.mxu0 %v332
    %2920 = vmatpush.msra.mxu0 %v324
    %2921 = vmatpush.msra.mxu0 %v316
    %2922 = vmatpush.msra.mxu0 %v308
    %2923 = vmatpush.msra.mxu0 %v300
    %2924 = vmatpush.msra.mxu0 %v292
    %2925 = vmatpush.msra.mxu0 %v284
    %2926 = vmatpush.msra.mxu0 %v276
    %2927 = vmatpush.msra.mxu0 %v268
    %2928 = vmatpush.msra.mxu0 %v260
    %2929 = vmatpush.msra.mxu0 %v252
    %2930 = vmatpush.msra.mxu0 %v244
    %2931 = vmatpush.msra.mxu0 %v236
    %2932 = vmatpush.msra.mxu0 %v228
    %2933 = vmatpush.msra.mxu0 %v220
    %2934 = vmatpush.msra.mxu0 %v212
    %2935 = vmatmul.f32.gmra.mxu0 %v2618
    %v2936 = vpop.f32.mrf.mxu0
    %v2937 = vadd.f32 %v2917, %v2936
    %2938 = vdwg.mxu0
    %s2939 = scalar_lea.vmem %s0, 8
    %v2940 = vld [vmem:[%s2939] sm:$0x3]
    %2942 = vset.pattern.permute.xlu0 0
    %2943 = vperm.xlu0 %2942, %v2940
    %v2944 = vpop.permute.xlu0 %2943
    %v2946 = vmul.f32 %v2944, %v660
    %v2947 = vmul.f32 %v2944, %v661
    %v2948 = vmul.f32 %v2944, %v662
    %v2949 = vmul.f32 %v2944, %v663
    %v2950 = vadd.f32 %v2946, %v673
    %v2951 = vadd.f32 %v2947, %v674
    %v2952 = vadd.f32 %v2948, %v675
    %v2953 = vadd.f32 %v2949, %v676
    %v2954 = vadd.f32 %v2950, %v2657
    %v2955 = vadd.f32 %v2951, %v2697
    %v2956 = vadd.f32 %v2952, %v2737
    %v2957 = vadd.f32 %v2953, %v2777
    %v2958 = vxor.u32 %v2954, 2147483648
    %v2959 = vxor.u32 %v2955, 2147483648
    %v2960 = vxor.u32 %v2956, 2147483648
    %v2961 = vmul.f32 %v2958, 1.442695
    %v2962 = vpow.pop %v2961
    %v2963 = vmul.f32 %v2959, 1.442695
    %v2964 = vpow.pop %v2963
    %v2965 = vmul.f32 %v2960, 1.442695
    %v2966 = vpow.pop %v2965
    %v2967 = vadd.f32 %v2962, 1.0
    %v2968 = vadd.f32 %v2964, 1.0
    %v2969 = vadd.f32 %v2966, 1.0
    %v2970 = vrcp.pop %v2967
    %v2971 = vmul.f32 %v2967, %v2970
    %v2972 = vsub.f32 1.0, %v2971
    %v2973 = vmul.f32 %v2970, %v2972
    %v2974 = vadd.f32 %v2970, %v2973
    %vm2975 = vweird.f32 %v2967
    %vm2976 = vweird.f32 %v2970
    %vm2977 = vmor %vm2975, %vm2976
    %v2978 = vsel %vm2977, %v2970, %v2974
    %v2979 = vand.u32 2147483647, %v2967
    %vm2980 = vcmp.eq.f32.partialorder %v2979, 8.507059e+37
    %v2981 = vand.u32 %v2967, 2147483648
    %v2982 = vor.u32 1.1754944e-38, %v2981
    %v2983 = vsel %vm2980, %v2982, %v2978
    %v2984 = vmul.f32 1.0, %v2983
    %v2985 = vrcp.pop %v2968
    %v2986 = vmul.f32 %v2968, %v2985
    %v2987 = vsub.f32 1.0, %v2986
    %v2988 = vmul.f32 %v2985, %v2987
    %v2989 = vadd.f32 %v2985, %v2988
    %vm2990 = vweird.f32 %v2968
    %vm2991 = vweird.f32 %v2985
    %vm2992 = vmor %vm2990, %vm2991
    %v2993 = vsel %vm2992, %v2985, %v2989
    %v2994 = vand.u32 2147483647, %v2968
    %vm2995 = vcmp.eq.f32.partialorder %v2994, 8.507059e+37
    %v2996 = vand.u32 %v2968, 2147483648
    %v2997 = vor.u32 1.1754944e-38, %v2996
    %v2998 = vsel %vm2995, %v2997, %v2993
    %v2999 = vmul.f32 1.0, %v2998
    %v3000 = vrcp.pop %v2969
    %v3001 = vmul.f32 %v2969, %v3000
    %v3002 = vsub.f32 1.0, %v3001
    %v3003 = vmul.f32 %v3000, %v3002
    %v3004 = vadd.f32 %v3000, %v3003
    %vm3005 = vweird.f32 %v2969
    %vm3006 = vweird.f32 %v3000
    %vm3007 = vmor %vm3005, %vm3006
    %v3008 = vsel %vm3007, %v3000, %v3004
    %v3009 = vand.u32 2147483647, %v2969
    %vm3010 = vcmp.eq.f32.partialorder %v3009, 8.507059e+37
    %v3011 = vand.u32 %v2969, 2147483648
    %v3012 = vor.u32 1.1754944e-38, %v3011
    %v3013 = vsel %vm3010, %v3012, %v3008
    %v3014 = vmul.f32 1.0, %v3013
    %v3015 = vtanh.pop %v2957
    %v3016 = vmul.f32 %v2999, %v2469
    %v3017 = vmul.f32 %v2984, %v3015
    %v3018 = vadd.f32 %v3016, %v3017
    %v3019 = vtanh.pop %v3018
    %v3020 = vmul.f32 %v3014, %v3019
    %3021 = vmatpush.msra.mxu0 %v812
    %3022 = vmatpush.msra.mxu0 %v808
    %3023 = vmatpush.msra.mxu0 %v804
    %3024 = vmatpush.msra.mxu0 %v800
    %3025 = vmatpush.msra.mxu0 %v796
    %3026 = vmatpush.msra.mxu0 %v792
    %3027 = vmatpush.msra.mxu0 %v788
    %3028 = vmatpush.msra.mxu0 %v784
    %3029 = vmatpush.msra.mxu0 %v780
    %3030 = vmatpush.msra.mxu0 %v776
    %3031 = vmatpush.msra.mxu0 %v772
    %3032 = vmatpush.msra.mxu0 %v768
    %3033 = vmatpush.msra.mxu0 %v764
    %3034 = vmatpush.msra.mxu0 %v760
    %3035 = vmatpush.msra.mxu0 %v756
    %3036 = vmatpush.msra.mxu0 %v752
    %3037 = vmatmul.f32.gmra.mxu0 %v3020
    %v3038 = vpop.f32.mrf.mxu0
    %v3039 = vadd.f32 %v817, %v3038
    %3040 = vdwg.mxu0
    %3041 = vmatpush.msra.mxu0 %v813
    %3042 = vmatpush.msra.mxu0 %v809
    %3043 = vmatpush.msra.mxu0 %v805
    %3044 = vmatpush.msra.mxu0 %v801
    %3045 = vmatpush.msra.mxu0 %v797
    %3046 = vmatpush.msra.mxu0 %v793
    %3047 = vmatpush.msra.mxu0 %v789
    %3048 = vmatpush.msra.mxu0 %v785
    %3049 = vmatpush.msra.mxu0 %v781
    %3050 = vmatpush.msra.mxu0 %v777
    %3051 = vmatpush.msra.mxu0 %v773
    %3052 = vmatpush.msra.mxu0 %v769
    %3053 = vmatpush.msra.mxu0 %v765
    %3054 = vmatpush.msra.mxu0 %v761
    %3055 = vmatpush.msra.mxu0 %v757
    %3056 = vmatpush.msra.mxu0 %v753
    %3057 = vmatmul.f32.gmra.mxu0 %v3020
    %v3058 = vpop.f32.mrf.mxu0
    %v3059 = vadd.f32 %v818, %v3058
    %3060 = vdwg.mxu0
    %3061 = vmatpush.msra.mxu0 %v814
    %3062 = vmatpush.msra.mxu0 %v810
    %3063 = vmatpush.msra.mxu0 %v806
    %3064 = vmatpush.msra.mxu0 %v802
    %3065 = vmatpush.msra.mxu0 %v798
    %3066 = vmatpush.msra.mxu0 %v794
    %3067 = vmatpush.msra.mxu0 %v790
    %3068 = vmatpush.msra.mxu0 %v786
    %3069 = vmatpush.msra.mxu0 %v782
    %3070 = vmatpush.msra.mxu0 %v778
    %3071 = vmatpush.msra.mxu0 %v774
    %3072 = vmatpush.msra.mxu0 %v770
    %3073 = vmatpush.msra.mxu0 %v766
    %3074 = vmatpush.msra.mxu0 %v762
    %3075 = vmatpush.msra.mxu0 %v758
    %3076 = vmatpush.msra.mxu0 %v754
    %3077 = vmatmul.f32.gmra.mxu0 %v3020
    %v3078 = vpop.f32.mrf.mxu0
    %v3079 = vadd.f32 %v819, %v3078
    %3080 = vdwg.mxu0
    %3081 = vmatpush.msra.mxu0 %v815
    %3082 = vmatpush.msra.mxu0 %v811
    %3083 = vmatpush.msra.mxu0 %v807
    %3084 = vmatpush.msra.mxu0 %v803
    %3085 = vmatpush.msra.mxu0 %v799
    %3086 = vmatpush.msra.mxu0 %v795
    %3087 = vmatpush.msra.mxu0 %v791
    %3088 = vmatpush.msra.mxu0 %v787
    %3089 = vmatpush.msra.mxu0 %v783
    %3090 = vmatpush.msra.mxu0 %v779
    %3091 = vmatpush.msra.mxu0 %v775
    %3092 = vmatpush.msra.mxu0 %v771
    %3093 = vmatpush.msra.mxu0 %v767
    %3094 = vmatpush.msra.mxu0 %v763
    %3095 = vmatpush.msra.mxu0 %v759
    %3096 = vmatpush.msra.mxu0 %v755
    %3097 = vmatmul.f32.gmra.mxu0 %v3020
    %v3098 = vpop.f32.mrf.mxu0
    %v3099 = vadd.f32 %v820, %v3098
    %3100 = vdwg.mxu0
    %v3101 = vadd.f32 %v3039, %v2817
    %v3102 = vadd.f32 %v3059, %v2857
    %v3103 = vadd.f32 %v3079, %v2897
    %v3104 = vadd.f32 %v3099, %v2937
    %v3105 = vxor.u32 %v3101, 2147483648
    %v3106 = vxor.u32 %v3102, 2147483648
    %v3107 = vxor.u32 %v3103, 2147483648
    %v3108 = vmul.f32 %v3105, 1.442695
    %v3109 = vpow.pop %v3108
    %v3110 = vmul.f32 %v3106, 1.442695
    %v3111 = vpow.pop %v3110
    %v3112 = vmul.f32 %v3107, 1.442695
    %v3113 = vpow.pop %v3112
    %v3114 = vadd.f32 %v3109, 1.0
    %v3115 = vadd.f32 %v3111, 1.0
    %v3116 = vadd.f32 %v3113, 1.0
    %v3117 = vrcp.pop %v3114
    %v3118 = vmul.f32 %v3114, %v3117
    %v3119 = vsub.f32 1.0, %v3118
    %v3120 = vmul.f32 %v3117, %v3119
    %v3121 = vadd.f32 %v3117, %v3120
    %vm3122 = vweird.f32 %v3114
    %vm3123 = vweird.f32 %v3117
    %vm3124 = vmor %vm3122, %vm3123
    %v3125 = vsel %vm3124, %v3117, %v3121
    %v3126 = vand.u32 2147483647, %v3114
    %vm3127 = vcmp.eq.f32.partialorder %v3126, 8.507059e+37
    %v3128 = vand.u32 %v3114, 2147483648
    %v3129 = vor.u32 1.1754944e-38, %v3128
    %v3130 = vsel %vm3127, %v3129, %v3125
    %v3131 = vmul.f32 1.0, %v3130
    %v3132 = vrcp.pop %v3115
    %v3133 = vmul.f32 %v3115, %v3132
    %v3134 = vsub.f32 1.0, %v3133
    %v3135 = vmul.f32 %v3132, %v3134
    %v3136 = vadd.f32 %v3132, %v3135
    %vm3137 = vweird.f32 %v3115
    %vm3138 = vweird.f32 %v3132
    %vm3139 = vmor %vm3137, %vm3138
    %v3140 = vsel %vm3139, %v3132, %v3136
    %v3141 = vand.u32 2147483647, %v3115
    %vm3142 = vcmp.eq.f32.partialorder %v3141, 8.507059e+37
    %v3143 = vand.u32 %v3115, 2147483648
    %v3144 = vor.u32 1.1754944e-38, %v3143
    %v3145 = vsel %vm3142, %v3144, %v3140
    %v3146 = vmul.f32 1.0, %v3145
    %v3147 = vrcp.pop %v3116
    %v3148 = vmul.f32 %v3116, %v3147
    %v3149 = vsub.f32 1.0, %v3148
    %v3150 = vmul.f32 %v3147, %v3149
    %v3151 = vadd.f32 %v3147, %v3150
    %vm3152 = vweird.f32 %v3116
    %vm3153 = vweird.f32 %v3147
    %vm3154 = vmor %vm3152, %vm3153
    %v3155 = vsel %vm3154, %v3147, %v3151
    %v3156 = vand.u32 2147483647, %v3116
    %vm3157 = vcmp.eq.f32.partialorder %v3156, 8.507059e+37
    %v3158 = vand.u32 %v3116, 2147483648
    %v3159 = vor.u32 1.1754944e-38, %v3158
    %v3160 = vsel %vm3157, %v3159, %v3155
    %v3161 = vmul.f32 1.0, %v3160
    %v3162 = vtanh.pop %v3104
    %v3163 = vmul.f32 %v3146, %v2616
    %v3164 = vmul.f32 %v3131, %v3162
    %v3165 = vadd.f32 %v3163, %v3164
    %v3166 = vtanh.pop %v3165
    %v3167 = vmul.f32 %v3161, %v3166
    %3168 = vmatpush.msra.mxu0 %v197
    %3169 = vmatpush.msra.mxu0 %v189
    %3170 = vmatpush.msra.mxu0 %v181
    %3171 = vmatpush.msra.mxu0 %v173
    %3172 = vmatpush.msra.mxu0 %v165
    %3173 = vmatpush.msra.mxu0 %v157
    %3174 = vmatpush.msra.mxu0 %v149
    %3175 = vmatpush.msra.mxu0 %v141
    %3176 = vmatpush.msra.mxu0 %v133
    %3177 = vmatpush.msra.mxu0 %v125
    %3178 = vmatpush.msra.mxu0 %v117
    %3179 = vmatpush.msra.mxu0 %v109
    %3180 = vmatpush.msra.mxu0 %v101
    %3181 = vmatpush.msra.mxu0 %v93
    %3182 = vmatpush.msra.mxu0 %v85
    %3183 = vmatpush.msra.mxu0 %v77
    %3184 = vmatmul.f32.gmra.mxu0 %v3020
    %v3185 = vpop.f32.mrf.mxu0
    %v3186 = vadd.f32 0.0, %v3185
    %3187 = vdwg.mxu0
    %3188 = vmatpush.msra.mxu0 %v325
    %3189 = vmatpush.msra.mxu0 %v317
    %3190 = vmatpush.msra.mxu0 %v309
    %3191 = vmatpush.msra.mxu0 %v301
    %3192 = vmatpush.msra.mxu0 %v293
    %3193 = vmatpush.msra.mxu0 %v285
    %3194 = vmatpush.msra.mxu0 %v277
    %3195 = vmatpush.msra.mxu0 %v269
    %3196 = vmatpush.msra.mxu0 %v261
    %3197 = vmatpush.msra.mxu0 %v253
    %3198 = vmatpush.msra.mxu0 %v245
    %3199 = vmatpush.msra.mxu0 %v237
    %3200 = vmatpush.msra.mxu0 %v229
    %3201 = vmatpush.msra.mxu0 %v221
    %3202 = vmatpush.msra.mxu0 %v213
    %3203 = vmatpush.msra.mxu0 %v205
    %3204 = vmatmul.f32.gmra.mxu0 %v3167
    %v3205 = vpop.f32.mrf.mxu0
    %v3206 = vadd.f32 %v3186, %v3205
    %3207 = vdwg.mxu0
    %3208 = vmatpush.msra.mxu0 %v198
    %3209 = vmatpush.msra.mxu0 %v190
    %3210 = vmatpush.msra.mxu0 %v182
    %3211 = vmatpush.msra.mxu0 %v174
    %3212 = vmatpush.msra.mxu0 %v166
    %3213 = vmatpush.msra.mxu0 %v158
    %3214 = vmatpush.msra.mxu0 %v150
    %3215 = vmatpush.msra.mxu0 %v142
    %3216 = vmatpush.msra.mxu0 %v134
    %3217 = vmatpush.msra.mxu0 %v126
    %3218 = vmatpush.msra.mxu0 %v118
    %3219 = vmatpush.msra.mxu0 %v110
    %3220 = vmatpush.msra.mxu0 %v102
    %3221 = vmatpush.msra.mxu0 %v94
    %3222 = vmatpush.msra.mxu0 %v86
    %3223 = vmatpush.msra.mxu0 %v78
    %3224 = vmatmul.f32.gmra.mxu0 %v3020
    %v3225 = vpop.f32.mrf.mxu0
    %v3226 = vadd.f32 0.0, %v3225
    %3227 = vdwg.mxu0
    %3228 = vmatpush.msra.mxu0 %v326
    %3229 = vmatpush.msra.mxu0 %v318
    %3230 = vmatpush.msra.mxu0 %v310
    %3231 = vmatpush.msra.mxu0 %v302
    %3232 = vmatpush.msra.mxu0 %v294
    %3233 = vmatpush.msra.mxu0 %v286
    %3234 = vmatpush.msra.mxu0 %v278
    %3235 = vmatpush.msra.mxu0 %v270
    %3236 = vmatpush.msra.mxu0 %v262
    %3237 = vmatpush.msra.mxu0 %v254
    %3238 = vmatpush.msra.mxu0 %v246
    %3239 = vmatpush.msra.mxu0 %v238
    %3240 = vmatpush.msra.mxu0 %v230
    %3241 = vmatpush.msra.mxu0 %v222
    %3242 = vmatpush.msra.mxu0 %v214
    %3243 = vmatpush.msra.mxu0 %v206
    %3244 = vmatmul.f32.gmra.mxu0 %v3167
    %v3245 = vpop.f32.mrf.mxu0
    %v3246 = vadd.f32 %v3226, %v3245
    %3247 = vdwg.mxu0
    %3248 = vmatpush.msra.mxu0 %v199
    %3249 = vmatpush.msra.mxu0 %v191
    %3250 = vmatpush.msra.mxu0 %v183
    %3251 = vmatpush.msra.mxu0 %v175
    %3252 = vmatpush.msra.mxu0 %v167
    %3253 = vmatpush.msra.mxu0 %v159
    %3254 = vmatpush.msra.mxu0 %v151
    %3255 = vmatpush.msra.mxu0 %v143
    %3256 = vmatpush.msra.mxu0 %v135
    %3257 = vmatpush.msra.mxu0 %v127
    %3258 = vmatpush.msra.mxu0 %v119
    %3259 = vmatpush.msra.mxu0 %v111
    %3260 = vmatpush.msra.mxu0 %v103
    %3261 = vmatpush.msra.mxu0 %v95
    %3262 = vmatpush.msra.mxu0 %v87
    %3263 = vmatpush.msra.mxu0 %v79
    %3264 = vmatmul.f32.gmra.mxu0 %v3020
    %v3265 = vpop.f32.mrf.mxu0
    %v3266 = vadd.f32 0.0, %v3265
    %3267 = vdwg.mxu0
    %3268 = vmatpush.msra.mxu0 %v327
    %3269 = vmatpush.msra.mxu0 %v319
    %3270 = vmatpush.msra.mxu0 %v311
    %3271 = vmatpush.msra.mxu0 %v303
    %3272 = vmatpush.msra.mxu0 %v295
    %3273 = vmatpush.msra.mxu0 %v287
    %3274 = vmatpush.msra.mxu0 %v279
    %3275 = vmatpush.msra.mxu0 %v271
    %3276 = vmatpush.msra.mxu0 %v263
    %3277 = vmatpush.msra.mxu0 %v255
    %3278 = vmatpush.msra.mxu0 %v247
    %3279 = vmatpush.msra.mxu0 %v239
    %3280 = vmatpush.msra.mxu0 %v231
    %3281 = vmatpush.msra.mxu0 %v223
    %3282 = vmatpush.msra.mxu0 %v215
    %3283 = vmatpush.msra.mxu0 %v207
    %3284 = vmatmul.f32.gmra.mxu0 %v3167
    %v3285 = vpop.f32.mrf.mxu0
    %v3286 = vadd.f32 %v3266, %v3285
    %3287 = vdwg.mxu0
    %3288 = vmatpush.msra.mxu0 %v200
    %3289 = vmatpush.msra.mxu0 %v192
    %3290 = vmatpush.msra.mxu0 %v184
    %3291 = vmatpush.msra.mxu0 %v176
    %3292 = vmatpush.msra.mxu0 %v168
    %3293 = vmatpush.msra.mxu0 %v160
    %3294 = vmatpush.msra.mxu0 %v152
    %3295 = vmatpush.msra.mxu0 %v144
    %3296 = vmatpush.msra.mxu0 %v136
    %3297 = vmatpush.msra.mxu0 %v128
    %3298 = vmatpush.msra.mxu0 %v120
    %3299 = vmatpush.msra.mxu0 %v112
    %3300 = vmatpush.msra.mxu0 %v104
    %3301 = vmatpush.msra.mxu0 %v96
    %3302 = vmatpush.msra.mxu0 %v88
    %3303 = vmatpush.msra.mxu0 %v80
    %3304 = vmatmul.f32.gmra.mxu0 %v3020
    %v3305 = vpop.f32.mrf.mxu0
    %v3306 = vadd.f32 0.0, %v3305
    %3307 = vdwg.mxu0
    %3308 = vmatpush.msra.mxu0 %v328
    %3309 = vmatpush.msra.mxu0 %v320
    %3310 = vmatpush.msra.mxu0 %v312
    %3311 = vmatpush.msra.mxu0 %v304
    %3312 = vmatpush.msra.mxu0 %v296
    %3313 = vmatpush.msra.mxu0 %v288
    %3314 = vmatpush.msra.mxu0 %v280
    %3315 = vmatpush.msra.mxu0 %v272
    %3316 = vmatpush.msra.mxu0 %v264
    %3317 = vmatpush.msra.mxu0 %v256
    %3318 = vmatpush.msra.mxu0 %v248
    %3319 = vmatpush.msra.mxu0 %v240
    %3320 = vmatpush.msra.mxu0 %v232
    %3321 = vmatpush.msra.mxu0 %v224
    %3322 = vmatpush.msra.mxu0 %v216
    %3323 = vmatpush.msra.mxu0 %v208
    %3324 = vmatmul.f32.gmra.mxu0 %v3167
    %v3325 = vpop.f32.mrf.mxu0
    %v3326 = vadd.f32 %v3306, %v3325
    %3327 = vdwg.mxu0
    %3328 = vmatpush.msra.mxu0 %v201
    %3329 = vmatpush.msra.mxu0 %v193
    %3330 = vmatpush.msra.mxu0 %v185
    %3331 = vmatpush.msra.mxu0 %v177
    %3332 = vmatpush.msra.mxu0 %v169
    %3333 = vmatpush.msra.mxu0 %v161
    %3334 = vmatpush.msra.mxu0 %v153
    %3335 = vmatpush.msra.mxu0 %v145
    %3336 = vmatpush.msra.mxu0 %v137
    %3337 = vmatpush.msra.mxu0 %v129
    %3338 = vmatpush.msra.mxu0 %v121
    %3339 = vmatpush.msra.mxu0 %v113
    %3340 = vmatpush.msra.mxu0 %v105
    %3341 = vmatpush.msra.mxu0 %v97
    %3342 = vmatpush.msra.mxu0 %v89
    %3343 = vmatpush.msra.mxu0 %v81
    %3344 = vmatmul.f32.gmra.mxu0 %v3020
    %v3345 = vpop.f32.mrf.mxu0
    %v3346 = vadd.f32 0.0, %v3345
    %3347 = vdwg.mxu0
    %3348 = vmatpush.msra.mxu0 %v329
    %3349 = vmatpush.msra.mxu0 %v321
    %3350 = vmatpush.msra.mxu0 %v313
    %3351 = vmatpush.msra.mxu0 %v305
    %3352 = vmatpush.msra.mxu0 %v297
    %3353 = vmatpush.msra.mxu0 %v289
    %3354 = vmatpush.msra.mxu0 %v281
    %3355 = vmatpush.msra.mxu0 %v273
    %3356 = vmatpush.msra.mxu0 %v265
    %3357 = vmatpush.msra.mxu0 %v257
    %3358 = vmatpush.msra.mxu0 %v249
    %3359 = vmatpush.msra.mxu0 %v241
    %3360 = vmatpush.msra.mxu0 %v233
    %3361 = vmatpush.msra.mxu0 %v225
    %3362 = vmatpush.msra.mxu0 %v217
    %3363 = vmatpush.msra.mxu0 %v209
    %3364 = vmatmul.f32.gmra.mxu0 %v3167
    %v3365 = vpop.f32.mrf.mxu0
    %v3366 = vadd.f32 %v3346, %v3365
    %3367 = vdwg.mxu0
    %3368 = vmatpush.msra.mxu0 %v202
    %3369 = vmatpush.msra.mxu0 %v194
    %3370 = vmatpush.msra.mxu0 %v186
    %3371 = vmatpush.msra.mxu0 %v178
    %3372 = vmatpush.msra.mxu0 %v170
    %3373 = vmatpush.msra.mxu0 %v162
    %3374 = vmatpush.msra.mxu0 %v154
    %3375 = vmatpush.msra.mxu0 %v146
    %3376 = vmatpush.msra.mxu0 %v138
    %3377 = vmatpush.msra.mxu0 %v130
    %3378 = vmatpush.msra.mxu0 %v122
    %3379 = vmatpush.msra.mxu0 %v114
    %3380 = vmatpush.msra.mxu0 %v106
    %3381 = vmatpush.msra.mxu0 %v98
    %3382 = vmatpush.msra.mxu0 %v90
    %3383 = vmatpush.msra.mxu0 %v82
    %3384 = vmatmul.f32.gmra.mxu0 %v3020
    %v3385 = vpop.f32.mrf.mxu0
    %v3386 = vadd.f32 0.0, %v3385
    %3387 = vdwg.mxu0
    %3388 = vmatpush.msra.mxu0 %v330
    %3389 = vmatpush.msra.mxu0 %v322
    %3390 = vmatpush.msra.mxu0 %v314
    %3391 = vmatpush.msra.mxu0 %v306
    %3392 = vmatpush.msra.mxu0 %v298
    %3393 = vmatpush.msra.mxu0 %v290
    %3394 = vmatpush.msra.mxu0 %v282
    %3395 = vmatpush.msra.mxu0 %v274
    %3396 = vmatpush.msra.mxu0 %v266
    %3397 = vmatpush.msra.mxu0 %v258
    %3398 = vmatpush.msra.mxu0 %v250
    %3399 = vmatpush.msra.mxu0 %v242
    %3400 = vmatpush.msra.mxu0 %v234
    %3401 = vmatpush.msra.mxu0 %v226
    %3402 = vmatpush.msra.mxu0 %v218
    %3403 = vmatpush.msra.mxu0 %v210
    %3404 = vmatmul.f32.gmra.mxu0 %v3167
    %v3405 = vpop.f32.mrf.mxu0
    %v3406 = vadd.f32 %v3386, %v3405
    %3407 = vdwg.mxu0
    %3408 = vmatpush.msra.mxu0 %v203
    %3409 = vmatpush.msra.mxu0 %v195
    %3410 = vmatpush.msra.mxu0 %v187
    %3411 = vmatpush.msra.mxu0 %v179
    %3412 = vmatpush.msra.mxu0 %v171
    %3413 = vmatpush.msra.mxu0 %v163
    %3414 = vmatpush.msra.mxu0 %v155
    %3415 = vmatpush.msra.mxu0 %v147
    %3416 = vmatpush.msra.mxu0 %v139
    %3417 = vmatpush.msra.mxu0 %v131
    %3418 = vmatpush.msra.mxu0 %v123
    %3419 = vmatpush.msra.mxu0 %v115
    %3420 = vmatpush.msra.mxu0 %v107
    %3421 = vmatpush.msra.mxu0 %v99
    %3422 = vmatpush.msra.mxu0 %v91
    %3423 = vmatpush.msra.mxu0 %v83
    %3424 = vmatmul.f32.gmra.mxu0 %v3020
    %v3425 = vpop.f32.mrf.mxu0
    %v3426 = vadd.f32 0.0, %v3425
    %3427 = vdwg.mxu0
    %3428 = vmatpush.msra.mxu0 %v331
    %3429 = vmatpush.msra.mxu0 %v323
    %3430 = vmatpush.msra.mxu0 %v315
    %3431 = vmatpush.msra.mxu0 %v307
    %3432 = vmatpush.msra.mxu0 %v299
    %3433 = vmatpush.msra.mxu0 %v291
    %3434 = vmatpush.msra.mxu0 %v283
    %3435 = vmatpush.msra.mxu0 %v275
    %3436 = vmatpush.msra.mxu0 %v267
    %3437 = vmatpush.msra.mxu0 %v259
    %3438 = vmatpush.msra.mxu0 %v251
    %3439 = vmatpush.msra.mxu0 %v243
    %3440 = vmatpush.msra.mxu0 %v235
    %3441 = vmatpush.msra.mxu0 %v227
    %3442 = vmatpush.msra.mxu0 %v219
    %3443 = vmatpush.msra.mxu0 %v211
    %3444 = vmatmul.f32.gmra.mxu0 %v3167
    %v3445 = vpop.f32.mrf.mxu0
    %v3446 = vadd.f32 %v3426, %v3445
    %3447 = vdwg.mxu0
    %3448 = vmatpush.msra.mxu0 %v204
    %3449 = vmatpush.msra.mxu0 %v196
    %3450 = vmatpush.msra.mxu0 %v188
    %3451 = vmatpush.msra.mxu0 %v180
    %3452 = vmatpush.msra.mxu0 %v172
    %3453 = vmatpush.msra.mxu0 %v164
    %3454 = vmatpush.msra.mxu0 %v156
    %3455 = vmatpush.msra.mxu0 %v148
    %3456 = vmatpush.msra.mxu0 %v140
    %3457 = vmatpush.msra.mxu0 %v132
    %3458 = vmatpush.msra.mxu0 %v124
    %3459 = vmatpush.msra.mxu0 %v116
    %3460 = vmatpush.msra.mxu0 %v108
    %3461 = vmatpush.msra.mxu0 %v100
    %3462 = vmatpush.msra.mxu0 %v92
    %3463 = vmatpush.msra.mxu0 %v84
    %3464 = vmatmul.f32.gmra.mxu0 %v3020
    %v3465 = vpop.f32.mrf.mxu0
    %v3466 = vadd.f32 0.0, %v3465
    %3467 = vdwg.mxu0
    %3468 = vmatpush.msra.mxu0 %v332
    %3469 = vmatpush.msra.mxu0 %v324
    %3470 = vmatpush.msra.mxu0 %v316
    %3471 = vmatpush.msra.mxu0 %v308
    %3472 = vmatpush.msra.mxu0 %v300
    %3473 = vmatpush.msra.mxu0 %v292
    %3474 = vmatpush.msra.mxu0 %v284
    %3475 = vmatpush.msra.mxu0 %v276
    %3476 = vmatpush.msra.mxu0 %v268
    %3477 = vmatpush.msra.mxu0 %v260
    %3478 = vmatpush.msra.mxu0 %v252
    %3479 = vmatpush.msra.mxu0 %v244
    %3480 = vmatpush.msra.mxu0 %v236
    %3481 = vmatpush.msra.mxu0 %v228
    %3482 = vmatpush.msra.mxu0 %v220
    %3483 = vmatpush.msra.mxu0 %v212
    %3484 = vmatmul.f32.gmra.mxu0 %v3167
    %v3485 = vpop.f32.mrf.mxu0
    %v3486 = vadd.f32 %v3466, %v3485
    %3487 = vdwg.mxu0
    %s3488 = scalar_lea.vmem %s0, 10
    %v3489 = vld [vmem:[%s3488] sm:$0x3]
    %3491 = vset.pattern.permute.xlu0 0
    %3492 = vperm.xlu0 %3491, %v3489
    %v3493 = vpop.permute.xlu0 %3492
    %v3495 = vmul.f32 %v3493, %v660
    %v3496 = vmul.f32 %v3493, %v661
    %v3497 = vmul.f32 %v3493, %v662
    %v3498 = vmul.f32 %v3493, %v663
    %v3499 = vadd.f32 %v3495, %v673
    %v3500 = vadd.f32 %v3496, %v674
    %v3501 = vadd.f32 %v3497, %v675
    %v3502 = vadd.f32 %v3498, %v676
    %v3503 = vadd.f32 %v3499, %v3206
    %v3504 = vadd.f32 %v3500, %v3246
    %v3505 = vadd.f32 %v3501, %v3286
    %v3506 = vadd.f32 %v3502, %v3326
    %v3507 = vxor.u32 %v3503, 2147483648
    %v3508 = vxor.u32 %v3504, 2147483648
    %v3509 = vxor.u32 %v3505, 2147483648
    %v3510 = vmul.f32 %v3507, 1.442695
    %v3511 = vpow.pop %v3510
    %v3512 = vmul.f32 %v3508, 1.442695
    %v3513 = vpow.pop %v3512
    %v3514 = vmul.f32 %v3509, 1.442695
    %v3515 = vpow.pop %v3514
    %v3516 = vadd.f32 %v3511, 1.0
    %v3517 = vadd.f32 %v3513, 1.0
    %v3518 = vadd.f32 %v3515, 1.0
    %v3519 = vrcp.pop %v3516
    %v3520 = vmul.f32 %v3516, %v3519
    %v3521 = vsub.f32 1.0, %v3520
    %v3522 = vmul.f32 %v3519, %v3521
    %v3523 = vadd.f32 %v3519, %v3522
    %vm3524 = vweird.f32 %v3516
    %vm3525 = vweird.f32 %v3519
    %vm3526 = vmor %vm3524, %vm3525
    %v3527 = vsel %vm3526, %v3519, %v3523
    %v3528 = vand.u32 2147483647, %v3516
    %vm3529 = vcmp.eq.f32.partialorder %v3528, 8.507059e+37
    %v3530 = vand.u32 %v3516, 2147483648
    %v3531 = vor.u32 1.1754944e-38, %v3530
    %v3532 = vsel %vm3529, %v3531, %v3527
    %v3533 = vmul.f32 1.0, %v3532
    %v3534 = vrcp.pop %v3517
    %v3535 = vmul.f32 %v3517, %v3534
    %v3536 = vsub.f32 1.0, %v3535
    %v3537 = vmul.f32 %v3534, %v3536
    %v3538 = vadd.f32 %v3534, %v3537
    %vm3539 = vweird.f32 %v3517
    %vm3540 = vweird.f32 %v3534
    %vm3541 = vmor %vm3539, %vm3540
    %v3542 = vsel %vm3541, %v3534, %v3538
    %v3543 = vand.u32 2147483647, %v3517
    %vm3544 = vcmp.eq.f32.partialorder %v3543, 8.507059e+37
    %v3545 = vand.u32 %v3517, 2147483648
    %v3546 = vor.u32 1.1754944e-38, %v3545
    %v3547 = vsel %vm3544, %v3546, %v3542
    %v3548 = vmul.f32 1.0, %v3547
    %v3549 = vrcp.pop %v3518
    %v3550 = vmul.f32 %v3518, %v3549
    %v3551 = vsub.f32 1.0, %v3550
    %v3552 = vmul.f32 %v3549, %v3551
    %v3553 = vadd.f32 %v3549, %v3552
    %vm3554 = vweird.f32 %v3518
    %vm3555 = vweird.f32 %v3549
    %vm3556 = vmor %vm3554, %vm3555
    %v3557 = vsel %vm3556, %v3549, %v3553
    %v3558 = vand.u32 2147483647, %v3518
    %vm3559 = vcmp.eq.f32.partialorder %v3558, 8.507059e+37
    %v3560 = vand.u32 %v3518, 2147483648
    %v3561 = vor.u32 1.1754944e-38, %v3560
    %v3562 = vsel %vm3559, %v3561, %v3557
    %v3563 = vmul.f32 1.0, %v3562
    %v3564 = vtanh.pop %v3506
    %v3565 = vmul.f32 %v3548, %v3018
    %v3566 = vmul.f32 %v3533, %v3564
    %v3567 = vadd.f32 %v3565, %v3566
    %v3568 = vtanh.pop %v3567
    %v3569 = vmul.f32 %v3563, %v3568
    %3570 = vmatpush.msra.mxu0 %v812
    %3571 = vmatpush.msra.mxu0 %v808
    %3572 = vmatpush.msra.mxu0 %v804
    %3573 = vmatpush.msra.mxu0 %v800
    %3574 = vmatpush.msra.mxu0 %v796
    %3575 = vmatpush.msra.mxu0 %v792
    %3576 = vmatpush.msra.mxu0 %v788
    %3577 = vmatpush.msra.mxu0 %v784
    %3578 = vmatpush.msra.mxu0 %v780
    %3579 = vmatpush.msra.mxu0 %v776
    %3580 = vmatpush.msra.mxu0 %v772
    %3581 = vmatpush.msra.mxu0 %v768
    %3582 = vmatpush.msra.mxu0 %v764
    %3583 = vmatpush.msra.mxu0 %v760
    %3584 = vmatpush.msra.mxu0 %v756
    %3585 = vmatpush.msra.mxu0 %v752
    %3586 = vmatmul.f32.gmra.mxu0 %v3569
    %v3587 = vpop.f32.mrf.mxu0
    %v3588 = vadd.f32 %v817, %v3587
    %3589 = vdwg.mxu0
    %3590 = vmatpush.msra.mxu0 %v813
    %3591 = vmatpush.msra.mxu0 %v809
    %3592 = vmatpush.msra.mxu0 %v805
    %3593 = vmatpush.msra.mxu0 %v801
    %3594 = vmatpush.msra.mxu0 %v797
    %3595 = vmatpush.msra.mxu0 %v793
    %3596 = vmatpush.msra.mxu0 %v789
    %3597 = vmatpush.msra.mxu0 %v785
    %3598 = vmatpush.msra.mxu0 %v781
    %3599 = vmatpush.msra.mxu0 %v777
    %3600 = vmatpush.msra.mxu0 %v773
    %3601 = vmatpush.msra.mxu0 %v769
    %3602 = vmatpush.msra.mxu0 %v765
    %3603 = vmatpush.msra.mxu0 %v761
    %3604 = vmatpush.msra.mxu0 %v757
    %3605 = vmatpush.msra.mxu0 %v753
    %3606 = vmatmul.f32.gmra.mxu0 %v3569
    %v3607 = vpop.f32.mrf.mxu0
    %v3608 = vadd.f32 %v818, %v3607
    %3609 = vdwg.mxu0
    %3610 = vmatpush.msra.mxu0 %v814
    %3611 = vmatpush.msra.mxu0 %v810
    %3612 = vmatpush.msra.mxu0 %v806
    %3613 = vmatpush.msra.mxu0 %v802
    %3614 = vmatpush.msra.mxu0 %v798
    %3615 = vmatpush.msra.mxu0 %v794
    %3616 = vmatpush.msra.mxu0 %v790
    %3617 = vmatpush.msra.mxu0 %v786
    %3618 = vmatpush.msra.mxu0 %v782
    %3619 = vmatpush.msra.mxu0 %v778
    %3620 = vmatpush.msra.mxu0 %v774
    %3621 = vmatpush.msra.mxu0 %v770
    %3622 = vmatpush.msra.mxu0 %v766
    %3623 = vmatpush.msra.mxu0 %v762
    %3624 = vmatpush.msra.mxu0 %v758
    %3625 = vmatpush.msra.mxu0 %v754
    %3626 = vmatmul.f32.gmra.mxu0 %v3569
    %v3627 = vpop.f32.mrf.mxu0
    %v3628 = vadd.f32 %v819, %v3627
    %3629 = vdwg.mxu0
    %3630 = vmatpush.msra.mxu0 %v815
    %3631 = vmatpush.msra.mxu0 %v811
    %3632 = vmatpush.msra.mxu0 %v807
    %3633 = vmatpush.msra.mxu0 %v803
    %3634 = vmatpush.msra.mxu0 %v799
    %3635 = vmatpush.msra.mxu0 %v795
    %3636 = vmatpush.msra.mxu0 %v791
    %3637 = vmatpush.msra.mxu0 %v787
    %3638 = vmatpush.msra.mxu0 %v783
    %3639 = vmatpush.msra.mxu0 %v779
    %3640 = vmatpush.msra.mxu0 %v775
    %3641 = vmatpush.msra.mxu0 %v771
    %3642 = vmatpush.msra.mxu0 %v767
    %3643 = vmatpush.msra.mxu0 %v763
    %3644 = vmatpush.msra.mxu0 %v759
    %3645 = vmatpush.msra.mxu0 %v755
    %3646 = vmatmul.f32.gmra.mxu0 %v3569
    %v3647 = vpop.f32.mrf.mxu0
    %v3648 = vadd.f32 %v820, %v3647
    %3649 = vdwg.mxu0
    %v3650 = vadd.f32 %v3588, %v3366
    %v3651 = vadd.f32 %v3608, %v3406
    %v3652 = vadd.f32 %v3628, %v3446
    %v3653 = vadd.f32 %v3648, %v3486
    %v3654 = vxor.u32 %v3650, 2147483648
    %v3655 = vxor.u32 %v3651, 2147483648
    %v3656 = vxor.u32 %v3652, 2147483648
    %v3657 = vmul.f32 %v3654, 1.442695
    %v3658 = vpow.pop %v3657
    %v3659 = vmul.f32 %v3655, 1.442695
    %v3660 = vpow.pop %v3659
    %v3661 = vmul.f32 %v3656, 1.442695
    %v3662 = vpow.pop %v3661
    %v3663 = vadd.f32 %v3658, 1.0
    %v3664 = vadd.f32 %v3660, 1.0
    %v3665 = vadd.f32 %v3662, 1.0
    %v3666 = vrcp.pop %v3663
    %v3667 = vmul.f32 %v3663, %v3666
    %v3668 = vsub.f32 1.0, %v3667
    %v3669 = vmul.f32 %v3666, %v3668
    %v3670 = vadd.f32 %v3666, %v3669
    %vm3671 = vweird.f32 %v3663
    %vm3672 = vweird.f32 %v3666
    %vm3673 = vmor %vm3671, %vm3672
    %v3674 = vsel %vm3673, %v3666, %v3670
    %v3675 = vand.u32 2147483647, %v3663
    %vm3676 = vcmp.eq.f32.partialorder %v3675, 8.507059e+37
    %v3677 = vand.u32 %v3663, 2147483648
    %v3678 = vor.u32 1.1754944e-38, %v3677
    %v3679 = vsel %vm3676, %v3678, %v3674
    %v3680 = vmul.f32 1.0, %v3679
    %v3681 = vrcp.pop %v3664
    %v3682 = vmul.f32 %v3664, %v3681
    %v3683 = vsub.f32 1.0, %v3682
    %v3684 = vmul.f32 %v3681, %v3683
    %v3685 = vadd.f32 %v3681, %v3684
    %vm3686 = vweird.f32 %v3664
    %vm3687 = vweird.f32 %v3681
    %vm3688 = vmor %vm3686, %vm3687
    %v3689 = vsel %vm3688, %v3681, %v3685
    %v3690 = vand.u32 2147483647, %v3664
    %vm3691 = vcmp.eq.f32.partialorder %v3690, 8.507059e+37
    %v3692 = vand.u32 %v3664, 2147483648
    %v3693 = vor.u32 1.1754944e-38, %v3692
    %v3694 = vsel %vm3691, %v3693, %v3689
    %v3695 = vmul.f32 1.0, %v3694
    %v3696 = vrcp.pop %v3665
    %v3697 = vmul.f32 %v3665, %v3696
    %v3698 = vsub.f32 1.0, %v3697
    %v3699 = vmul.f32 %v3696, %v3698
    %v3700 = vadd.f32 %v3696, %v3699
    %vm3701 = vweird.f32 %v3665
    %vm3702 = vweird.f32 %v3696
    %vm3703 = vmor %vm3701, %vm3702
    %v3704 = vsel %vm3703, %v3696, %v3700
    %v3705 = vand.u32 2147483647, %v3665
    %vm3706 = vcmp.eq.f32.partialorder %v3705, 8.507059e+37
    %v3707 = vand.u32 %v3665, 2147483648
    %v3708 = vor.u32 1.1754944e-38, %v3707
    %v3709 = vsel %vm3706, %v3708, %v3704
    %v3710 = vmul.f32 1.0, %v3709
    %v3711 = vtanh.pop %v3653
    %v3712 = vmul.f32 %v3695, %v3165
    %v3713 = vmul.f32 %v3680, %v3711
    %v3714 = vadd.f32 %v3712, %v3713
    %v3715 = vtanh.pop %v3714
    %v3716 = vmul.f32 %v3710, %v3715
    %3717 = vmatpush.msra.mxu0 %v197
    %3718 = vmatpush.msra.mxu0 %v189
    %3719 = vmatpush.msra.mxu0 %v181
    %3720 = vmatpush.msra.mxu0 %v173
    %3721 = vmatpush.msra.mxu0 %v165
    %3722 = vmatpush.msra.mxu0 %v157
    %3723 = vmatpush.msra.mxu0 %v149
    %3724 = vmatpush.msra.mxu0 %v141
    %3725 = vmatpush.msra.mxu0 %v133
    %3726 = vmatpush.msra.mxu0 %v125
    %3727 = vmatpush.msra.mxu0 %v117
    %3728 = vmatpush.msra.mxu0 %v109
    %3729 = vmatpush.msra.mxu0 %v101
    %3730 = vmatpush.msra.mxu0 %v93
    %3731 = vmatpush.msra.mxu0 %v85
    %3732 = vmatpush.msra.mxu0 %v77
    %3733 = vmatmul.f32.gmra.mxu0 %v3569
    %v3734 = vpop.f32.mrf.mxu0
    %v3735 = vadd.f32 0.0, %v3734
    %3736 = vdwg.mxu0
    %3737 = vmatpush.msra.mxu0 %v325
    %3738 = vmatpush.msra.mxu0 %v317
    %3739 = vmatpush.msra.mxu0 %v309
    %3740 = vmatpush.msra.mxu0 %v301
    %3741 = vmatpush.msra.mxu0 %v293
    %3742 = vmatpush.msra.mxu0 %v285
    %3743 = vmatpush.msra.mxu0 %v277
    %3744 = vmatpush.msra.mxu0 %v269
    %3745 = vmatpush.msra.mxu0 %v261
    %3746 = vmatpush.msra.mxu0 %v253
    %3747 = vmatpush.msra.mxu0 %v245
    %3748 = vmatpush.msra.mxu0 %v237
    %3749 = vmatpush.msra.mxu0 %v229
    %3750 = vmatpush.msra.mxu0 %v221
    %3751 = vmatpush.msra.mxu0 %v213
    %3752 = vmatpush.msra.mxu0 %v205
    %3753 = vmatmul.f32.gmra.mxu0 %v3716
    %v3754 = vpop.f32.mrf.mxu0
    %v3755 = vadd.f32 %v3735, %v3754
    %3756 = vdwg.mxu0
    %3757 = vmatpush.msra.mxu0 %v198
    %3758 = vmatpush.msra.mxu0 %v190
    %3759 = vmatpush.msra.mxu0 %v182
    %3760 = vmatpush.msra.mxu0 %v174
    %3761 = vmatpush.msra.mxu0 %v166
    %3762 = vmatpush.msra.mxu0 %v158
    %3763 = vmatpush.msra.mxu0 %v150
    %3764 = vmatpush.msra.mxu0 %v142
    %3765 = vmatpush.msra.mxu0 %v134
    %3766 = vmatpush.msra.mxu0 %v126
    %3767 = vmatpush.msra.mxu0 %v118
    %3768 = vmatpush.msra.mxu0 %v110
    %3769 = vmatpush.msra.mxu0 %v102
    %3770 = vmatpush.msra.mxu0 %v94
    %3771 = vmatpush.msra.mxu0 %v86
    %3772 = vmatpush.msra.mxu0 %v78
    %3773 = vmatmul.f32.gmra.mxu0 %v3569
    %v3774 = vpop.f32.mrf.mxu0
    %v3775 = vadd.f32 0.0, %v3774
    %3776 = vdwg.mxu0
    %3777 = vmatpush.msra.mxu0 %v326
    %3778 = vmatpush.msra.mxu0 %v318
    %3779 = vmatpush.msra.mxu0 %v310
    %3780 = vmatpush.msra.mxu0 %v302
    %3781 = vmatpush.msra.mxu0 %v294
    %3782 = vmatpush.msra.mxu0 %v286
    %3783 = vmatpush.msra.mxu0 %v278
    %3784 = vmatpush.msra.mxu0 %v270
    %3785 = vmatpush.msra.mxu0 %v262
    %3786 = vmatpush.msra.mxu0 %v254
    %3787 = vmatpush.msra.mxu0 %v246
    %3788 = vmatpush.msra.mxu0 %v238
    %3789 = vmatpush.msra.mxu0 %v230
    %3790 = vmatpush.msra.mxu0 %v222
    %3791 = vmatpush.msra.mxu0 %v214
    %3792 = vmatpush.msra.mxu0 %v206
    %3793 = vmatmul.f32.gmra.mxu0 %v3716
    %v3794 = vpop.f32.mrf.mxu0
    %v3795 = vadd.f32 %v3775, %v3794
    %3796 = vdwg.mxu0
    %3797 = vmatpush.msra.mxu0 %v199
    %3798 = vmatpush.msra.mxu0 %v191
    %3799 = vmatpush.msra.mxu0 %v183
    %3800 = vmatpush.msra.mxu0 %v175
    %3801 = vmatpush.msra.mxu0 %v167
    %3802 = vmatpush.msra.mxu0 %v159
    %3803 = vmatpush.msra.mxu0 %v151
    %3804 = vmatpush.msra.mxu0 %v143
    %3805 = vmatpush.msra.mxu0 %v135
    %3806 = vmatpush.msra.mxu0 %v127
    %3807 = vmatpush.msra.mxu0 %v119
    %3808 = vmatpush.msra.mxu0 %v111
    %3809 = vmatpush.msra.mxu0 %v103
    %3810 = vmatpush.msra.mxu0 %v95
    %3811 = vmatpush.msra.mxu0 %v87
    %3812 = vmatpush.msra.mxu0 %v79
    %3813 = vmatmul.f32.gmra.mxu0 %v3569
    %v3814 = vpop.f32.mrf.mxu0
    %v3815 = vadd.f32 0.0, %v3814
    %3816 = vdwg.mxu0
    %3817 = vmatpush.msra.mxu0 %v327
    %3818 = vmatpush.msra.mxu0 %v319
    %3819 = vmatpush.msra.mxu0 %v311
    %3820 = vmatpush.msra.mxu0 %v303
    %3821 = vmatpush.msra.mxu0 %v295
    %3822 = vmatpush.msra.mxu0 %v287
    %3823 = vmatpush.msra.mxu0 %v279
    %3824 = vmatpush.msra.mxu0 %v271
    %3825 = vmatpush.msra.mxu0 %v263
    %3826 = vmatpush.msra.mxu0 %v255
    %3827 = vmatpush.msra.mxu0 %v247
    %3828 = vmatpush.msra.mxu0 %v239
    %3829 = vmatpush.msra.mxu0 %v231
    %3830 = vmatpush.msra.mxu0 %v223
    %3831 = vmatpush.msra.mxu0 %v215
    %3832 = vmatpush.msra.mxu0 %v207
    %3833 = vmatmul.f32.gmra.mxu0 %v3716
    %v3834 = vpop.f32.mrf.mxu0
    %v3835 = vadd.f32 %v3815, %v3834
    %3836 = vdwg.mxu0
    %3837 = vmatpush.msra.mxu0 %v200
    %3838 = vmatpush.msra.mxu0 %v192
    %3839 = vmatpush.msra.mxu0 %v184
    %3840 = vmatpush.msra.mxu0 %v176
    %3841 = vmatpush.msra.mxu0 %v168
    %3842 = vmatpush.msra.mxu0 %v160
    %3843 = vmatpush.msra.mxu0 %v152
    %3844 = vmatpush.msra.mxu0 %v144
    %3845 = vmatpush.msra.mxu0 %v136
    %3846 = vmatpush.msra.mxu0 %v128
    %3847 = vmatpush.msra.mxu0 %v120
    %3848 = vmatpush.msra.mxu0 %v112
    %3849 = vmatpush.msra.mxu0 %v104
    %3850 = vmatpush.msra.mxu0 %v96
    %3851 = vmatpush.msra.mxu0 %v88
    %3852 = vmatpush.msra.mxu0 %v80
    %3853 = vmatmul.f32.gmra.mxu0 %v3569
    %v3854 = vpop.f32.mrf.mxu0
    %v3855 = vadd.f32 0.0, %v3854
    %3856 = vdwg.mxu0
    %3857 = vmatpush.msra.mxu0 %v328
    %3858 = vmatpush.msra.mxu0 %v320
    %3859 = vmatpush.msra.mxu0 %v312
    %3860 = vmatpush.msra.mxu0 %v304
    %3861 = vmatpush.msra.mxu0 %v296
    %3862 = vmatpush.msra.mxu0 %v288
    %3863 = vmatpush.msra.mxu0 %v280
    %3864 = vmatpush.msra.mxu0 %v272
    %3865 = vmatpush.msra.mxu0 %v264
    %3866 = vmatpush.msra.mxu0 %v256
    %3867 = vmatpush.msra.mxu0 %v248
    %3868 = vmatpush.msra.mxu0 %v240
    %3869 = vmatpush.msra.mxu0 %v232
    %3870 = vmatpush.msra.mxu0 %v224
    %3871 = vmatpush.msra.mxu0 %v216
    %3872 = vmatpush.msra.mxu0 %v208
    %3873 = vmatmul.f32.gmra.mxu0 %v3716
    %v3874 = vpop.f32.mrf.mxu0
    %v3875 = vadd.f32 %v3855, %v3874
    %3876 = vdwg.mxu0
    %3877 = vmatpush.msra.mxu0 %v201
    %3878 = vmatpush.msra.mxu0 %v193
    %3879 = vmatpush.msra.mxu0 %v185
    %3880 = vmatpush.msra.mxu0 %v177
    %3881 = vmatpush.msra.mxu0 %v169
    %3882 = vmatpush.msra.mxu0 %v161
    %3883 = vmatpush.msra.mxu0 %v153
    %3884 = vmatpush.msra.mxu0 %v145
    %3885 = vmatpush.msra.mxu0 %v137
    %3886 = vmatpush.msra.mxu0 %v129
    %3887 = vmatpush.msra.mxu0 %v121
    %3888 = vmatpush.msra.mxu0 %v113
    %3889 = vmatpush.msra.mxu0 %v105
    %3890 = vmatpush.msra.mxu0 %v97
    %3891 = vmatpush.msra.mxu0 %v89
    %3892 = vmatpush.msra.mxu0 %v81
    %3893 = vmatmul.f32.gmra.mxu0 %v3569
    %v3894 = vpop.f32.mrf.mxu0
    %v3895 = vadd.f32 0.0, %v3894
    %3896 = vdwg.mxu0
    %3897 = vmatpush.msra.mxu0 %v329
    %3898 = vmatpush.msra.mxu0 %v321
    %3899 = vmatpush.msra.mxu0 %v313
    %3900 = vmatpush.msra.mxu0 %v305
    %3901 = vmatpush.msra.mxu0 %v297
    %3902 = vmatpush.msra.mxu0 %v289
    %3903 = vmatpush.msra.mxu0 %v281
    %3904 = vmatpush.msra.mxu0 %v273
    %3905 = vmatpush.msra.mxu0 %v265
    %3906 = vmatpush.msra.mxu0 %v257
    %3907 = vmatpush.msra.mxu0 %v249
    %3908 = vmatpush.msra.mxu0 %v241
    %3909 = vmatpush.msra.mxu0 %v233
    %3910 = vmatpush.msra.mxu0 %v225
    %3911 = vmatpush.msra.mxu0 %v217
    %3912 = vmatpush.msra.mxu0 %v209
    %3913 = vmatmul.f32.gmra.mxu0 %v3716
    %v3914 = vpop.f32.mrf.mxu0
    %v3915 = vadd.f32 %v3895, %v3914
    %3916 = vdwg.mxu0
    %3917 = vmatpush.msra.mxu0 %v202
    %3918 = vmatpush.msra.mxu0 %v194
    %3919 = vmatpush.msra.mxu0 %v186
    %3920 = vmatpush.msra.mxu0 %v178
    %3921 = vmatpush.msra.mxu0 %v170
    %3922 = vmatpush.msra.mxu0 %v162
    %3923 = vmatpush.msra.mxu0 %v154
    %3924 = vmatpush.msra.mxu0 %v146
    %3925 = vmatpush.msra.mxu0 %v138
    %3926 = vmatpush.msra.mxu0 %v130
    %3927 = vmatpush.msra.mxu0 %v122
    %3928 = vmatpush.msra.mxu0 %v114
    %3929 = vmatpush.msra.mxu0 %v106
    %3930 = vmatpush.msra.mxu0 %v98
    %3931 = vmatpush.msra.mxu0 %v90
    %3932 = vmatpush.msra.mxu0 %v82
    %3933 = vmatmul.f32.gmra.mxu0 %v3569
    %v3934 = vpop.f32.mrf.mxu0
    %v3935 = vadd.f32 0.0, %v3934
    %3936 = vdwg.mxu0
    %3937 = vmatpush.msra.mxu0 %v330
    %3938 = vmatpush.msra.mxu0 %v322
    %3939 = vmatpush.msra.mxu0 %v314
    %3940 = vmatpush.msra.mxu0 %v306
    %3941 = vmatpush.msra.mxu0 %v298
    %3942 = vmatpush.msra.mxu0 %v290
    %3943 = vmatpush.msra.mxu0 %v282
    %3944 = vmatpush.msra.mxu0 %v274
    %3945 = vmatpush.msra.mxu0 %v266
    %3946 = vmatpush.msra.mxu0 %v258
    %3947 = vmatpush.msra.mxu0 %v250
    %3948 = vmatpush.msra.mxu0 %v242
    %3949 = vmatpush.msra.mxu0 %v234
    %3950 = vmatpush.msra.mxu0 %v226
    %3951 = vmatpush.msra.mxu0 %v218
    %3952 = vmatpush.msra.mxu0 %v210
    %3953 = vmatmul.f32.gmra.mxu0 %v3716
    %v3954 = vpop.f32.mrf.mxu0
    %v3955 = vadd.f32 %v3935, %v3954
    %3956 = vdwg.mxu0
    %3957 = vmatpush.msra.mxu0 %v203
    %3958 = vmatpush.msra.mxu0 %v195
    %3959 = vmatpush.msra.mxu0 %v187
    %3960 = vmatpush.msra.mxu0 %v179
    %3961 = vmatpush.msra.mxu0 %v171
    %3962 = vmatpush.msra.mxu0 %v163
    %3963 = vmatpush.msra.mxu0 %v155
    %3964 = vmatpush.msra.mxu0 %v147
    %3965 = vmatpush.msra.mxu0 %v139
    %3966 = vmatpush.msra.mxu0 %v131
    %3967 = vmatpush.msra.mxu0 %v123
    %3968 = vmatpush.msra.mxu0 %v115
    %3969 = vmatpush.msra.mxu0 %v107
    %3970 = vmatpush.msra.mxu0 %v99
    %3971 = vmatpush.msra.mxu0 %v91
    %3972 = vmatpush.msra.mxu0 %v83
    %3973 = vmatmul.f32.gmra.mxu0 %v3569
    %v3974 = vpop.f32.mrf.mxu0
    %v3975 = vadd.f32 0.0, %v3974
    %3976 = vdwg.mxu0
    %3977 = vmatpush.msra.mxu0 %v331
    %3978 = vmatpush.msra.mxu0 %v323
    %3979 = vmatpush.msra.mxu0 %v315
    %3980 = vmatpush.msra.mxu0 %v307
    %3981 = vmatpush.msra.mxu0 %v299
    %3982 = vmatpush.msra.mxu0 %v291
    %3983 = vmatpush.msra.mxu0 %v283
    %3984 = vmatpush.msra.mxu0 %v275
    %3985 = vmatpush.msra.mxu0 %v267
    %3986 = vmatpush.msra.mxu0 %v259
    %3987 = vmatpush.msra.mxu0 %v251
    %3988 = vmatpush.msra.mxu0 %v243
    %3989 = vmatpush.msra.mxu0 %v235
    %3990 = vmatpush.msra.mxu0 %v227
    %3991 = vmatpush.msra.mxu0 %v219
    %3992 = vmatpush.msra.mxu0 %v211
    %3993 = vmatmul.f32.gmra.mxu0 %v3716
    %v3994 = vpop.f32.mrf.mxu0
    %v3995 = vadd.f32 %v3975, %v3994
    %3996 = vdwg.mxu0
    %3997 = vmatpush.msra.mxu0 %v204
    %3998 = vmatpush.msra.mxu0 %v196
    %3999 = vmatpush.msra.mxu0 %v188
    %4000 = vmatpush.msra.mxu0 %v180
    %4001 = vmatpush.msra.mxu0 %v172
    %4002 = vmatpush.msra.mxu0 %v164
    %4003 = vmatpush.msra.mxu0 %v156
    %4004 = vmatpush.msra.mxu0 %v148
    %4005 = vmatpush.msra.mxu0 %v140
    %4006 = vmatpush.msra.mxu0 %v132
    %4007 = vmatpush.msra.mxu0 %v124
    %4008 = vmatpush.msra.mxu0 %v116
    %4009 = vmatpush.msra.mxu0 %v108
    %4010 = vmatpush.msra.mxu0 %v100
    %4011 = vmatpush.msra.mxu0 %v92
    %4012 = vmatpush.msra.mxu0 %v84
    %4013 = vmatmul.f32.gmra.mxu0 %v3569
    %v4014 = vpop.f32.mrf.mxu0
    %v4015 = vadd.f32 0.0, %v4014
    %4016 = vdwg.mxu0
    %4017 = vmatpush.msra.mxu0 %v332
    %4018 = vmatpush.msra.mxu0 %v324
    %4019 = vmatpush.msra.mxu0 %v316
    %4020 = vmatpush.msra.mxu0 %v308
    %4021 = vmatpush.msra.mxu0 %v300
    %4022 = vmatpush.msra.mxu0 %v292
    %4023 = vmatpush.msra.mxu0 %v284
    %4024 = vmatpush.msra.mxu0 %v276
    %4025 = vmatpush.msra.mxu0 %v268
    %4026 = vmatpush.msra.mxu0 %v260
    %4027 = vmatpush.msra.mxu0 %v252
    %4028 = vmatpush.msra.mxu0 %v244
    %4029 = vmatpush.msra.mxu0 %v236
    %4030 = vmatpush.msra.mxu0 %v228
    %4031 = vmatpush.msra.mxu0 %v220
    %4032 = vmatpush.msra.mxu0 %v212
    %4033 = vmatmul.f32.gmra.mxu0 %v3716
    %v4034 = vpop.f32.mrf.mxu0
    %v4035 = vadd.f32 %v4015, %v4034
    %4036 = vdwg.mxu0
    %s4037 = scalar_lea.vmem %s0, 12
    %v4038 = vld [vmem:[%s4037] sm:$0x3]
    %4040 = vset.pattern.permute.xlu0 0
    %4041 = vperm.xlu0 %4040, %v4038
    %v4042 = vpop.permute.xlu0 %4041
    %v4044 = vmul.f32 %v4042, %v660
    %v4045 = vmul.f32 %v4042, %v661
    %v4046 = vmul.f32 %v4042, %v662
    %v4047 = vmul.f32 %v4042, %v663
    %v4048 = vadd.f32 %v4044, %v673
    %v4049 = vadd.f32 %v4045, %v674
    %v4050 = vadd.f32 %v4046, %v675
    %v4051 = vadd.f32 %v4047, %v676
    %v4052 = vadd.f32 %v4048, %v3755
    %v4053 = vadd.f32 %v4049, %v3795
    %v4054 = vadd.f32 %v4050, %v3835
    %v4055 = vadd.f32 %v4051, %v3875
    %v4056 = vxor.u32 %v4052, 2147483648
    %v4057 = vxor.u32 %v4053, 2147483648
    %v4058 = vxor.u32 %v4054, 2147483648
    %v4059 = vmul.f32 %v4056, 1.442695
    %v4060 = vpow.pop %v4059
    %v4061 = vmul.f32 %v4057, 1.442695
    %v4062 = vpow.pop %v4061
    %v4063 = vmul.f32 %v4058, 1.442695
    %v4064 = vpow.pop %v4063
    %v4065 = vadd.f32 %v4060, 1.0
    %v4066 = vadd.f32 %v4062, 1.0
    %v4067 = vadd.f32 %v4064, 1.0
    %v4068 = vrcp.pop %v4065
    %v4069 = vmul.f32 %v4065, %v4068
    %v4070 = vsub.f32 1.0, %v4069
    %v4071 = vmul.f32 %v4068, %v4070
    %v4072 = vadd.f32 %v4068, %v4071
    %vm4073 = vweird.f32 %v4065
    %vm4074 = vweird.f32 %v4068
    %vm4075 = vmor %vm4073, %vm4074
    %v4076 = vsel %vm4075, %v4068, %v4072
    %v4077 = vand.u32 2147483647, %v4065
    %vm4078 = vcmp.eq.f32.partialorder %v4077, 8.507059e+37
    %v4079 = vand.u32 %v4065, 2147483648
    %v4080 = vor.u32 1.1754944e-38, %v4079
    %v4081 = vsel %vm4078, %v4080, %v4076
    %v4082 = vmul.f32 1.0, %v4081
    %v4083 = vrcp.pop %v4066
    %v4084 = vmul.f32 %v4066, %v4083
    %v4085 = vsub.f32 1.0, %v4084
    %v4086 = vmul.f32 %v4083, %v4085
    %v4087 = vadd.f32 %v4083, %v4086
    %vm4088 = vweird.f32 %v4066
    %vm4089 = vweird.f32 %v4083
    %vm4090 = vmor %vm4088, %vm4089
    %v4091 = vsel %vm4090, %v4083, %v4087
    %v4092 = vand.u32 2147483647, %v4066
    %vm4093 = vcmp.eq.f32.partialorder %v4092, 8.507059e+37
    %v4094 = vand.u32 %v4066, 2147483648
    %v4095 = vor.u32 1.1754944e-38, %v4094
    %v4096 = vsel %vm4093, %v4095, %v4091
    %v4097 = vmul.f32 1.0, %v4096
    %v4098 = vrcp.pop %v4067
    %v4099 = vmul.f32 %v4067, %v4098
    %v4100 = vsub.f32 1.0, %v4099
    %v4101 = vmul.f32 %v4098, %v4100
    %v4102 = vadd.f32 %v4098, %v4101
    %vm4103 = vweird.f32 %v4067
    %vm4104 = vweird.f32 %v4098
    %vm4105 = vmor %vm4103, %vm4104
    %v4106 = vsel %vm4105, %v4098, %v4102
    %v4107 = vand.u32 2147483647, %v4067
    %vm4108 = vcmp.eq.f32.partialorder %v4107, 8.507059e+37
    %v4109 = vand.u32 %v4067, 2147483648
    %v4110 = vor.u32 1.1754944e-38, %v4109
    %v4111 = vsel %vm4108, %v4110, %v4106
    %v4112 = vmul.f32 1.0, %v4111
    %v4113 = vtanh.pop %v4055
    %v4114 = vmul.f32 %v4097, %v3567
    %v4115 = vmul.f32 %v4082, %v4113
    %v4116 = vadd.f32 %v4114, %v4115
    %v4117 = vtanh.pop %v4116
    %v4118 = vmul.f32 %v4112, %v4117
    %4119 = vmatpush.msra.mxu0 %v812
    %4120 = vmatpush.msra.mxu0 %v808
    %4121 = vmatpush.msra.mxu0 %v804
    %4122 = vmatpush.msra.mxu0 %v800
    %4123 = vmatpush.msra.mxu0 %v796
    %4124 = vmatpush.msra.mxu0 %v792
    %4125 = vmatpush.msra.mxu0 %v788
    %4126 = vmatpush.msra.mxu0 %v784
    %4127 = vmatpush.msra.mxu0 %v780
    %4128 = vmatpush.msra.mxu0 %v776
    %4129 = vmatpush.msra.mxu0 %v772
    %4130 = vmatpush.msra.mxu0 %v768
    %4131 = vmatpush.msra.mxu0 %v764
    %4132 = vmatpush.msra.mxu0 %v760
    %4133 = vmatpush.msra.mxu0 %v756
    %4134 = vmatpush.msra.mxu0 %v752
    %4135 = vmatmul.f32.gmra.mxu0 %v4118
    %v4136 = vpop.f32.mrf.mxu0
    %v4137 = vadd.f32 %v817, %v4136
    %4138 = vdwg.mxu0
    %4139 = vmatpush.msra.mxu0 %v813
    %4140 = vmatpush.msra.mxu0 %v809
    %4141 = vmatpush.msra.mxu0 %v805
    %4142 = vmatpush.msra.mxu0 %v801
    %4143 = vmatpush.msra.mxu0 %v797
    %4144 = vmatpush.msra.mxu0 %v793
    %4145 = vmatpush.msra.mxu0 %v789
    %4146 = vmatpush.msra.mxu0 %v785
    %4147 = vmatpush.msra.mxu0 %v781
    %4148 = vmatpush.msra.mxu0 %v777
    %4149 = vmatpush.msra.mxu0 %v773
    %4150 = vmatpush.msra.mxu0 %v769
    %4151 = vmatpush.msra.mxu0 %v765
    %4152 = vmatpush.msra.mxu0 %v761
    %4153 = vmatpush.msra.mxu0 %v757
    %4154 = vmatpush.msra.mxu0 %v753
    %4155 = vmatmul.f32.gmra.mxu0 %v4118
    %v4156 = vpop.f32.mrf.mxu0
    %v4157 = vadd.f32 %v818, %v4156
    %4158 = vdwg.mxu0
    %4159 = vmatpush.msra.mxu0 %v814
    %4160 = vmatpush.msra.mxu0 %v810
    %4161 = vmatpush.msra.mxu0 %v806
    %4162 = vmatpush.msra.mxu0 %v802
    %4163 = vmatpush.msra.mxu0 %v798
    %4164 = vmatpush.msra.mxu0 %v794
    %4165 = vmatpush.msra.mxu0 %v790
    %4166 = vmatpush.msra.mxu0 %v786
    %4167 = vmatpush.msra.mxu0 %v782
    %4168 = vmatpush.msra.mxu0 %v778
    %4169 = vmatpush.msra.mxu0 %v774
    %4170 = vmatpush.msra.mxu0 %v770
    %4171 = vmatpush.msra.mxu0 %v766
    %4172 = vmatpush.msra.mxu0 %v762
    %4173 = vmatpush.msra.mxu0 %v758
    %4174 = vmatpush.msra.mxu0 %v754
    %4175 = vmatmul.f32.gmra.mxu0 %v4118
    %v4176 = vpop.f32.mrf.mxu0
    %v4177 = vadd.f32 %v819, %v4176
    %4178 = vdwg.mxu0
    %4179 = vmatpush.msra.mxu0 %v815
    %4180 = vmatpush.msra.mxu0 %v811
    %4181 = vmatpush.msra.mxu0 %v807
    %4182 = vmatpush.msra.mxu0 %v803
    %4183 = vmatpush.msra.mxu0 %v799
    %4184 = vmatpush.msra.mxu0 %v795
    %4185 = vmatpush.msra.mxu0 %v791
    %4186 = vmatpush.msra.mxu0 %v787
    %4187 = vmatpush.msra.mxu0 %v783
    %4188 = vmatpush.msra.mxu0 %v779
    %4189 = vmatpush.msra.mxu0 %v775
    %4190 = vmatpush.msra.mxu0 %v771
    %4191 = vmatpush.msra.mxu0 %v767
    %4192 = vmatpush.msra.mxu0 %v763
    %4193 = vmatpush.msra.mxu0 %v759
    %4194 = vmatpush.msra.mxu0 %v755
    %4195 = vmatmul.f32.gmra.mxu0 %v4118
    %v4196 = vpop.f32.mrf.mxu0
    %v4197 = vadd.f32 %v820, %v4196
    %4198 = vdwg.mxu0
    %v4199 = vadd.f32 %v4137, %v3915
    %v4200 = vadd.f32 %v4157, %v3955
    %v4201 = vadd.f32 %v4177, %v3995
    %v4202 = vadd.f32 %v4197, %v4035
    %v4203 = vxor.u32 %v4199, 2147483648
    %v4204 = vxor.u32 %v4200, 2147483648
    %v4205 = vxor.u32 %v4201, 2147483648
    %v4206 = vmul.f32 %v4203, 1.442695
    %v4207 = vpow.pop %v4206
    %v4208 = vmul.f32 %v4204, 1.442695
    %v4209 = vpow.pop %v4208
    %v4210 = vmul.f32 %v4205, 1.442695
    %v4211 = vpow.pop %v4210
    %v4212 = vadd.f32 %v4207, 1.0
    %v4213 = vadd.f32 %v4209, 1.0
    %v4214 = vadd.f32 %v4211, 1.0
    %v4215 = vrcp.pop %v4212
    %v4216 = vmul.f32 %v4212, %v4215
    %v4217 = vsub.f32 1.0, %v4216
    %v4218 = vmul.f32 %v4215, %v4217
    %v4219 = vadd.f32 %v4215, %v4218
    %vm4220 = vweird.f32 %v4212
    %vm4221 = vweird.f32 %v4215
    %vm4222 = vmor %vm4220, %vm4221
    %v4223 = vsel %vm4222, %v4215, %v4219
    %v4224 = vand.u32 2147483647, %v4212
    %vm4225 = vcmp.eq.f32.partialorder %v4224, 8.507059e+37
    %v4226 = vand.u32 %v4212, 2147483648
    %v4227 = vor.u32 1.1754944e-38, %v4226
    %v4228 = vsel %vm4225, %v4227, %v4223
    %v4229 = vmul.f32 1.0, %v4228
    %v4230 = vrcp.pop %v4213
    %v4231 = vmul.f32 %v4213, %v4230
    %v4232 = vsub.f32 1.0, %v4231
    %v4233 = vmul.f32 %v4230, %v4232
    %v4234 = vadd.f32 %v4230, %v4233
    %vm4235 = vweird.f32 %v4213
    %vm4236 = vweird.f32 %v4230
    %vm4237 = vmor %vm4235, %vm4236
    %v4238 = vsel %vm4237, %v4230, %v4234
    %v4239 = vand.u32 2147483647, %v4213
    %vm4240 = vcmp.eq.f32.partialorder %v4239, 8.507059e+37
    %v4241 = vand.u32 %v4213, 2147483648
    %v4242 = vor.u32 1.1754944e-38, %v4241
    %v4243 = vsel %vm4240, %v4242, %v4238
    %v4244 = vmul.f32 1.0, %v4243
    %v4245 = vrcp.pop %v4214
    %v4246 = vmul.f32 %v4214, %v4245
    %v4247 = vsub.f32 1.0, %v4246
    %v4248 = vmul.f32 %v4245, %v4247
    %v4249 = vadd.f32 %v4245, %v4248
    %vm4250 = vweird.f32 %v4214
    %vm4251 = vweird.f32 %v4245
    %vm4252 = vmor %vm4250, %vm4251
    %v4253 = vsel %vm4252, %v4245, %v4249
    %v4254 = vand.u32 2147483647, %v4214
    %vm4255 = vcmp.eq.f32.partialorder %v4254, 8.507059e+37
    %v4256 = vand.u32 %v4214, 2147483648
    %v4257 = vor.u32 1.1754944e-38, %v4256
    %v4258 = vsel %vm4255, %v4257, %v4253
    %v4259 = vmul.f32 1.0, %v4258
    %v4260 = vtanh.pop %v4202
    %v4261 = vmul.f32 %v4244, %v3714
    %v4262 = vmul.f32 %v4229, %v4260
    %v4263 = vadd.f32 %v4261, %v4262
    %v4264 = vtanh.pop %v4263
    %v4265 = vmul.f32 %v4259, %v4264
    %4266 = vmatpush.msra.mxu0 %v197
    %4267 = vmatpush.msra.mxu0 %v189
    %4268 = vmatpush.msra.mxu0 %v181
    %4269 = vmatpush.msra.mxu0 %v173
    %4270 = vmatpush.msra.mxu0 %v165
    %4271 = vmatpush.msra.mxu0 %v157
    %4272 = vmatpush.msra.mxu0 %v149
    %4273 = vmatpush.msra.mxu0 %v141
    %4274 = vmatpush.msra.mxu0 %v133
    %4275 = vmatpush.msra.mxu0 %v125
    %4276 = vmatpush.msra.mxu0 %v117
    %4277 = vmatpush.msra.mxu0 %v109
    %4278 = vmatpush.msra.mxu0 %v101
    %4279 = vmatpush.msra.mxu0 %v93
    %4280 = vmatpush.msra.mxu0 %v85
    %4281 = vmatpush.msra.mxu0 %v77
    %4282 = vmatmul.f32.gmra.mxu0 %v4118
    %v4283 = vpop.f32.mrf.mxu0
    %v4284 = vadd.f32 0.0, %v4283
    %4285 = vdwg.mxu0
    %4286 = vmatpush.msra.mxu0 %v325
    %4287 = vmatpush.msra.mxu0 %v317
    %4288 = vmatpush.msra.mxu0 %v309
    %4289 = vmatpush.msra.mxu0 %v301
    %4290 = vmatpush.msra.mxu0 %v293
    %4291 = vmatpush.msra.mxu0 %v285
    %4292 = vmatpush.msra.mxu0 %v277
    %4293 = vmatpush.msra.mxu0 %v269
    %4294 = vmatpush.msra.mxu0 %v261
    %4295 = vmatpush.msra.mxu0 %v253
    %4296 = vmatpush.msra.mxu0 %v245
    %4297 = vmatpush.msra.mxu0 %v237
    %4298 = vmatpush.msra.mxu0 %v229
    %4299 = vmatpush.msra.mxu0 %v221
    %4300 = vmatpush.msra.mxu0 %v213
    %4301 = vmatpush.msra.mxu0 %v205
    %4302 = vmatmul.f32.gmra.mxu0 %v4265
    %v4303 = vpop.f32.mrf.mxu0
    %v4304 = vadd.f32 %v4284, %v4303
    %4305 = vdwg.mxu0
    %4306 = vmatpush.msra.mxu0 %v198
    %4307 = vmatpush.msra.mxu0 %v190
    %4308 = vmatpush.msra.mxu0 %v182
    %4309 = vmatpush.msra.mxu0 %v174
    %4310 = vmatpush.msra.mxu0 %v166
    %4311 = vmatpush.msra.mxu0 %v158
    %4312 = vmatpush.msra.mxu0 %v150
    %4313 = vmatpush.msra.mxu0 %v142
    %4314 = vmatpush.msra.mxu0 %v134
    %4315 = vmatpush.msra.mxu0 %v126
    %4316 = vmatpush.msra.mxu0 %v118
    %4317 = vmatpush.msra.mxu0 %v110
    %4318 = vmatpush.msra.mxu0 %v102
    %4319 = vmatpush.msra.mxu0 %v94
    %4320 = vmatpush.msra.mxu0 %v86
    %4321 = vmatpush.msra.mxu0 %v78
    %4322 = vmatmul.f32.gmra.mxu0 %v4118
    %v4323 = vpop.f32.mrf.mxu0
    %v4324 = vadd.f32 0.0, %v4323
    %4325 = vdwg.mxu0
    %4326 = vmatpush.msra.mxu0 %v326
    %4327 = vmatpush.msra.mxu0 %v318
    %4328 = vmatpush.msra.mxu0 %v310
    %4329 = vmatpush.msra.mxu0 %v302
    %4330 = vmatpush.msra.mxu0 %v294
    %4331 = vmatpush.msra.mxu0 %v286
    %4332 = vmatpush.msra.mxu0 %v278
    %4333 = vmatpush.msra.mxu0 %v270
    %4334 = vmatpush.msra.mxu0 %v262
    %4335 = vmatpush.msra.mxu0 %v254
    %4336 = vmatpush.msra.mxu0 %v246
    %4337 = vmatpush.msra.mxu0 %v238
    %4338 = vmatpush.msra.mxu0 %v230
    %4339 = vmatpush.msra.mxu0 %v222
    %4340 = vmatpush.msra.mxu0 %v214
    %4341 = vmatpush.msra.mxu0 %v206
    %4342 = vmatmul.f32.gmra.mxu0 %v4265
    %v4343 = vpop.f32.mrf.mxu0
    %v4344 = vadd.f32 %v4324, %v4343
    %4345 = vdwg.mxu0
    %4346 = vmatpush.msra.mxu0 %v199
    %4347 = vmatpush.msra.mxu0 %v191
    %4348 = vmatpush.msra.mxu0 %v183
    %4349 = vmatpush.msra.mxu0 %v175
    %4350 = vmatpush.msra.mxu0 %v167
    %4351 = vmatpush.msra.mxu0 %v159
    %4352 = vmatpush.msra.mxu0 %v151
    %4353 = vmatpush.msra.mxu0 %v143
    %4354 = vmatpush.msra.mxu0 %v135
    %4355 = vmatpush.msra.mxu0 %v127
    %4356 = vmatpush.msra.mxu0 %v119
    %4357 = vmatpush.msra.mxu0 %v111
    %4358 = vmatpush.msra.mxu0 %v103
    %4359 = vmatpush.msra.mxu0 %v95
    %4360 = vmatpush.msra.mxu0 %v87
    %4361 = vmatpush.msra.mxu0 %v79
    %4362 = vmatmul.f32.gmra.mxu0 %v4118
    %v4363 = vpop.f32.mrf.mxu0
    %v4364 = vadd.f32 0.0, %v4363
    %4365 = vdwg.mxu0
    %4366 = vmatpush.msra.mxu0 %v327
    %4367 = vmatpush.msra.mxu0 %v319
    %4368 = vmatpush.msra.mxu0 %v311
    %4369 = vmatpush.msra.mxu0 %v303
    %4370 = vmatpush.msra.mxu0 %v295
    %4371 = vmatpush.msra.mxu0 %v287
    %4372 = vmatpush.msra.mxu0 %v279
    %4373 = vmatpush.msra.mxu0 %v271
    %4374 = vmatpush.msra.mxu0 %v263
    %4375 = vmatpush.msra.mxu0 %v255
    %4376 = vmatpush.msra.mxu0 %v247
    %4377 = vmatpush.msra.mxu0 %v239
    %4378 = vmatpush.msra.mxu0 %v231
    %4379 = vmatpush.msra.mxu0 %v223
    %4380 = vmatpush.msra.mxu0 %v215
    %4381 = vmatpush.msra.mxu0 %v207
    %4382 = vmatmul.f32.gmra.mxu0 %v4265
    %v4383 = vpop.f32.mrf.mxu0
    %v4384 = vadd.f32 %v4364, %v4383
    %4385 = vdwg.mxu0
    %4386 = vmatpush.msra.mxu0 %v200
    %4387 = vmatpush.msra.mxu0 %v192
    %4388 = vmatpush.msra.mxu0 %v184
    %4389 = vmatpush.msra.mxu0 %v176
    %4390 = vmatpush.msra.mxu0 %v168
    %4391 = vmatpush.msra.mxu0 %v160
    %4392 = vmatpush.msra.mxu0 %v152
    %4393 = vmatpush.msra.mxu0 %v144
    %4394 = vmatpush.msra.mxu0 %v136
    %4395 = vmatpush.msra.mxu0 %v128
    %4396 = vmatpush.msra.mxu0 %v120
    %4397 = vmatpush.msra.mxu0 %v112
    %4398 = vmatpush.msra.mxu0 %v104
    %4399 = vmatpush.msra.mxu0 %v96
    %4400 = vmatpush.msra.mxu0 %v88
    %4401 = vmatpush.msra.mxu0 %v80
    %4402 = vmatmul.f32.gmra.mxu0 %v4118
    %v4403 = vpop.f32.mrf.mxu0
    %v4404 = vadd.f32 0.0, %v4403
    %4405 = vdwg.mxu0
    %4406 = vmatpush.msra.mxu0 %v328
    %4407 = vmatpush.msra.mxu0 %v320
    %4408 = vmatpush.msra.mxu0 %v312
    %4409 = vmatpush.msra.mxu0 %v304
    %4410 = vmatpush.msra.mxu0 %v296
    %4411 = vmatpush.msra.mxu0 %v288
    %4412 = vmatpush.msra.mxu0 %v280
    %4413 = vmatpush.msra.mxu0 %v272
    %4414 = vmatpush.msra.mxu0 %v264
    %4415 = vmatpush.msra.mxu0 %v256
    %4416 = vmatpush.msra.mxu0 %v248
    %4417 = vmatpush.msra.mxu0 %v240
    %4418 = vmatpush.msra.mxu0 %v232
    %4419 = vmatpush.msra.mxu0 %v224
    %4420 = vmatpush.msra.mxu0 %v216
    %4421 = vmatpush.msra.mxu0 %v208
    %4422 = vmatmul.f32.gmra.mxu0 %v4265
    %v4423 = vpop.f32.mrf.mxu0
    %v4424 = vadd.f32 %v4404, %v4423
    %4425 = vdwg.mxu0
    %4426 = vmatpush.msra.mxu0 %v201
    %4427 = vmatpush.msra.mxu0 %v193
    %4428 = vmatpush.msra.mxu0 %v185
    %4429 = vmatpush.msra.mxu0 %v177
    %4430 = vmatpush.msra.mxu0 %v169
    %4431 = vmatpush.msra.mxu0 %v161
    %4432 = vmatpush.msra.mxu0 %v153
    %4433 = vmatpush.msra.mxu0 %v145
    %4434 = vmatpush.msra.mxu0 %v137
    %4435 = vmatpush.msra.mxu0 %v129
    %4436 = vmatpush.msra.mxu0 %v121
    %4437 = vmatpush.msra.mxu0 %v113
    %4438 = vmatpush.msra.mxu0 %v105
    %4439 = vmatpush.msra.mxu0 %v97
    %4440 = vmatpush.msra.mxu0 %v89
    %4441 = vmatpush.msra.mxu0 %v81
    %4442 = vmatmul.f32.gmra.mxu0 %v4118
    %v4443 = vpop.f32.mrf.mxu0
    %v4444 = vadd.f32 0.0, %v4443
    %4445 = vdwg.mxu0
    %4446 = vmatpush.msra.mxu0 %v329
    %4447 = vmatpush.msra.mxu0 %v321
    %4448 = vmatpush.msra.mxu0 %v313
    %4449 = vmatpush.msra.mxu0 %v305
    %4450 = vmatpush.msra.mxu0 %v297
    %4451 = vmatpush.msra.mxu0 %v289
    %4452 = vmatpush.msra.mxu0 %v281
    %4453 = vmatpush.msra.mxu0 %v273
    %4454 = vmatpush.msra.mxu0 %v265
    %4455 = vmatpush.msra.mxu0 %v257
    %4456 = vmatpush.msra.mxu0 %v249
    %4457 = vmatpush.msra.mxu0 %v241
    %4458 = vmatpush.msra.mxu0 %v233
    %4459 = vmatpush.msra.mxu0 %v225
    %4460 = vmatpush.msra.mxu0 %v217
    %4461 = vmatpush.msra.mxu0 %v209
    %4462 = vmatmul.f32.gmra.mxu0 %v4265
    %v4463 = vpop.f32.mrf.mxu0
    %v4464 = vadd.f32 %v4444, %v4463
    %4465 = vdwg.mxu0
    %4466 = vmatpush.msra.mxu0 %v202
    %4467 = vmatpush.msra.mxu0 %v194
    %4468 = vmatpush.msra.mxu0 %v186
    %4469 = vmatpush.msra.mxu0 %v178
    %4470 = vmatpush.msra.mxu0 %v170
    %4471 = vmatpush.msra.mxu0 %v162
    %4472 = vmatpush.msra.mxu0 %v154
    %4473 = vmatpush.msra.mxu0 %v146
    %4474 = vmatpush.msra.mxu0 %v138
    %4475 = vmatpush.msra.mxu0 %v130
    %4476 = vmatpush.msra.mxu0 %v122
    %4477 = vmatpush.msra.mxu0 %v114
    %4478 = vmatpush.msra.mxu0 %v106
    %4479 = vmatpush.msra.mxu0 %v98
    %4480 = vmatpush.msra.mxu0 %v90
    %4481 = vmatpush.msra.mxu0 %v82
    %4482 = vmatmul.f32.gmra.mxu0 %v4118
    %v4483 = vpop.f32.mrf.mxu0
    %v4484 = vadd.f32 0.0, %v4483
    %4485 = vdwg.mxu0
    %4486 = vmatpush.msra.mxu0 %v330
    %4487 = vmatpush.msra.mxu0 %v322
    %4488 = vmatpush.msra.mxu0 %v314
    %4489 = vmatpush.msra.mxu0 %v306
    %4490 = vmatpush.msra.mxu0 %v298
    %4491 = vmatpush.msra.mxu0 %v290
    %4492 = vmatpush.msra.mxu0 %v282
    %4493 = vmatpush.msra.mxu0 %v274
    %4494 = vmatpush.msra.mxu0 %v266
    %4495 = vmatpush.msra.mxu0 %v258
    %4496 = vmatpush.msra.mxu0 %v250
    %4497 = vmatpush.msra.mxu0 %v242
    %4498 = vmatpush.msra.mxu0 %v234
    %4499 = vmatpush.msra.mxu0 %v226
    %4500 = vmatpush.msra.mxu0 %v218
    %4501 = vmatpush.msra.mxu0 %v210
    %4502 = vmatmul.f32.gmra.mxu0 %v4265
    %v4503 = vpop.f32.mrf.mxu0
    %v4504 = vadd.f32 %v4484, %v4503
    %4505 = vdwg.mxu0
    %4506 = vmatpush.msra.mxu0 %v203
    %4507 = vmatpush.msra.mxu0 %v195
    %4508 = vmatpush.msra.mxu0 %v187
    %4509 = vmatpush.msra.mxu0 %v179
    %4510 = vmatpush.msra.mxu0 %v171
    %4511 = vmatpush.msra.mxu0 %v163
    %4512 = vmatpush.msra.mxu0 %v155
    %4513 = vmatpush.msra.mxu0 %v147
    %4514 = vmatpush.msra.mxu0 %v139
    %4515 = vmatpush.msra.mxu0 %v131
    %4516 = vmatpush.msra.mxu0 %v123
    %4517 = vmatpush.msra.mxu0 %v115
    %4518 = vmatpush.msra.mxu0 %v107
    %4519 = vmatpush.msra.mxu0 %v99
    %4520 = vmatpush.msra.mxu0 %v91
    %4521 = vmatpush.msra.mxu0 %v83
    %4522 = vmatmul.f32.gmra.mxu0 %v4118
    %v4523 = vpop.f32.mrf.mxu0
    %v4524 = vadd.f32 0.0, %v4523
    %4525 = vdwg.mxu0
    %4526 = vmatpush.msra.mxu0 %v331
    %4527 = vmatpush.msra.mxu0 %v323
    %4528 = vmatpush.msra.mxu0 %v315
    %4529 = vmatpush.msra.mxu0 %v307
    %4530 = vmatpush.msra.mxu0 %v299
    %4531 = vmatpush.msra.mxu0 %v291
    %4532 = vmatpush.msra.mxu0 %v283
    %4533 = vmatpush.msra.mxu0 %v275
    %4534 = vmatpush.msra.mxu0 %v267
    %4535 = vmatpush.msra.mxu0 %v259
    %4536 = vmatpush.msra.mxu0 %v251
    %4537 = vmatpush.msra.mxu0 %v243
    %4538 = vmatpush.msra.mxu0 %v235
    %4539 = vmatpush.msra.mxu0 %v227
    %4540 = vmatpush.msra.mxu0 %v219
    %4541 = vmatpush.msra.mxu0 %v211
    %4542 = vmatmul.f32.gmra.mxu0 %v4265
    %v4543 = vpop.f32.mrf.mxu0
    %v4544 = vadd.f32 %v4524, %v4543
    %4545 = vdwg.mxu0
    %4546 = vmatpush.msra.mxu0 %v204
    %4547 = vmatpush.msra.mxu0 %v196
    %4548 = vmatpush.msra.mxu0 %v188
    %4549 = vmatpush.msra.mxu0 %v180
    %4550 = vmatpush.msra.mxu0 %v172
    %4551 = vmatpush.msra.mxu0 %v164
    %4552 = vmatpush.msra.mxu0 %v156
    %4553 = vmatpush.msra.mxu0 %v148
    %4554 = vmatpush.msra.mxu0 %v140
    %4555 = vmatpush.msra.mxu0 %v132
    %4556 = vmatpush.msra.mxu0 %v124
    %4557 = vmatpush.msra.mxu0 %v116
    %4558 = vmatpush.msra.mxu0 %v108
    %4559 = vmatpush.msra.mxu0 %v100
    %4560 = vmatpush.msra.mxu0 %v92
    %4561 = vmatpush.msra.mxu0 %v84
    %4562 = vmatmul.f32.gmra.mxu0 %v4118
    %v4563 = vpop.f32.mrf.mxu0
    %v4564 = vadd.f32 0.0, %v4563
    %4565 = vdwg.mxu0
    %4566 = vmatpush.msra.mxu0 %v332
    %4567 = vmatpush.msra.mxu0 %v324
    %4568 = vmatpush.msra.mxu0 %v316
    %4569 = vmatpush.msra.mxu0 %v308
    %4570 = vmatpush.msra.mxu0 %v300
    %4571 = vmatpush.msra.mxu0 %v292
    %4572 = vmatpush.msra.mxu0 %v284
    %4573 = vmatpush.msra.mxu0 %v276
    %4574 = vmatpush.msra.mxu0 %v268
    %4575 = vmatpush.msra.mxu0 %v260
    %4576 = vmatpush.msra.mxu0 %v252
    %4577 = vmatpush.msra.mxu0 %v244
    %4578 = vmatpush.msra.mxu0 %v236
    %4579 = vmatpush.msra.mxu0 %v228
    %4580 = vmatpush.msra.mxu0 %v220
    %4581 = vmatpush.msra.mxu0 %v212
    %4582 = vmatmul.f32.gmra.mxu0 %v4265
    %v4583 = vpop.f32.mrf.mxu0
    %v4584 = vadd.f32 %v4564, %v4583
    %4585 = vdwg.mxu0
    %s4586 = scalar_lea.vmem %s0, 14
    %v4587 = vld [vmem:[%s4586] sm:$0x3]
    %4589 = vset.pattern.permute.xlu0 0
    %4590 = vperm.xlu0 %4589, %v4587
    %v4591 = vpop.permute.xlu0 %4590
    %v4593 = vmul.f32 %v4591, %v660
    %v4594 = vmul.f32 %v4591, %v661
    %v4595 = vmul.f32 %v4591, %v662
    %v4596 = vmul.f32 %v4591, %v663
    %v4597 = vadd.f32 %v4593, %v673
    %v4598 = vadd.f32 %v4594, %v674
    %v4599 = vadd.f32 %v4595, %v675
    %v4600 = vadd.f32 %v4596, %v676
    %v4601 = vadd.f32 %v4597, %v4304
    %v4602 = vadd.f32 %v4598, %v4344
    %v4603 = vadd.f32 %v4599, %v4384
    %v4604 = vadd.f32 %v4600, %v4424
    %v4605 = vxor.u32 %v4601, 2147483648
    %v4606 = vxor.u32 %v4602, 2147483648
    %v4607 = vxor.u32 %v4603, 2147483648
    %v4608 = vmul.f32 %v4605, 1.442695
    %v4609 = vpow.pop %v4608
    %v4610 = vmul.f32 %v4606, 1.442695
    %v4611 = vpow.pop %v4610
    %v4612 = vmul.f32 %v4607, 1.442695
    %v4613 = vpow.pop %v4612
    %v4614 = vadd.f32 %v4609, 1.0
    %v4615 = vadd.f32 %v4611, 1.0
    %v4616 = vadd.f32 %v4613, 1.0
    %v4617 = vrcp.pop %v4614
    %v4618 = vmul.f32 %v4614, %v4617
    %v4619 = vsub.f32 1.0, %v4618
    %v4620 = vmul.f32 %v4617, %v4619
    %v4621 = vadd.f32 %v4617, %v4620
    %vm4622 = vweird.f32 %v4614
    %vm4623 = vweird.f32 %v4617
    %vm4624 = vmor %vm4622, %vm4623
    %v4625 = vsel %vm4624, %v4617, %v4621
    %v4626 = vand.u32 2147483647, %v4614
    %vm4627 = vcmp.eq.f32.partialorder %v4626, 8.507059e+37
    %v4628 = vand.u32 %v4614, 2147483648
    %v4629 = vor.u32 1.1754944e-38, %v4628
    %v4630 = vsel %vm4627, %v4629, %v4625
    %v4631 = vmul.f32 1.0, %v4630
    %v4632 = vrcp.pop %v4615
    %v4633 = vmul.f32 %v4615, %v4632
    %v4634 = vsub.f32 1.0, %v4633
    %v4635 = vmul.f32 %v4632, %v4634
    %v4636 = vadd.f32 %v4632, %v4635
    %vm4637 = vweird.f32 %v4615
    %vm4638 = vweird.f32 %v4632
    %vm4639 = vmor %vm4637, %vm4638
    %v4640 = vsel %vm4639, %v4632, %v4636
    %v4641 = vand.u32 2147483647, %v4615
    %vm4642 = vcmp.eq.f32.partialorder %v4641, 8.507059e+37
    %v4643 = vand.u32 %v4615, 2147483648
    %v4644 = vor.u32 1.1754944e-38, %v4643
    %v4645 = vsel %vm4642, %v4644, %v4640
    %v4646 = vmul.f32 1.0, %v4645
    %v4647 = vrcp.pop %v4616
    %v4648 = vmul.f32 %v4616, %v4647
    %v4649 = vsub.f32 1.0, %v4648
    %v4650 = vmul.f32 %v4647, %v4649
    %v4651 = vadd.f32 %v4647, %v4650
    %vm4652 = vweird.f32 %v4616
    %vm4653 = vweird.f32 %v4647
    %vm4654 = vmor %vm4652, %vm4653
    %v4655 = vsel %vm4654, %v4647, %v4651
    %v4656 = vand.u32 2147483647, %v4616
    %vm4657 = vcmp.eq.f32.partialorder %v4656, 8.507059e+37
    %v4658 = vand.u32 %v4616, 2147483648
    %v4659 = vor.u32 1.1754944e-38, %v4658
    %v4660 = vsel %vm4657, %v4659, %v4655
    %v4661 = vmul.f32 1.0, %v4660
    %v4662 = vtanh.pop %v4604
    %v4663 = vmul.f32 %v4646, %v4116
    %v4664 = vmul.f32 %v4631, %v4662
    %v4665 = vadd.f32 %v4663, %v4664
    %v4666 = vtanh.pop %v4665
    %v4667 = vmul.f32 %v4661, %v4666
    %4668 = vmatpush.msra.mxu0 %v812
    %4669 = vmatpush.msra.mxu0 %v808
    %4670 = vmatpush.msra.mxu0 %v804
    %4671 = vmatpush.msra.mxu0 %v800
    %4672 = vmatpush.msra.mxu0 %v796
    %4673 = vmatpush.msra.mxu0 %v792
    %4674 = vmatpush.msra.mxu0 %v788
    %4675 = vmatpush.msra.mxu0 %v784
    %4676 = vmatpush.msra.mxu0 %v780
    %4677 = vmatpush.msra.mxu0 %v776
    %4678 = vmatpush.msra.mxu0 %v772
    %4679 = vmatpush.msra.mxu0 %v768
    %4680 = vmatpush.msra.mxu0 %v764
    %4681 = vmatpush.msra.mxu0 %v760
    %4682 = vmatpush.msra.mxu0 %v756
    %4683 = vmatpush.msra.mxu0 %v752
    %4684 = vmatmul.f32.gmra.mxu0 %v4667
    %v4685 = vpop.f32.mrf.mxu0
    %v4686 = vadd.f32 %v817, %v4685
    %4687 = vdwg.mxu0
    %4688 = vmatpush.msra.mxu0 %v813
    %4689 = vmatpush.msra.mxu0 %v809
    %4690 = vmatpush.msra.mxu0 %v805
    %4691 = vmatpush.msra.mxu0 %v801
    %4692 = vmatpush.msra.mxu0 %v797
    %4693 = vmatpush.msra.mxu0 %v793
    %4694 = vmatpush.msra.mxu0 %v789
    %4695 = vmatpush.msra.mxu0 %v785
    %4696 = vmatpush.msra.mxu0 %v781
    %4697 = vmatpush.msra.mxu0 %v777
    %4698 = vmatpush.msra.mxu0 %v773
    %4699 = vmatpush.msra.mxu0 %v769
    %4700 = vmatpush.msra.mxu0 %v765
    %4701 = vmatpush.msra.mxu0 %v761
    %4702 = vmatpush.msra.mxu0 %v757
    %4703 = vmatpush.msra.mxu0 %v753
    %4704 = vmatmul.f32.gmra.mxu0 %v4667
    %v4705 = vpop.f32.mrf.mxu0
    %v4706 = vadd.f32 %v818, %v4705
    %4707 = vdwg.mxu0
    %4708 = vmatpush.msra.mxu0 %v814
    %4709 = vmatpush.msra.mxu0 %v810
    %4710 = vmatpush.msra.mxu0 %v806
    %4711 = vmatpush.msra.mxu0 %v802
    %4712 = vmatpush.msra.mxu0 %v798
    %4713 = vmatpush.msra.mxu0 %v794
    %4714 = vmatpush.msra.mxu0 %v790
    %4715 = vmatpush.msra.mxu0 %v786
    %4716 = vmatpush.msra.mxu0 %v782
    %4717 = vmatpush.msra.mxu0 %v778
    %4718 = vmatpush.msra.mxu0 %v774
    %4719 = vmatpush.msra.mxu0 %v770
    %4720 = vmatpush.msra.mxu0 %v766
    %4721 = vmatpush.msra.mxu0 %v762
    %4722 = vmatpush.msra.mxu0 %v758
    %4723 = vmatpush.msra.mxu0 %v754
    %4724 = vmatmul.f32.gmra.mxu0 %v4667
    %v4725 = vpop.f32.mrf.mxu0
    %v4726 = vadd.f32 %v819, %v4725
    %4727 = vdwg.mxu0
    %4728 = vmatpush.msra.mxu0 %v815
    %4729 = vmatpush.msra.mxu0 %v811
    %4730 = vmatpush.msra.mxu0 %v807
    %4731 = vmatpush.msra.mxu0 %v803
    %4732 = vmatpush.msra.mxu0 %v799
    %4733 = vmatpush.msra.mxu0 %v795
    %4734 = vmatpush.msra.mxu0 %v791
    %4735 = vmatpush.msra.mxu0 %v787
    %4736 = vmatpush.msra.mxu0 %v783
    %4737 = vmatpush.msra.mxu0 %v779
    %4738 = vmatpush.msra.mxu0 %v775
    %4739 = vmatpush.msra.mxu0 %v771
    %4740 = vmatpush.msra.mxu0 %v767
    %4741 = vmatpush.msra.mxu0 %v763
    %4742 = vmatpush.msra.mxu0 %v759
    %4743 = vmatpush.msra.mxu0 %v755
    %4744 = vmatmul.f32.gmra.mxu0 %v4667
    %v4745 = vpop.f32.mrf.mxu0
    %v4746 = vadd.f32 %v820, %v4745
    %4747 = vdwg.mxu0
    %v4748 = vadd.f32 %v4686, %v4464
    %v4749 = vadd.f32 %v4706, %v4504
    %v4750 = vadd.f32 %v4726, %v4544
    %v4751 = vadd.f32 %v4746, %v4584
    %v4752 = vxor.u32 %v4748, 2147483648
    %v4753 = vxor.u32 %v4749, 2147483648
    %v4754 = vxor.u32 %v4750, 2147483648
    %v4755 = vmul.f32 %v4752, 1.442695
    %v4756 = vpow.pop %v4755
    %v4757 = vmul.f32 %v4753, 1.442695
    %v4758 = vpow.pop %v4757
    %v4759 = vmul.f32 %v4754, 1.442695
    %v4760 = vpow.pop %v4759
    %v4761 = vadd.f32 %v4756, 1.0
    %v4762 = vadd.f32 %v4758, 1.0
    %v4763 = vadd.f32 %v4760, 1.0
    %v4764 = vrcp.pop %v4761
    %v4765 = vmul.f32 %v4761, %v4764
    %v4766 = vsub.f32 1.0, %v4765
    %v4767 = vmul.f32 %v4764, %v4766
    %v4768 = vadd.f32 %v4764, %v4767
    %vm4769 = vweird.f32 %v4761
    %vm4770 = vweird.f32 %v4764
    %vm4771 = vmor %vm4769, %vm4770
    %v4772 = vsel %vm4771, %v4764, %v4768
    %v4773 = vand.u32 2147483647, %v4761
    %vm4774 = vcmp.eq.f32.partialorder %v4773, 8.507059e+37
    %v4775 = vand.u32 %v4761, 2147483648
    %v4776 = vor.u32 1.1754944e-38, %v4775
    %v4777 = vsel %vm4774, %v4776, %v4772
    %v4778 = vmul.f32 1.0, %v4777
    %v4779 = vrcp.pop %v4762
    %v4780 = vmul.f32 %v4762, %v4779
    %v4781 = vsub.f32 1.0, %v4780
    %v4782 = vmul.f32 %v4779, %v4781
    %v4783 = vadd.f32 %v4779, %v4782
    %vm4784 = vweird.f32 %v4762
    %vm4785 = vweird.f32 %v4779
    %vm4786 = vmor %vm4784, %vm4785
    %v4787 = vsel %vm4786, %v4779, %v4783
    %v4788 = vand.u32 2147483647, %v4762
    %vm4789 = vcmp.eq.f32.partialorder %v4788, 8.507059e+37
    %v4790 = vand.u32 %v4762, 2147483648
    %v4791 = vor.u32 1.1754944e-38, %v4790
    %v4792 = vsel %vm4789, %v4791, %v4787
    %v4793 = vmul.f32 1.0, %v4792
    %v4794 = vrcp.pop %v4763
    %v4795 = vmul.f32 %v4763, %v4794
    %v4796 = vsub.f32 1.0, %v4795
    %v4797 = vmul.f32 %v4794, %v4796
    %v4798 = vadd.f32 %v4794, %v4797
    %vm4799 = vweird.f32 %v4763
    %vm4800 = vweird.f32 %v4794
    %vm4801 = vmor %vm4799, %vm4800
    %v4802 = vsel %vm4801, %v4794, %v4798
    %v4803 = vand.u32 2147483647, %v4763
    %vm4804 = vcmp.eq.f32.partialorder %v4803, 8.507059e+37
    %v4805 = vand.u32 %v4763, 2147483648
    %v4806 = vor.u32 1.1754944e-38, %v4805
    %v4807 = vsel %vm4804, %v4806, %v4802
    %v4808 = vmul.f32 1.0, %v4807
    %v4809 = vtanh.pop %v4751
    %v4810 = vmul.f32 %v4793, %v4263
    %v4811 = vmul.f32 %v4778, %v4809
    %v4812 = vadd.f32 %v4810, %v4811
    %v4813 = vtanh.pop %v4812
    %v4814 = vmul.f32 %v4808, %v4813
    %4815 = vst [vmem:[#allocation2] sm:$0x3] %v4667
    %4816 = vst [vmem:[#allocation3] sm:$0x3] %v4665
    %4817 = vst [vmem:[#allocation4] sm:$0x3] %v4814
    %4818 = vst [vmem:[#allocation5] sm:$0x3] %v4812
    %v4819 = vld [vmem:[%s6] sm:$0x1]
    %v4821 = vperm.slane %v4819, 0
    %v4823 = vmul.f32 %v4814, %v4821
    %vm4824 = vcmask 1041408
    %v4825 = vsel %vm4824, %v4823, 0.0
    %4826 = vadd.xlane.f32.xlu0 %v4825
    %v4827 = vpop.xlane.xlu0 %4826
    %v4828 = vld [vmem:[%s7] sm:$0x1]
    %v4830 = vperm.slane %v4828, 0
    %v4832 = vadd.f32 %v4827, %v4830
    %4833 = vst [vmem:[#allocation11] sm:$0x3] %v4832
    // Predicated region
    $region46: #{tpu_custom_call.1} parent=1 // pred_check
      _
    $region47: #{tpu_custom_call.1} parent=1 // pred_check_branch
      %4835 = sbr.rel (0) target = $region49
    $region48: #{tpu_custom_call.1} parent=1 // pred_region
      %4837 = vsyncadd [#allocation8], 0
      %s4839 = sshll.u32 [#allocation11], 4
      %s4840 = int_to_ptr.vmem [resolvable:$true] %s4839
      %s4841 = sshll.u32 %s8, 4
      %s4842 = int_to_ptr.hbm [resolvable:$true] %s4841
      %4844 = dma.vmem_to_hbm [thread:$0]  %s4840, 32, %s4842, [#allocation8]
    $region49: #{tpu_custom_call.1} parent=1 // pred_fallthru
      _
    // Predicated region
    $region50: #{tpu_custom_call.1} parent=1 // pred_check
      _
    $region51: #{tpu_custom_call.1} parent=1 // pred_check_branch
      %4846 = sbr.rel (0) target = $region53
    $region52: #{tpu_custom_call.1} parent=1 // pred_region
      %4848 = dma.done [#allocation8], 32
    $region53: #{tpu_custom_call.1} parent=1 // pred_fallthru
      _
    %4849 = vsyncpa [#allocation7], 1
    %4850 = vsyncpa [#allocation10], 1
    %4851 = vsyncpa [#allocation8], 1

</llo_original>
